<compile_context>
chip_gen: v7x
topology: tpu7x:2x2x1
jax: 0.10.0
libtpu: 0.0.40
codegen_flags: <defaults>
</compile_context>

<pallas_src>
import numpy as np
import jax
import jax.numpy as jnp
from jax.experimental import pallas as pl
from jax.experimental.pallas import tpu as pltpu

# ---- deterministic "parameters" of the module (fixed conv kernels) ----------
WINDOW = 11
SIGMA = 1.5
_k = (WINDOW - 1) // 2
# 1-D Gaussian taps; the SSIM kernel is outer(g, g), i.e. separable.
GAUSS_1D = tuple(
    float(np.exp(-z * z / (2.0 * SIGMA ** 2)) / np.sqrt(2.0 * np.pi * SIGMA ** 2))
    for z in range(-_k, _k + 1)
)
DYNAMIC_RANGE = 1000.0 - 10.0
C1 = (0.01 * DYNAMIC_RANGE) ** 2
C2 = (0.03 * DYNAMIC_RANGE) ** 2
C3 = C2 / 2.0


def _band_matrix(n_out, n_in):
    """(n_out, n_in) banded matrix with the Gaussian taps on each row.

    (A @ x)[o, :] = sum_i g[i] * x[o + i, :]  -> 1-D 'valid' correlation.
    """
    m = np.zeros((n_out, n_in), np.float32)
    g = np.asarray(GAUSS_1D, np.float32)
    for o in range(n_out):
        m[o, o:o + WINDOW] = g
    return m


# ---- Pallas kernel body ------------------------------------------------------
def _densedepth_body(pred_ref, targ_ref, a_ref, b_ref, out_ref, *,
                     bt, H, W, Ho, Wo, use_mxu):
    l1_s = jnp.zeros((1, 1), jnp.float32)
    grad_s = jnp.zeros((1, 1), jnp.float32)
    ssim_s = jnp.zeros((1, 1), jnp.float32)

    def grad_l1_sum(d):
        # 3x3 ImageGradient conv (padding=1), applied once to d = pred - target
        # (the conv is linear).  Interior -> one shifted difference; the
        # zero-padded boundary columns/rows reduce to thin |d| slices.
        s = jnp.sum(jnp.abs(d[:, 2:] - d[:, :-2]), keepdims=True)       # gx interior
        s = s + jnp.sum(jnp.abs(d[2:, :] - d[:-2, :]), keepdims=True)   # gy interior
        s = s + jnp.sum(jnp.abs(d[:, 1:2]), keepdims=True)              # gx at x = 0
        s = s + jnp.sum(jnp.abs(d[:, W - 2:W - 1]), keepdims=True)      # gx at x = W-1
        s = s + jnp.sum(jnp.abs(d[1:2, :]), keepdims=True)              # gy at y = 0
        s = s + jnp.sum(jnp.abs(d[H - 2:H - 1, :]), keepdims=True)      # gy at y = H-1
        return s

    def gconv_small(x):
        # Exact f32 separable 11-tap 'valid' correlation (small-map VPU path).
        rc = GAUSS_1D[0] * x[:, 0:Wo]
        for k in range(1, WINDOW):
            rc = rc + GAUSS_1D[k] * x[:, k:k + Wo]
        cc = GAUSS_1D[0] * rc[0:Ho, :]
        for k in range(1, WINDOW):
            cc = cc + GAUSS_1D[k] * rc[k:k + Ho, :]
        return cc

    def gconv_stacked(maps):
        # bf16 MXU path: one stacked (n*H, W) @ (W, Wo) matmul, then n
        # (Ho, H) @ (H, Wo) matmuls, all with f32 accumulation.
        a = a_ref[...]                                              # (Ho, H) bf16
        b = b_ref[...]                                              # (W, Wo) bf16
        slab = jnp.concatenate(maps, axis=0).astype(jnp.bfloat16)   # (n*H, W) bf16
        rc = jnp.dot(slab, b, preferred_element_type=jnp.float32)   # (n*H, Wo) f32
        rc = rc.astype(jnp.bfloat16)
        return [jnp.dot(a, rc[i * H:(i + 1) * H, :],
                        preferred_element_type=jnp.float32)
                for i in range(len(maps))]

    for img in range(bt):                       # static unroll over the image block
        p = pred_ref[img, 0].astype(jnp.float32)     # (H, W)
        t = targ_ref[img, 0].astype(jnp.float32)     # (H, W)
        d = p - t                                    # shared by L1 & gradient terms
        l1_s = l1_s + jnp.sum(jnp.abs(d), keepdims=True)
        grad_s = grad_s + grad_l1_sum(d)

        maps = [p, t, p * p, t * t, p * t]
        if use_mxu:
            mu_p, mu_t, m_pp, m_tt, m_pt = gconv_stacked(maps)
        else:
            mu_p, mu_t, m_pp, m_tt, m_pt = [gconv_small(m) for m in maps]
        var_p = m_pp - mu_p * mu_p
        var_t = m_tt - mu_t * mu_t
        cov = m_pt - mu_p * mu_t

        # l * c * s with C3 = C2/2  ->  (2*cov + C2) / (var_p + var_t + C2);
        # both divides fused into one reciprocal (EUP approx + 1 Newton step).
        num = (2.0 * mu_p * mu_t + C1) * (2.0 * cov + C2)
        den = (mu_p * mu_p + mu_t * mu_t + C1) * (var_p + var_t + C2)
        r = pl.reciprocal(den, approx=True)
        r = r * (2.0 - den * r)
        ssim_s = ssim_s + jnp.sum(num * r, keepdims=True)

    # Lane-dense per-step partial sums: lanes 0 / 1 / 2 = L1 / grad-L1 / SSIM.
    lane = jax.lax.broadcasted_iota(jnp.int32, (1, 128), 1)
    vals = (jnp.where(lane == 0, l1_s, 0.0)
            + jnp.where(lane == 1, grad_s, 0.0)
            + jnp.where(lane == 2, ssim_s, 0.0))
    out_ref[0] = vals                                # out_ref block: (1, 1, 128)


def _make_kernel(*, bt, H, W, Ho, Wo, use_mxu):
    if use_mxu:
        def kernel(pred_ref, targ_ref, a_ref, b_ref, out_ref):
            _densedepth_body(pred_ref, targ_ref, a_ref, b_ref, out_ref,
                             bt=bt, H=H, W=W, Ho=Ho, Wo=Wo, use_mxu=True)
    else:
        def kernel(pred_ref, targ_ref, out_ref):
            _densedepth_body(pred_ref, targ_ref, None, None, out_ref,
                             bt=bt, H=H, W=W, Ho=Ho, Wo=Wo, use_mxu=False)
    return kernel


def _vmem_limit_bytes(need_bytes):
    """Capacity-aware scoped-VMEM request (portable across 64 / 128 MiB parts)."""
    try:
        cap = int(pltpu.get_tpu_info().vmem_capacity_bytes)
    except Exception:
        cap = 64 * 1024 * 1024        # conservative (v7x per-TC VMEM)
    hi = max(cap - 8 * 1024 * 1024, 16 * 1024 * 1024)
    return int(min(max(2 * need_bytes, 32 * 1024 * 1024), hi))


# ---- wrapper -----------------------------------------------------------------
def densedepth_loss(pred_nchw, target_nchw):
    assert pred_nchw.shape == target_nchw.shape
    N, C, H, W = pred_nchw.shape
    assert C == 1, "ImageGradient / SSIM convs expect a single channel"
    assert H >= WINDOW and W >= WINDOW
    Ho, Wo = H - (WINDOW - 1), W - (WINDOW - 1)

    # Trace-time conv-path / per-step batching selection.
    use_mxu = (H * W) > 4096          # banded bf16 MXU matmuls for larger maps
    if use_mxu:
        bt = 1
    else:
        bt = 1
        for cand in range(min(N, 8), 0, -1):   # largest divisor of N that is <= 8
            if N % cand == 0:
                bt = cand
                break
    steps = N // bt
    itemsize = pred_nchw.dtype.itemsize

    in_specs = [
        pl.BlockSpec((bt, 1, H, W), lambda s: (s, 0, 0, 0)),   # pred (NCHW, direct)
        pl.BlockSpec((bt, 1, H, W), lambda s: (s, 0, 0, 0)),   # target
    ]
    args = [pred_nchw, target_nchw]
    const_bytes = 0
    if use_mxu:
        a_row = jnp.asarray(_band_matrix(Ho, H), dtype=jnp.bfloat16)    # (Ho, H)
        b_col = jnp.asarray(_band_matrix(Wo, W).T, dtype=jnp.bfloat16)  # (W, Wo)
        # TODO(synk): add pipeline_mode=pl.Buffered(1) to these constant specs
        # (index_map never changes) once validated on the deployment jax version.
        in_specs += [pl.BlockSpec((Ho, H), lambda s: (0, 0)),
                     pl.BlockSpec((W, Wo), lambda s: (0, 0))]
        args += [a_row, b_col]
        const_bytes = 2 * 2 * (Ho * H + W * Wo)                 # bf16, 2 buffers

    # Rough per-step VMEM footprint: double-buffered inputs + live temporaries.
    in_bytes = 2 * 2 * bt * H * W * itemsize
    if use_mxu:
        temp_bytes = (5 * H * W * 2            # bf16 slab
                      + 5 * H * Wo * (4 + 2)   # row-convolved f32 + bf16 recast
                      + 8 * Ho * Wo * 4        # SSIM temporaries
                      + 6 * H * W * 4)         # p, t, d, products
    else:
        temp_bytes = 12 * bt * H * W * 4
    vmem_limit = _vmem_limit_bytes(in_bytes + const_bytes + temp_bytes + (1 << 20))

    kernel = _make_kernel(bt=bt, H=H, W=W, Ho=Ho, Wo=Wo, use_mxu=use_mxu)

    partials = pl.pallas_call(
        kernel,
        out_shape=jax.ShapeDtypeStruct((steps, 1, 128), jnp.float32),
        grid_spec=pltpu.PrefetchScalarGridSpec(
            num_scalar_prefetch=0,
            grid=(steps,),
            in_specs=in_specs,
            out_specs=pl.BlockSpec((1, 1, 128), lambda s: (s, 0, 0)),
        ),
        compiler_params=pltpu.CompilerParams(
            dimension_semantics=("parallel",),   # per-step independence -> megacore
            vmem_limit_bytes=vmem_limit,
        ),
    )(*args)

    l1_total = jnp.sum(partials[:, 0, 0])
    grad_total = jnp.sum(partials[:, 0, 1])
    ssim_total = jnp.sum(partials[:, 0, 2])

    l1_mean = l1_total / float(N * H * W)
    grad_mean = grad_total / float(N * 2 * H * W)
    ssim_mean = ssim_total / float(N * Ho * Wo)
    return 0.1 * l1_mean + grad_mean + 0.5 * (1.0 - ssim_mean)


# ---- plain-JAX reference (lax.conv, HIGHEST precision, independent path) -----
def reference_loss(pred, target):
    grad_k = jnp.array(
        [[[0, 0, 0], [-1, 0, 1], [0, 0, 0]],
         [[0, -1, 0], [0, 0, 0], [0, 1, 0]]], jnp.float32).reshape(2, 1, 3, 3)
    g1d = jnp.array(GAUSS_1D, jnp.float32)
    gauss_k = jnp.outer(g1d, g1d).reshape(1, 1, WINDOW, WINDOW)
    dn = ('NCHW', 'OIHW', 'NCHW')

    def conv(x, k, pad):
        return jax.lax.conv_general_dilated(
            x, k, (1, 1), pad, dimension_numbers=dn,
            precision=jax.lax.Precision.HIGHEST)

    l1 = jnp.mean(jnp.abs(pred - target))
    gp = conv(pred, grad_k, ((1, 1), (1, 1)))
    gt = conv(target, grad_k, ((1, 1), (1, 1)))
    grad_l = jnp.mean(jnp.abs(gp - gt))

    mu_p = conv(pred, gauss_k, 'VALID')
    mu_t = conv(target, gauss_k, 'VALID')
    var_p = conv(pred * pred, gauss_k, 'VALID') - mu_p * mu_p
    var_t = conv(target * target, gauss_k, 'VALID') - mu_t * mu_t
    cov = conv(target * pred, gauss_k, 'VALID') - mu_t * mu_p
    l = (2 * mu_p * mu_t + C1) / (mu_p ** 2 + mu_t ** 2 + C1)
    c = (2 * jnp.sqrt(var_p) * jnp.sqrt(var_t) + C2) / (var_p + var_t + C2)
    s = (cov + C3) / (jnp.sqrt(var_p) * jnp.sqrt(var_t) + C3)
    ssim = jnp.mean(l * c * s)
    return 0.1 * l1 + grad_l + (1.0 - ssim) / 2.0


if __name__ == "__main__":
    key = jax.random.PRNGKey(0)
    k1, k2, k3, k4 = jax.random.split(key, 4)

    # Small maps -> exact f32 separable-MAC path (several images per grid step).
    N, C, H, W = 2, 1, 16, 16
    pred = jax.random.uniform(k1, (N, C, H, W), jnp.float32, 1.0, 5.0)
    target = jax.random.uniform(k2, (N, C, H, W), jnp.float32, 1.0, 5.0)
    loss_small = densedepth_loss(pred, target)
    jax.block_until_ready(loss_small)
    ref_small = reference_loss(pred, target)
    np.testing.assert_allclose(np.asarray(loss_small), np.asarray(ref_small),
                               rtol=1e-4, atol=1e-4)

    # Larger maps -> stacked-slab bf16 MXU path (banded Gaussian matmuls).
    N2, H2, W2 = 2, 48, 160
    pred2 = jax.random.uniform(k3, (N2, 1, H2, W2), jnp.float32, 1.0, 5.0)
    target2 = jax.random.uniform(k4, (N2, 1, H2, W2), jnp.float32, 1.0, 5.0)
    loss_big = densedepth_loss(pred2, target2)
    jax.block_until_ready(loss_big)
    ref_big = reference_loss(pred2, target2)
    np.testing.assert_allclose(np.asarray(loss_big), np.asarray(ref_big),
                               rtol=2e-3, atol=2e-3)

    print("KERNEL_OK")
</pallas_src>

<mosaic_0001>
module attributes {stable_mosaic.version = 11 : i64} {
  func.func @kernel(%arg0: i32, %arg1: memref<2x1x16x16xf32, #tpu.memory_space<vmem>>, %arg2: memref<2x1x16x16xf32, #tpu.memory_space<vmem>>, %arg3: memref<1x1x128xf32, #tpu.memory_space<vmem>>) attributes {dimension_semantics = [#tpu.dimension_semantics<parallel>], iteration_bounds = array<i64: 1>, scalar_prefetch = 0 : i64, scratch_operands = 0 : i64, tpu.core_type = #tpu.core_type<tc>, window_params = [{transform_indices = @transform_0, window_bounds = array<i64: 2, 1, 16, 16>}, {transform_indices = @transform_1, window_bounds = array<i64: 2, 1, 16, 16>}, {transform_indices = @transform_2, window_bounds = array<i64: 1, 1, 128>}]} {
    %cst = arith.constant 0.000000e+00 : f32
    %0 = vector.broadcast %cst : f32 to vector<1x1xf32>
    %cst_0 = arith.constant 0.000000e+00 : f32
    %1 = vector.broadcast %cst_0 : f32 to vector<1x1xf32>
    %cst_1 = arith.constant 0.000000e+00 : f32
    %2 = vector.broadcast %cst_1 : f32 to vector<1x1xf32>
    %c0 = arith.constant 0 : index
    %c0_2 = arith.constant 0 : index
    %c0_3 = arith.constant 0 : index
    %c0_4 = arith.constant 0 : index
    %3 = vector.load %arg1[%c0, %c0_2, %c0_3, %c0_4] : memref<2x1x16x16xf32, #tpu.memory_space<vmem>>, vector<1x1x16x16xf32>
    %4 = vector.shape_cast %3 : vector<1x1x16x16xf32> to vector<16x16xf32>
    %c0_5 = arith.constant 0 : index
    %c0_6 = arith.constant 0 : index
    %c0_7 = arith.constant 0 : index
    %c0_8 = arith.constant 0 : index
    %5 = vector.load %arg2[%c0_5, %c0_6, %c0_7, %c0_8] : memref<2x1x16x16xf32, #tpu.memory_space<vmem>>, vector<1x1x16x16xf32>
    %6 = vector.shape_cast %5 : vector<1x1x16x16xf32> to vector<16x16xf32>
    %7 = arith.subf %4, %6 : vector<16x16xf32>
    %8 = math.absf %7 : vector<16x16xf32>
    %9 = vector.shape_cast %8 : vector<16x16xf32> to vector<1x16x16xf32>
    %cst_9 = arith.constant dense<0.000000e+00> : vector<1xf32>
    %10 = vector.multi_reduction <add>, %9, %cst_9 [1, 2] : vector<1x16x16xf32> to vector<1xf32>
    %11 = vector.shape_cast %10 : vector<1xf32> to vector<1x1x1xf32>
    %12 = vector.extract %11[0, 0, 0] : f32 from vector<1x1x1xf32>
    %13 = vector.broadcast %12 : f32 to vector<1x1xf32>
    %14 = arith.addf %0, %13 : vector<1x1xf32>
    %15 = vector.extract_strided_slice %7 {offsets = [0, 2], sizes = [16, 14], strides = [1, 1]} : vector<16x16xf32> to vector<16x14xf32>
    %16 = vector.extract_strided_slice %7 {offsets = [0, 0], sizes = [16, 14], strides = [1, 1]} : vector<16x16xf32> to vector<16x14xf32>
    %17 = arith.subf %15, %16 : vector<16x14xf32>
    %18 = math.absf %17 : vector<16x14xf32>
    %19 = vector.shape_cast %18 : vector<16x14xf32> to vector<1x16x14xf32>
    %cst_10 = arith.constant dense<0.000000e+00> : vector<1xf32>
    %20 = vector.multi_reduction <add>, %19, %cst_10 [1, 2] : vector<1x16x14xf32> to vector<1xf32>
    %21 = vector.shape_cast %20 : vector<1xf32> to vector<1x1x1xf32>
    %22 = vector.extract %21[0, 0, 0] : f32 from vector<1x1x1xf32>
    %23 = vector.broadcast %22 : f32 to vector<1x1xf32>
    %24 = vector.extract_strided_slice %7 {offsets = [2, 0], sizes = [14, 16], strides = [1, 1]} : vector<16x16xf32> to vector<14x16xf32>
    %25 = vector.extract_strided_slice %7 {offsets = [0, 0], sizes = [14, 16], strides = [1, 1]} : vector<16x16xf32> to vector<14x16xf32>
    %26 = arith.subf %24, %25 : vector<14x16xf32>
    %27 = math.absf %26 : vector<14x16xf32>
    %28 = vector.shape_cast %27 : vector<14x16xf32> to vector<1x14x16xf32>
    %cst_11 = arith.constant dense<0.000000e+00> : vector<1xf32>
    %29 = vector.multi_reduction <add>, %28, %cst_11 [1, 2] : vector<1x14x16xf32> to vector<1xf32>
    %30 = vector.shape_cast %29 : vector<1xf32> to vector<1x1x1xf32>
    %31 = vector.extract %30[0, 0, 0] : f32 from vector<1x1x1xf32>
    %32 = vector.broadcast %31 : f32 to vector<1x1xf32>
    %33 = arith.addf %23, %32 : vector<1x1xf32>
    %34 = vector.extract_strided_slice %7 {offsets = [0, 1], sizes = [16, 1], strides = [1, 1]} : vector<16x16xf32> to vector<16x1xf32>
    %35 = math.absf %34 : vector<16x1xf32>
    %36 = vector.shape_cast %35 : vector<16x1xf32> to vector<1x16x1xf32>
    %cst_12 = arith.constant dense<0.000000e+00> : vector<1xf32>
    %37 = vector.multi_reduction <add>, %36, %cst_12 [1, 2] : vector<1x16x1xf32> to vector<1xf32>
    %38 = vector.shape_cast %37 : vector<1xf32> to vector<1x1x1xf32>
    %39 = vector.extract %38[0, 0, 0] : f32 from vector<1x1x1xf32>
    %40 = vector.broadcast %39 : f32 to vector<1x1xf32>
    %41 = arith.addf %33, %40 : vector<1x1xf32>
    %42 = vector.extract_strided_slice %7 {offsets = [0, 14], sizes = [16, 1], strides = [1, 1]} : vector<16x16xf32> to vector<16x1xf32>
    %43 = math.absf %42 : vector<16x1xf32>
    %44 = vector.shape_cast %43 : vector<16x1xf32> to vector<1x16x1xf32>
    %cst_13 = arith.constant dense<0.000000e+00> : vector<1xf32>
    %45 = vector.multi_reduction <add>, %44, %cst_13 [1, 2] : vector<1x16x1xf32> to vector<1xf32>
    %46 = vector.shape_cast %45 : vector<1xf32> to vector<1x1x1xf32>
    %47 = vector.extract %46[0, 0, 0] : f32 from vector<1x1x1xf32>
    %48 = vector.broadcast %47 : f32 to vector<1x1xf32>
    %49 = arith.addf %41, %48 : vector<1x1xf32>
    %50 = vector.extract_strided_slice %7 {offsets = [1, 0], sizes = [1, 16], strides = [1, 1]} : vector<16x16xf32> to vector<1x16xf32>
    %51 = math.absf %50 : vector<1x16xf32>
    %52 = vector.shape_cast %51 : vector<1x16xf32> to vector<1x1x16xf32>
    %cst_14 = arith.constant dense<0.000000e+00> : vector<1xf32>
    %53 = vector.multi_reduction <add>, %52, %cst_14 [1, 2] : vector<1x1x16xf32> to vector<1xf32>
    %54 = vector.shape_cast %53 : vector<1xf32> to vector<1x1x1xf32>
    %55 = vector.extract %54[0, 0, 0] : f32 from vector<1x1x1xf32>
    %56 = vector.broadcast %55 : f32 to vector<1x1xf32>
    %57 = arith.addf %49, %56 : vector<1x1xf32>
    %58 = vector.extract_strided_slice %7 {offsets = [14, 0], sizes = [1, 16], strides = [1, 1]} : vector<16x16xf32> to vector<1x16xf32>
    %59 = math.absf %58 : vector<1x16xf32>
    %60 = vector.shape_cast %59 : vector<1x16xf32> to vector<1x1x16xf32>
    %cst_15 = arith.constant dense<0.000000e+00> : vector<1xf32>
    %61 = vector.multi_reduction <add>, %60, %cst_15 [1, 2] : vector<1x1x16xf32> to vector<1xf32>
    %62 = vector.shape_cast %61 : vector<1xf32> to vector<1x1x1xf32>
    %63 = vector.extract %62[0, 0, 0] : f32 from vector<1x1x1xf32>
    %64 = vector.broadcast %63 : f32 to vector<1x1xf32>
    %65 = arith.addf %57, %64 : vector<1x1xf32>
    %66 = arith.addf %1, %65 : vector<1x1xf32>
    %67 = arith.mulf %4, %4 : vector<16x16xf32>
    %68 = arith.mulf %6, %6 : vector<16x16xf32>
    %69 = arith.mulf %4, %6 : vector<16x16xf32>
    %70 = vector.extract_strided_slice %4 {offsets = [0, 0], sizes = [16, 6], strides = [1, 1]} : vector<16x16xf32> to vector<16x6xf32>
    %cst_16 = arith.constant 0.00102818594 : f32
    %71 = vector.broadcast %cst_16 : f32 to vector<16x6xf32>
    %72 = arith.mulf %71, %70 : vector<16x6xf32>
    %73 = vector.extract_strided_slice %4 {offsets = [0, 1], sizes = [16, 6], strides = [1, 1]} : vector<16x16xf32> to vector<16x6xf32>
    %cst_17 = arith.constant 0.00759732397 : f32
    %74 = vector.broadcast %cst_17 : f32 to vector<16x6xf32>
    %75 = arith.mulf %74, %73 : vector<16x6xf32>
    %76 = arith.addf %72, %75 : vector<16x6xf32>
    %77 = vector.extract_strided_slice %4 {offsets = [0, 2], sizes = [16, 6], strides = [1, 1]} : vector<16x16xf32> to vector<16x6xf32>
    %cst_18 = arith.constant 0.0359939784 : f32
    %78 = vector.broadcast %cst_18 : f32 to vector<16x6xf32>
    %79 = arith.mulf %78, %77 : vector<16x6xf32>
    %80 = arith.addf %76, %79 : vector<16x6xf32>
    %81 = vector.extract_strided_slice %4 {offsets = [0, 3], sizes = [16, 6], strides = [1, 1]} : vector<16x16xf32> to vector<16x6xf32>
    %cst_19 = arith.constant 0.109340049 : f32
    %82 = vector.broadcast %cst_19 : f32 to vector<16x6xf32>
    %83 = arith.mulf %82, %81 : vector<16x6xf32>
    %84 = arith.addf %80, %83 : vector<16x6xf32>
    %85 = vector.extract_strided_slice %4 {offsets = [0, 4], sizes = [16, 6], strides = [1, 1]} : vector<16x16xf32> to vector<16x6xf32>
    %cst_20 = arith.constant 0.212965339 : f32
    %86 = vector.broadcast %cst_20 : f32 to vector<16x6xf32>
    %87 = arith.mulf %86, %85 : vector<16x6xf32>
    %88 = arith.addf %84, %87 : vector<16x6xf32>
    %89 = vector.extract_strided_slice %4 {offsets = [0, 5], sizes = [16, 6], strides = [1, 1]} : vector<16x16xf32> to vector<16x6xf32>
    %cst_21 = arith.constant 0.265961528 : f32
    %90 = vector.broadcast %cst_21 : f32 to vector<16x6xf32>
    %91 = arith.mulf %90, %89 : vector<16x6xf32>
    %92 = arith.addf %88, %91 : vector<16x6xf32>
    %93 = vector.extract_strided_slice %4 {offsets = [0, 6], sizes = [16, 6], strides = [1, 1]} : vector<16x16xf32> to vector<16x6xf32>
    %cst_22 = arith.constant 0.212965339 : f32
    %94 = vector.broadcast %cst_22 : f32 to vector<16x6xf32>
    %95 = arith.mulf %94, %93 : vector<16x6xf32>
    %96 = arith.addf %92, %95 : vector<16x6xf32>
    %97 = vector.extract_strided_slice %4 {offsets = [0, 7], sizes = [16, 6], strides = [1, 1]} : vector<16x16xf32> to vector<16x6xf32>
    %cst_23 = arith.constant 0.109340049 : f32
    %98 = vector.broadcast %cst_23 : f32 to vector<16x6xf32>
    %99 = arith.mulf %98, %97 : vector<16x6xf32>
    %100 = arith.addf %96, %99 : vector<16x6xf32>
    %101 = vector.extract_strided_slice %4 {offsets = [0, 8], sizes = [16, 6], strides = [1, 1]} : vector<16x16xf32> to vector<16x6xf32>
    %cst_24 = arith.constant 0.0359939784 : f32
    %102 = vector.broadcast %cst_24 : f32 to vector<16x6xf32>
    %103 = arith.mulf %102, %101 : vector<16x6xf32>
    %104 = arith.addf %100, %103 : vector<16x6xf32>
    %105 = vector.extract_strided_slice %4 {offsets = [0, 9], sizes = [16, 6], strides = [1, 1]} : vector<16x16xf32> to vector<16x6xf32>
    %cst_25 = arith.constant 0.00759732397 : f32
    %106 = vector.broadcast %cst_25 : f32 to vector<16x6xf32>
    %107 = arith.mulf %106, %105 : vector<16x6xf32>
    %108 = arith.addf %104, %107 : vector<16x6xf32>
    %109 = vector.extract_strided_slice %4 {offsets = [0, 10], sizes = [16, 6], strides = [1, 1]} : vector<16x16xf32> to vector<16x6xf32>
    %cst_26 = arith.constant 0.00102818594 : f32
    %110 = vector.broadcast %cst_26 : f32 to vector<16x6xf32>
    %111 = arith.mulf %110, %109 : vector<16x6xf32>
    %112 = arith.addf %108, %111 : vector<16x6xf32>
    %113 = vector.extract_strided_slice %112 {offsets = [0, 0], sizes = [6, 6], strides = [1, 1]} : vector<16x6xf32> to vector<6x6xf32>
    %cst_27 = arith.constant 0.00102818594 : f32
    %114 = vector.broadcast %cst_27 : f32 to vector<6x6xf32>
    %115 = arith.mulf %114, %113 : vector<6x6xf32>
    %116 = vector.extract_strided_slice %112 {offsets = [1, 0], sizes = [6, 6], strides = [1, 1]} : vector<16x6xf32> to vector<6x6xf32>
    %cst_28 = arith.constant 0.00759732397 : f32
    %117 = vector.broadcast %cst_28 : f32 to vector<6x6xf32>
    %118 = arith.mulf %117, %116 : vector<6x6xf32>
    %119 = arith.addf %115, %118 : vector<6x6xf32>
    %120 = vector.extract_strided_slice %112 {offsets = [2, 0], sizes = [6, 6], strides = [1, 1]} : vector<16x6xf32> to vector<6x6xf32>
    %cst_29 = arith.constant 0.0359939784 : f32
    %121 = vector.broadcast %cst_29 : f32 to vector<6x6xf32>
    %122 = arith.mulf %121, %120 : vector<6x6xf32>
    %123 = arith.addf %119, %122 : vector<6x6xf32>
    %124 = vector.extract_strided_slice %112 {offsets = [3, 0], sizes = [6, 6], strides = [1, 1]} : vector<16x6xf32> to vector<6x6xf32>
    %cst_30 = arith.constant 0.109340049 : f32
    %125 = vector.broadcast %cst_30 : f32 to vector<6x6xf32>
    %126 = arith.mulf %125, %124 : vector<6x6xf32>
    %127 = arith.addf %123, %126 : vector<6x6xf32>
    %128 = vector.extract_strided_slice %112 {offsets = [4, 0], sizes = [6, 6], strides = [1, 1]} : vector<16x6xf32> to vector<6x6xf32>
    %cst_31 = arith.constant 0.212965339 : f32
    %129 = vector.broadcast %cst_31 : f32 to vector<6x6xf32>
    %130 = arith.mulf %129, %128 : vector<6x6xf32>
    %131 = arith.addf %127, %130 : vector<6x6xf32>
    %132 = vector.extract_strided_slice %112 {offsets = [5, 0], sizes = [6, 6], strides = [1, 1]} : vector<16x6xf32> to vector<6x6xf32>
    %cst_32 = arith.constant 0.265961528 : f32
    %133 = vector.broadcast %cst_32 : f32 to vector<6x6xf32>
    %134 = arith.mulf %133, %132 : vector<6x6xf32>
    %135 = arith.addf %131, %134 : vector<6x6xf32>
    %136 = vector.extract_strided_slice %112 {offsets = [6, 0], sizes = [6, 6], strides = [1, 1]} : vector<16x6xf32> to vector<6x6xf32>
    %cst_33 = arith.constant 0.212965339 : f32
    %137 = vector.broadcast %cst_33 : f32 to vector<6x6xf32>
    %138 = arith.mulf %137, %136 : vector<6x6xf32>
    %139 = arith.addf %135, %138 : vector<6x6xf32>
    %140 = vector.extract_strided_slice %112 {offsets = [7, 0], sizes = [6, 6], strides = [1, 1]} : vector<16x6xf32> to vector<6x6xf32>
    %cst_34 = arith.constant 0.109340049 : f32
    %141 = vector.broadcast %cst_34 : f32 to vector<6x6xf32>
    %142 = arith.mulf %141, %140 : vector<6x6xf32>
    %143 = arith.addf %139, %142 : vector<6x6xf32>
    %144 = vector.extract_strided_slice %112 {offsets = [8, 0], sizes = [6, 6], strides = [1, 1]} : vector<16x6xf32> to vector<6x6xf32>
    %cst_35 = arith.constant 0.0359939784 : f32
    %145 = vector.broadcast %cst_35 : f32 to vector<6x6xf32>
    %146 = arith.mulf %145, %144 : vector<6x6xf32>
    %147 = arith.addf %143, %146 : vector<6x6xf32>
    %148 = vector.extract_strided_slice %112 {offsets = [9, 0], sizes = [6, 6], strides = [1, 1]} : vector<16x6xf32> to vector<6x6xf32>
    %cst_36 = arith.constant 0.00759732397 : f32
    %149 = vector.broadcast %cst_36 : f32 to vector<6x6xf32>
    %150 = arith.mulf %149, %148 : vector<6x6xf32>
    %151 = arith.addf %147, %150 : vector<6x6xf32>
    %152 = vector.extract_strided_slice %112 {offsets = [10, 0], sizes = [6, 6], strides = [1, 1]} : vector<16x6xf32> to vector<6x6xf32>
    %cst_37 = arith.constant 0.00102818594 : f32
    %153 = vector.broadcast %cst_37 : f32 to vector<6x6xf32>
    %154 = arith.mulf %153, %152 : vector<6x6xf32>
    %155 = arith.addf %151, %154 : vector<6x6xf32>
    %156 = vector.extract_strided_slice %6 {offsets = [0, 0], sizes = [16, 6], strides = [1, 1]} : vector<16x16xf32> to vector<16x6xf32>
    %cst_38 = arith.constant 0.00102818594 : f32
    %157 = vector.broadcast %cst_38 : f32 to vector<16x6xf32>
    %158 = arith.mulf %157, %156 : vector<16x6xf32>
    %159 = vector.extract_strided_slice %6 {offsets = [0, 1], sizes = [16, 6], strides = [1, 1]} : vector<16x16xf32> to vector<16x6xf32>
    %cst_39 = arith.constant 0.00759732397 : f32
    %160 = vector.broadcast %cst_39 : f32 to vector<16x6xf32>
    %161 = arith.mulf %160, %159 : vector<16x6xf32>
    %162 = arith.addf %158, %161 : vector<16x6xf32>
    %163 = vector.extract_strided_slice %6 {offsets = [0, 2], sizes = [16, 6], strides = [1, 1]} : vector<16x16xf32> to vector<16x6xf32>
    %cst_40 = arith.constant 0.0359939784 : f32
    %164 = vector.broadcast %cst_40 : f32 to vector<16x6xf32>
    %165 = arith.mulf %164, %163 : vector<16x6xf32>
    %166 = arith.addf %162, %165 : vector<16x6xf32>
    %167 = vector.extract_strided_slice %6 {offsets = [0, 3], sizes = [16, 6], strides = [1, 1]} : vector<16x16xf32> to vector<16x6xf32>
    %cst_41 = arith.constant 0.109340049 : f32
    %168 = vector.broadcast %cst_41 : f32 to vector<16x6xf32>
    %169 = arith.mulf %168, %167 : vector<16x6xf32>
    %170 = arith.addf %166, %169 : vector<16x6xf32>
    %171 = vector.extract_strided_slice %6 {offsets = [0, 4], sizes = [16, 6], strides = [1, 1]} : vector<16x16xf32> to vector<16x6xf32>
    %cst_42 = arith.constant 0.212965339 : f32
    %172 = vector.broadcast %cst_42 : f32 to vector<16x6xf32>
    %173 = arith.mulf %172, %171 : vector<16x6xf32>
    %174 = arith.addf %170, %173 : vector<16x6xf32>
    %175 = vector.extract_strided_slice %6 {offsets = [0, 5], sizes = [16, 6], strides = [1, 1]} : vector<16x16xf32> to vector<16x6xf32>
    %cst_43 = arith.constant 0.265961528 : f32
    %176 = vector.broadcast %cst_43 : f32 to vector<16x6xf32>
    %177 = arith.mulf %176, %175 : vector<16x6xf32>
    %178 = arith.addf %174, %177 : vector<16x6xf32>
    %179 = vector.extract_strided_slice %6 {offsets = [0, 6], sizes = [16, 6], strides = [1, 1]} : vector<16x16xf32> to vector<16x6xf32>
    %cst_44 = arith.constant 0.212965339 : f32
    %180 = vector.broadcast %cst_44 : f32 to vector<16x6xf32>
    %181 = arith.mulf %180, %179 : vector<16x6xf32>
    %182 = arith.addf %178, %181 : vector<16x6xf32>
    %183 = vector.extract_strided_slice %6 {offsets = [0, 7], sizes = [16, 6], strides = [1, 1]} : vector<16x16xf32> to vector<16x6xf32>
    %cst_45 = arith.constant 0.109340049 : f32
    %184 = vector.broadcast %cst_45 : f32 to vector<16x6xf32>
    %185 = arith.mulf %184, %183 : vector<16x6xf32>
    %186 = arith.addf %182, %185 : vector<16x6xf32>
    %187 = vector.extract_strided_slice %6 {offsets = [0, 8], sizes = [16, 6], strides = [1, 1]} : vector<16x16xf32> to vector<16x6xf32>
    %cst_46 = arith.constant 0.0359939784 : f32
    %188 = vector.broadcast %cst_46 : f32 to vector<16x6xf32>
    %189 = arith.mulf %188, %187 : vector<16x6xf32>
    %190 = arith.addf %186, %189 : vector<16x6xf32>
    %191 = vector.extract_strided_slice %6 {offsets = [0, 9], sizes = [16, 6], strides = [1, 1]} : vector<16x16xf32> to vector<16x6xf32>
    %cst_47 = arith.constant 0.00759732397 : f32
    %192 = vector.broadcast %cst_47 : f32 to vector<16x6xf32>
    %193 = arith.mulf %192, %191 : vector<16x6xf32>
    %194 = arith.addf %190, %193 : vector<16x6xf32>
    %195 = vector.extract_strided_slice %6 {offsets = [0, 10], sizes = [16, 6], strides = [1, 1]} : vector<16x16xf32> to vector<16x6xf32>
    %cst_48 = arith.constant 0.00102818594 : f32
    %196 = vector.broadcast %cst_48 : f32 to vector<16x6xf32>
    %197 = arith.mulf %196, %195 : vector<16x6xf32>
    %198 = arith.addf %194, %197 : vector<16x6xf32>
    %199 = vector.extract_strided_slice %198 {offsets = [0, 0], sizes = [6, 6], strides = [1, 1]} : vector<16x6xf32> to vector<6x6xf32>
    %cst_49 = arith.constant 0.00102818594 : f32
    %200 = vector.broadcast %cst_49 : f32 to vector<6x6xf32>
    %201 = arith.mulf %200, %199 : vector<6x6xf32>
    %202 = vector.extract_strided_slice %198 {offsets = [1, 0], sizes = [6, 6], strides = [1, 1]} : vector<16x6xf32> to vector<6x6xf32>
    %cst_50 = arith.constant 0.00759732397 : f32
    %203 = vector.broadcast %cst_50 : f32 to vector<6x6xf32>
    %204 = arith.mulf %203, %202 : vector<6x6xf32>
    %205 = arith.addf %201, %204 : vector<6x6xf32>
    %206 = vector.extract_strided_slice %198 {offsets = [2, 0], sizes = [6, 6], strides = [1, 1]} : vector<16x6xf32> to vector<6x6xf32>
    %cst_51 = arith.constant 0.0359939784 : f32
    %207 = vector.broadcast %cst_51 : f32 to vector<6x6xf32>
    %208 = arith.mulf %207, %206 : vector<6x6xf32>
    %209 = arith.addf %205, %208 : vector<6x6xf32>
    %210 = vector.extract_strided_slice %198 {offsets = [3, 0], sizes = [6, 6], strides = [1, 1]} : vector<16x6xf32> to vector<6x6xf32>
    %cst_52 = arith.constant 0.109340049 : f32
    %211 = vector.broadcast %cst_52 : f32 to vector<6x6xf32>
    %212 = arith.mulf %211, %210 : vector<6x6xf32>
    %213 = arith.addf %209, %212 : vector<6x6xf32>
    %214 = vector.extract_strided_slice %198 {offsets = [4, 0], sizes = [6, 6], strides = [1, 1]} : vector<16x6xf32> to vector<6x6xf32>
    %cst_53 = arith.constant 0.212965339 : f32
    %215 = vector.broadcast %cst_53 : f32 to vector<6x6xf32>
    %216 = arith.mulf %215, %214 : vector<6x6xf32>
    %217 = arith.addf %213, %216 : vector<6x6xf32>
    %218 = vector.extract_strided_slice %198 {offsets = [5, 0], sizes = [6, 6], strides = [1, 1]} : vector<16x6xf32> to vector<6x6xf32>
    %cst_54 = arith.constant 0.265961528 : f32
    %219 = vector.broadcast %cst_54 : f32 to vector<6x6xf32>
    %220 = arith.mulf %219, %218 : vector<6x6xf32>
    %221 = arith.addf %217, %220 : vector<6x6xf32>
    %222 = vector.extract_strided_slice %198 {offsets = [6, 0], sizes = [6, 6], strides = [1, 1]} : vector<16x6xf32> to vector<6x6xf32>
    %cst_55 = arith.constant 0.212965339 : f32
    %223 = vector.broadcast %cst_55 : f32 to vector<6x6xf32>
    %224 = arith.mulf %223, %222 : vector<6x6xf32>
    %225 = arith.addf %221, %224 : vector<6x6xf32>
    %226 = vector.extract_strided_slice %198 {offsets = [7, 0], sizes = [6, 6], strides = [1, 1]} : vector<16x6xf32> to vector<6x6xf32>
    %cst_56 = arith.constant 0.109340049 : f32
    %227 = vector.broadcast %cst_56 : f32 to vector<6x6xf32>
    %228 = arith.mulf %227, %226 : vector<6x6xf32>
    %229 = arith.addf %225, %228 : vector<6x6xf32>
    %230 = vector.extract_strided_slice %198 {offsets = [8, 0], sizes = [6, 6], strides = [1, 1]} : vector<16x6xf32> to vector<6x6xf32>
    %cst_57 = arith.constant 0.0359939784 : f32
    %231 = vector.broadcast %cst_57 : f32 to vector<6x6xf32>
    %232 = arith.mulf %231, %230 : vector<6x6xf32>
    %233 = arith.addf %229, %232 : vector<6x6xf32>
    %234 = vector.extract_strided_slice %198 {offsets = [9, 0], sizes = [6, 6], strides = [1, 1]} : vector<16x6xf32> to vector<6x6xf32>
    %cst_58 = arith.constant 0.00759732397 : f32
    %235 = vector.broadcast %cst_58 : f32 to vector<6x6xf32>
    %236 = arith.mulf %235, %234 : vector<6x6xf32>
    %237 = arith.addf %233, %236 : vector<6x6xf32>
    %238 = vector.extract_strided_slice %198 {offsets = [10, 0], sizes = [6, 6], strides = [1, 1]} : vector<16x6xf32> to vector<6x6xf32>
    %cst_59 = arith.constant 0.00102818594 : f32
    %239 = vector.broadcast %cst_59 : f32 to vector<6x6xf32>
    %240 = arith.mulf %239, %238 : vector<6x6xf32>
    %241 = arith.addf %237, %240 : vector<6x6xf32>
    %242 = vector.extract_strided_slice %67 {offsets = [0, 0], sizes = [16, 6], strides = [1, 1]} : vector<16x16xf32> to vector<16x6xf32>
    %cst_60 = arith.constant 0.00102818594 : f32
    %243 = vector.broadcast %cst_60 : f32 to vector<16x6xf32>
    %244 = arith.mulf %243, %242 : vector<16x6xf32>
    %245 = vector.extract_strided_slice %67 {offsets = [0, 1], sizes = [16, 6], strides = [1, 1]} : vector<16x16xf32> to vector<16x6xf32>
    %cst_61 = arith.constant 0.00759732397 : f32
    %246 = vector.broadcast %cst_61 : f32 to vector<16x6xf32>
    %247 = arith.mulf %246, %245 : vector<16x6xf32>
    %248 = arith.addf %244, %247 : vector<16x6xf32>
    %249 = vector.extract_strided_slice %67 {offsets = [0, 2], sizes = [16, 6], strides = [1, 1]} : vector<16x16xf32> to vector<16x6xf32>
    %cst_62 = arith.constant 0.0359939784 : f32
    %250 = vector.broadcast %cst_62 : f32 to vector<16x6xf32>
    %251 = arith.mulf %250, %249 : vector<16x6xf32>
    %252 = arith.addf %248, %251 : vector<16x6xf32>
    %253 = vector.extract_strided_slice %67 {offsets = [0, 3], sizes = [16, 6], strides = [1, 1]} : vector<16x16xf32> to vector<16x6xf32>
    %cst_63 = arith.constant 0.109340049 : f32
    %254 = vector.broadcast %cst_63 : f32 to vector<16x6xf32>
    %255 = arith.mulf %254, %253 : vector<16x6xf32>
    %256 = arith.addf %252, %255 : vector<16x6xf32>
    %257 = vector.extract_strided_slice %67 {offsets = [0, 4], sizes = [16, 6], strides = [1, 1]} : vector<16x16xf32> to vector<16x6xf32>
    %cst_64 = arith.constant 0.212965339 : f32
    %258 = vector.broadcast %cst_64 : f32 to vector<16x6xf32>
    %259 = arith.mulf %258, %257 : vector<16x6xf32>
    %260 = arith.addf %256, %259 : vector<16x6xf32>
    %261 = vector.extract_strided_slice %67 {offsets = [0, 5], sizes = [16, 6], strides = [1, 1]} : vector<16x16xf32> to vector<16x6xf32>
    %cst_65 = arith.constant 0.265961528 : f32
    %262 = vector.broadcast %cst_65 : f32 to vector<16x6xf32>
    %263 = arith.mulf %262, %261 : vector<16x6xf32>
    %264 = arith.addf %260, %263 : vector<16x6xf32>
    %265 = vector.extract_strided_slice %67 {offsets = [0, 6], sizes = [16, 6], strides = [1, 1]} : vector<16x16xf32> to vector<16x6xf32>
    %cst_66 = arith.constant 0.212965339 : f32
    %266 = vector.broadcast %cst_66 : f32 to vector<16x6xf32>
    %267 = arith.mulf %266, %265 : vector<16x6xf32>
    %268 = arith.addf %264, %267 : vector<16x6xf32>
    %269 = vector.extract_strided_slice %67 {offsets = [0, 7], sizes = [16, 6], strides = [1, 1]} : vector<16x16xf32> to vector<16x6xf32>
    %cst_67 = arith.constant 0.109340049 : f32
    %270 = vector.broadcast %cst_67 : f32 to vector<16x6xf32>
    %271 = arith.mulf %270, %269 : vector<16x6xf32>
    %272 = arith.addf %268, %271 : vector<16x6xf32>
    %273 = vector.extract_strided_slice %67 {offsets = [0, 8], sizes = [16, 6], strides = [1, 1]} : vector<16x16xf32> to vector<16x6xf32>
    %cst_68 = arith.constant 0.0359939784 : f32
    %274 = vector.broadcast %cst_68 : f32 to vector<16x6xf32>
    %275 = arith.mulf %274, %273 : vector<16x6xf32>
    %276 = arith.addf %272, %275 : vector<16x6xf32>
    %277 = vector.extract_strided_slice %67 {offsets = [0, 9], sizes = [16, 6], strides = [1, 1]} : vector<16x16xf32> to vector<16x6xf32>
    %cst_69 = arith.constant 0.00759732397 : f32
    %278 = vector.broadcast %cst_69 : f32 to vector<16x6xf32>
    %279 = arith.mulf %278, %277 : vector<16x6xf32>
    %280 = arith.addf %276, %279 : vector<16x6xf32>
    %281 = vector.extract_strided_slice %67 {offsets = [0, 10], sizes = [16, 6], strides = [1, 1]} : vector<16x16xf32> to vector<16x6xf32>
    %cst_70 = arith.constant 0.00102818594 : f32
    %282 = vector.broadcast %cst_70 : f32 to vector<16x6xf32>
    %283 = arith.mulf %282, %281 : vector<16x6xf32>
    %284 = arith.addf %280, %283 : vector<16x6xf32>
    %285 = vector.extract_strided_slice %284 {offsets = [0, 0], sizes = [6, 6], strides = [1, 1]} : vector<16x6xf32> to vector<6x6xf32>
    %cst_71 = arith.constant 0.00102818594 : f32
    %286 = vector.broadcast %cst_71 : f32 to vector<6x6xf32>
    %287 = arith.mulf %286, %285 : vector<6x6xf32>
    %288 = vector.extract_strided_slice %284 {offsets = [1, 0], sizes = [6, 6], strides = [1, 1]} : vector<16x6xf32> to vector<6x6xf32>
    %cst_72 = arith.constant 0.00759732397 : f32
    %289 = vector.broadcast %cst_72 : f32 to vector<6x6xf32>
    %290 = arith.mulf %289, %288 : vector<6x6xf32>
    %291 = arith.addf %287, %290 : vector<6x6xf32>
    %292 = vector.extract_strided_slice %284 {offsets = [2, 0], sizes = [6, 6], strides = [1, 1]} : vector<16x6xf32> to vector<6x6xf32>
    %cst_73 = arith.constant 0.0359939784 : f32
    %293 = vector.broadcast %cst_73 : f32 to vector<6x6xf32>
    %294 = arith.mulf %293, %292 : vector<6x6xf32>
    %295 = arith.addf %291, %294 : vector<6x6xf32>
    %296 = vector.extract_strided_slice %284 {offsets = [3, 0], sizes = [6, 6], strides = [1, 1]} : vector<16x6xf32> to vector<6x6xf32>
    %cst_74 = arith.constant 0.109340049 : f32
    %297 = vector.broadcast %cst_74 : f32 to vector<6x6xf32>
    %298 = arith.mulf %297, %296 : vector<6x6xf32>
    %299 = arith.addf %295, %298 : vector<6x6xf32>
    %300 = vector.extract_strided_slice %284 {offsets = [4, 0], sizes = [6, 6], strides = [1, 1]} : vector<16x6xf32> to vector<6x6xf32>
    %cst_75 = arith.constant 0.212965339 : f32
    %301 = vector.broadcast %cst_75 : f32 to vector<6x6xf32>
    %302 = arith.mulf %301, %300 : vector<6x6xf32>
    %303 = arith.addf %299, %302 : vector<6x6xf32>
    %304 = vector.extract_strided_slice %284 {offsets = [5, 0], sizes = [6, 6], strides = [1, 1]} : vector<16x6xf32> to vector<6x6xf32>
    %cst_76 = arith.constant 0.265961528 : f32
    %305 = vector.broadcast %cst_76 : f32 to vector<6x6xf32>
    %306 = arith.mulf %305, %304 : vector<6x6xf32>
    %307 = arith.addf %303, %306 : vector<6x6xf32>
    %308 = vector.extract_strided_slice %284 {offsets = [6, 0], sizes = [6, 6], strides = [1, 1]} : vector<16x6xf32> to vector<6x6xf32>
    %cst_77 = arith.constant 0.212965339 : f32
    %309 = vector.broadcast %cst_77 : f32 to vector<6x6xf32>
    %310 = arith.mulf %309, %308 : vector<6x6xf32>
    %311 = arith.addf %307, %310 : vector<6x6xf32>
    %312 = vector.extract_strided_slice %284 {offsets = [7, 0], sizes = [6, 6], strides = [1, 1]} : vector<16x6xf32> to vector<6x6xf32>
    %cst_78 = arith.constant 0.109340049 : f32
    %313 = vector.broadcast %cst_78 : f32 to vector<6x6xf32>
    %314 = arith.mulf %313, %312 : vector<6x6xf32>
    %315 = arith.addf %311, %314 : vector<6x6xf32>
    %316 = vector.extract_strided_slice %284 {offsets = [8, 0], sizes = [6, 6], strides = [1, 1]} : vector<16x6xf32> to vector<6x6xf32>
    %cst_79 = arith.constant 0.0359939784 : f32
    %317 = vector.broadcast %cst_79 : f32 to vector<6x6xf32>
    %318 = arith.mulf %317, %316 : vector<6x6xf32>
    %319 = arith.addf %315, %318 : vector<6x6xf32>
    %320 = vector.extract_strided_slice %284 {offsets = [9, 0], sizes = [6, 6], strides = [1, 1]} : vector<16x6xf32> to vector<6x6xf32>
    %cst_80 = arith.constant 0.00759732397 : f32
    %321 = vector.broadcast %cst_80 : f32 to vector<6x6xf32>
    %322 = arith.mulf %321, %320 : vector<6x6xf32>
    %323 = arith.addf %319, %322 : vector<6x6xf32>
    %324 = vector.extract_strided_slice %284 {offsets = [10, 0], sizes = [6, 6], strides = [1, 1]} : vector<16x6xf32> to vector<6x6xf32>
    %cst_81 = arith.constant 0.00102818594 : f32
    %325 = vector.broadcast %cst_81 : f32 to vector<6x6xf32>
    %326 = arith.mulf %325, %324 : vector<6x6xf32>
    %327 = arith.addf %323, %326 : vector<6x6xf32>
    %328 = vector.extract_strided_slice %68 {offsets = [0, 0], sizes = [16, 6], strides = [1, 1]} : vector<16x16xf32> to vector<16x6xf32>
    %cst_82 = arith.constant 0.00102818594 : f32
    %329 = vector.broadcast %cst_82 : f32 to vector<16x6xf32>
    %330 = arith.mulf %329, %328 : vector<16x6xf32>
    %331 = vector.extract_strided_slice %68 {offsets = [0, 1], sizes = [16, 6], strides = [1, 1]} : vector<16x16xf32> to vector<16x6xf32>
    %cst_83 = arith.constant 0.00759732397 : f32
    %332 = vector.broadcast %cst_83 : f32 to vector<16x6xf32>
    %333 = arith.mulf %332, %331 : vector<16x6xf32>
    %334 = arith.addf %330, %333 : vector<16x6xf32>
    %335 = vector.extract_strided_slice %68 {offsets = [0, 2], sizes = [16, 6], strides = [1, 1]} : vector<16x16xf32> to vector<16x6xf32>
    %cst_84 = arith.constant 0.0359939784 : f32
    %336 = vector.broadcast %cst_84 : f32 to vector<16x6xf32>
    %337 = arith.mulf %336, %335 : vector<16x6xf32>
    %338 = arith.addf %334, %337 : vector<16x6xf32>
    %339 = vector.extract_strided_slice %68 {offsets = [0, 3], sizes = [16, 6], strides = [1, 1]} : vector<16x16xf32> to vector<16x6xf32>
    %cst_85 = arith.constant 0.109340049 : f32
    %340 = vector.broadcast %cst_85 : f32 to vector<16x6xf32>
    %341 = arith.mulf %340, %339 : vector<16x6xf32>
    %342 = arith.addf %338, %341 : vector<16x6xf32>
    %343 = vector.extract_strided_slice %68 {offsets = [0, 4], sizes = [16, 6], strides = [1, 1]} : vector<16x16xf32> to vector<16x6xf32>
    %cst_86 = arith.constant 0.212965339 : f32
    %344 = vector.broadcast %cst_86 : f32 to vector<16x6xf32>
    %345 = arith.mulf %344, %343 : vector<16x6xf32>
    %346 = arith.addf %342, %345 : vector<16x6xf32>
    %347 = vector.extract_strided_slice %68 {offsets = [0, 5], sizes = [16, 6], strides = [1, 1]} : vector<16x16xf32> to vector<16x6xf32>
    %cst_87 = arith.constant 0.265961528 : f32
    %348 = vector.broadcast %cst_87 : f32 to vector<16x6xf32>
    %349 = arith.mulf %348, %347 : vector<16x6xf32>
    %350 = arith.addf %346, %349 : vector<16x6xf32>
    %351 = vector.extract_strided_slice %68 {offsets = [0, 6], sizes = [16, 6], strides = [1, 1]} : vector<16x16xf32> to vector<16x6xf32>
    %cst_88 = arith.constant 0.212965339 : f32
    %352 = vector.broadcast %cst_88 : f32 to vector<16x6xf32>
    %353 = arith.mulf %352, %351 : vector<16x6xf32>
    %354 = arith.addf %350, %353 : vector<16x6xf32>
    %355 = vector.extract_strided_slice %68 {offsets = [0, 7], sizes = [16, 6], strides = [1, 1]} : vector<16x16xf32> to vector<16x6xf32>
    %cst_89 = arith.constant 0.109340049 : f32
    %356 = vector.broadcast %cst_89 : f32 to vector<16x6xf32>
    %357 = arith.mulf %356, %355 : vector<16x6xf32>
    %358 = arith.addf %354, %357 : vector<16x6xf32>
    %359 = vector.extract_strided_slice %68 {offsets = [0, 8], sizes = [16, 6], strides = [1, 1]} : vector<16x16xf32> to vector<16x6xf32>
    %cst_90 = arith.constant 0.0359939784 : f32
    %360 = vector.broadcast %cst_90 : f32 to vector<16x6xf32>
    %361 = arith.mulf %360, %359 : vector<16x6xf32>
    %362 = arith.addf %358, %361 : vector<16x6xf32>
    %363 = vector.extract_strided_slice %68 {offsets = [0, 9], sizes = [16, 6], strides = [1, 1]} : vector<16x16xf32> to vector<16x6xf32>
    %cst_91 = arith.constant 0.00759732397 : f32
    %364 = vector.broadcast %cst_91 : f32 to vector<16x6xf32>
    %365 = arith.mulf %364, %363 : vector<16x6xf32>
    %366 = arith.addf %362, %365 : vector<16x6xf32>
    %367 = vector.extract_strided_slice %68 {offsets = [0, 10], sizes = [16, 6], strides = [1, 1]} : vector<16x16xf32> to vector<16x6xf32>
    %cst_92 = arith.constant 0.00102818594 : f32
    %368 = vector.broadcast %cst_92 : f32 to vector<16x6xf32>
    %369 = arith.mulf %368, %367 : vector<16x6xf32>
    %370 = arith.addf %366, %369 : vector<16x6xf32>
    %371 = vector.extract_strided_slice %370 {offsets = [0, 0], sizes = [6, 6], strides = [1, 1]} : vector<16x6xf32> to vector<6x6xf32>
    %cst_93 = arith.constant 0.00102818594 : f32
    %372 = vector.broadcast %cst_93 : f32 to vector<6x6xf32>
    %373 = arith.mulf %372, %371 : vector<6x6xf32>
    %374 = vector.extract_strided_slice %370 {offsets = [1, 0], sizes = [6, 6], strides = [1, 1]} : vector<16x6xf32> to vector<6x6xf32>
    %cst_94 = arith.constant 0.00759732397 : f32
    %375 = vector.broadcast %cst_94 : f32 to vector<6x6xf32>
    %376 = arith.mulf %375, %374 : vector<6x6xf32>
    %377 = arith.addf %373, %376 : vector<6x6xf32>
    %378 = vector.extract_strided_slice %370 {offsets = [2, 0], sizes = [6, 6], strides = [1, 1]} : vector<16x6xf32> to vector<6x6xf32>
    %cst_95 = arith.constant 0.0359939784 : f32
    %379 = vector.broadcast %cst_95 : f32 to vector<6x6xf32>
    %380 = arith.mulf %379, %378 : vector<6x6xf32>
    %381 = arith.addf %377, %380 : vector<6x6xf32>
    %382 = vector.extract_strided_slice %370 {offsets = [3, 0], sizes = [6, 6], strides = [1, 1]} : vector<16x6xf32> to vector<6x6xf32>
    %cst_96 = arith.constant 0.109340049 : f32
    %383 = vector.broadcast %cst_96 : f32 to vector<6x6xf32>
    %384 = arith.mulf %383, %382 : vector<6x6xf32>
    %385 = arith.addf %381, %384 : vector<6x6xf32>
    %386 = vector.extract_strided_slice %370 {offsets = [4, 0], sizes = [6, 6], strides = [1, 1]} : vector<16x6xf32> to vector<6x6xf32>
    %cst_97 = arith.constant 0.212965339 : f32
    %387 = vector.broadcast %cst_97 : f32 to vector<6x6xf32>
    %388 = arith.mulf %387, %386 : vector<6x6xf32>
    %389 = arith.addf %385, %388 : vector<6x6xf32>
    %390 = vector.extract_strided_slice %370 {offsets = [5, 0], sizes = [6, 6], strides = [1, 1]} : vector<16x6xf32> to vector<6x6xf32>
    %cst_98 = arith.constant 0.265961528 : f32
    %391 = vector.broadcast %cst_98 : f32 to vector<6x6xf32>
    %392 = arith.mulf %391, %390 : vector<6x6xf32>
    %393 = arith.addf %389, %392 : vector<6x6xf32>
    %394 = vector.extract_strided_slice %370 {offsets = [6, 0], sizes = [6, 6], strides = [1, 1]} : vector<16x6xf32> to vector<6x6xf32>
    %cst_99 = arith.constant 0.212965339 : f32
    %395 = vector.broadcast %cst_99 : f32 to vector<6x6xf32>
    %396 = arith.mulf %395, %394 : vector<6x6xf32>
    %397 = arith.addf %393, %396 : vector<6x6xf32>
    %398 = vector.extract_strided_slice %370 {offsets = [7, 0], sizes = [6, 6], strides = [1, 1]} : vector<16x6xf32> to vector<6x6xf32>
    %cst_100 = arith.constant 0.109340049 : f32
    %399 = vector.broadcast %cst_100 : f32 to vector<6x6xf32>
    %400 = arith.mulf %399, %398 : vector<6x6xf32>
    %401 = arith.addf %397, %400 : vector<6x6xf32>
    %402 = vector.extract_strided_slice %370 {offsets = [8, 0], sizes = [6, 6], strides = [1, 1]} : vector<16x6xf32> to vector<6x6xf32>
    %cst_101 = arith.constant 0.0359939784 : f32
    %403 = vector.broadcast %cst_101 : f32 to vector<6x6xf32>
    %404 = arith.mulf %403, %402 : vector<6x6xf32>
    %405 = arith.addf %401, %404 : vector<6x6xf32>
    %406 = vector.extract_strided_slice %370 {offsets = [9, 0], sizes = [6, 6], strides = [1, 1]} : vector<16x6xf32> to vector<6x6xf32>
    %cst_102 = arith.constant 0.00759732397 : f32
    %407 = vector.broadcast %cst_102 : f32 to vector<6x6xf32>
    %408 = arith.mulf %407, %406 : vector<6x6xf32>
    %409 = arith.addf %405, %408 : vector<6x6xf32>
    %410 = vector.extract_strided_slice %370 {offsets = [10, 0], sizes = [6, 6], strides = [1, 1]} : vector<16x6xf32> to vector<6x6xf32>
    %cst_103 = arith.constant 0.00102818594 : f32
    %411 = vector.broadcast %cst_103 : f32 to vector<6x6xf32>
    %412 = arith.mulf %411, %410 : vector<6x6xf32>
    %413 = arith.addf %409, %412 : vector<6x6xf32>
    %414 = vector.extract_strided_slice %69 {offsets = [0, 0], sizes = [16, 6], strides = [1, 1]} : vector<16x16xf32> to vector<16x6xf32>
    %cst_104 = arith.constant 0.00102818594 : f32
    %415 = vector.broadcast %cst_104 : f32 to vector<16x6xf32>
    %416 = arith.mulf %415, %414 : vector<16x6xf32>
    %417 = vector.extract_strided_slice %69 {offsets = [0, 1], sizes = [16, 6], strides = [1, 1]} : vector<16x16xf32> to vector<16x6xf32>
    %cst_105 = arith.constant 0.00759732397 : f32
    %418 = vector.broadcast %cst_105 : f32 to vector<16x6xf32>
    %419 = arith.mulf %418, %417 : vector<16x6xf32>
    %420 = arith.addf %416, %419 : vector<16x6xf32>
    %421 = vector.extract_strided_slice %69 {offsets = [0, 2], sizes = [16, 6], strides = [1, 1]} : vector<16x16xf32> to vector<16x6xf32>
    %cst_106 = arith.constant 0.0359939784 : f32
    %422 = vector.broadcast %cst_106 : f32 to vector<16x6xf32>
    %423 = arith.mulf %422, %421 : vector<16x6xf32>
    %424 = arith.addf %420, %423 : vector<16x6xf32>
    %425 = vector.extract_strided_slice %69 {offsets = [0, 3], sizes = [16, 6], strides = [1, 1]} : vector<16x16xf32> to vector<16x6xf32>
    %cst_107 = arith.constant 0.109340049 : f32
    %426 = vector.broadcast %cst_107 : f32 to vector<16x6xf32>
    %427 = arith.mulf %426, %425 : vector<16x6xf32>
    %428 = arith.addf %424, %427 : vector<16x6xf32>
    %429 = vector.extract_strided_slice %69 {offsets = [0, 4], sizes = [16, 6], strides = [1, 1]} : vector<16x16xf32> to vector<16x6xf32>
    %cst_108 = arith.constant 0.212965339 : f32
    %430 = vector.broadcast %cst_108 : f32 to vector<16x6xf32>
    %431 = arith.mulf %430, %429 : vector<16x6xf32>
    %432 = arith.addf %428, %431 : vector<16x6xf32>
    %433 = vector.extract_strided_slice %69 {offsets = [0, 5], sizes = [16, 6], strides = [1, 1]} : vector<16x16xf32> to vector<16x6xf32>
    %cst_109 = arith.constant 0.265961528 : f32
    %434 = vector.broadcast %cst_109 : f32 to vector<16x6xf32>
    %435 = arith.mulf %434, %433 : vector<16x6xf32>
    %436 = arith.addf %432, %435 : vector<16x6xf32>
    %437 = vector.extract_strided_slice %69 {offsets = [0, 6], sizes = [16, 6], strides = [1, 1]} : vector<16x16xf32> to vector<16x6xf32>
    %cst_110 = arith.constant 0.212965339 : f32
    %438 = vector.broadcast %cst_110 : f32 to vector<16x6xf32>
    %439 = arith.mulf %438, %437 : vector<16x6xf32>
    %440 = arith.addf %436, %439 : vector<16x6xf32>
    %441 = vector.extract_strided_slice %69 {offsets = [0, 7], sizes = [16, 6], strides = [1, 1]} : vector<16x16xf32> to vector<16x6xf32>
    %cst_111 = arith.constant 0.109340049 : f32
    %442 = vector.broadcast %cst_111 : f32 to vector<16x6xf32>
    %443 = arith.mulf %442, %441 : vector<16x6xf32>
    %444 = arith.addf %440, %443 : vector<16x6xf32>
    %445 = vector.extract_strided_slice %69 {offsets = [0, 8], sizes = [16, 6], strides = [1, 1]} : vector<16x16xf32> to vector<16x6xf32>
    %cst_112 = arith.constant 0.0359939784 : f32
    %446 = vector.broadcast %cst_112 : f32 to vector<16x6xf32>
    %447 = arith.mulf %446, %445 : vector<16x6xf32>
    %448 = arith.addf %444, %447 : vector<16x6xf32>
    %449 = vector.extract_strided_slice %69 {offsets = [0, 9], sizes = [16, 6], strides = [1, 1]} : vector<16x16xf32> to vector<16x6xf32>
    %cst_113 = arith.constant 0.00759732397 : f32
    %450 = vector.broadcast %cst_113 : f32 to vector<16x6xf32>
    %451 = arith.mulf %450, %449 : vector<16x6xf32>
    %452 = arith.addf %448, %451 : vector<16x6xf32>
    %453 = vector.extract_strided_slice %69 {offsets = [0, 10], sizes = [16, 6], strides = [1, 1]} : vector<16x16xf32> to vector<16x6xf32>
    %cst_114 = arith.constant 0.00102818594 : f32
    %454 = vector.broadcast %cst_114 : f32 to vector<16x6xf32>
    %455 = arith.mulf %454, %453 : vector<16x6xf32>
    %456 = arith.addf %452, %455 : vector<16x6xf32>
    %457 = vector.extract_strided_slice %456 {offsets = [0, 0], sizes = [6, 6], strides = [1, 1]} : vector<16x6xf32> to vector<6x6xf32>
    %cst_115 = arith.constant 0.00102818594 : f32
    %458 = vector.broadcast %cst_115 : f32 to vector<6x6xf32>
    %459 = arith.mulf %458, %457 : vector<6x6xf32>
    %460 = vector.extract_strided_slice %456 {offsets = [1, 0], sizes = [6, 6], strides = [1, 1]} : vector<16x6xf32> to vector<6x6xf32>
    %cst_116 = arith.constant 0.00759732397 : f32
    %461 = vector.broadcast %cst_116 : f32 to vector<6x6xf32>
    %462 = arith.mulf %461, %460 : vector<6x6xf32>
    %463 = arith.addf %459, %462 : vector<6x6xf32>
    %464 = vector.extract_strided_slice %456 {offsets = [2, 0], sizes = [6, 6], strides = [1, 1]} : vector<16x6xf32> to vector<6x6xf32>
    %cst_117 = arith.constant 0.0359939784 : f32
    %465 = vector.broadcast %cst_117 : f32 to vector<6x6xf32>
    %466 = arith.mulf %465, %464 : vector<6x6xf32>
    %467 = arith.addf %463, %466 : vector<6x6xf32>
    %468 = vector.extract_strided_slice %456 {offsets = [3, 0], sizes = [6, 6], strides = [1, 1]} : vector<16x6xf32> to vector<6x6xf32>
    %cst_118 = arith.constant 0.109340049 : f32
    %469 = vector.broadcast %cst_118 : f32 to vector<6x6xf32>
    %470 = arith.mulf %469, %468 : vector<6x6xf32>
    %471 = arith.addf %467, %470 : vector<6x6xf32>
    %472 = vector.extract_strided_slice %456 {offsets = [4, 0], sizes = [6, 6], strides = [1, 1]} : vector<16x6xf32> to vector<6x6xf32>
    %cst_119 = arith.constant 0.212965339 : f32
    %473 = vector.broadcast %cst_119 : f32 to vector<6x6xf32>
    %474 = arith.mulf %473, %472 : vector<6x6xf32>
    %475 = arith.addf %471, %474 : vector<6x6xf32>
    %476 = vector.extract_strided_slice %456 {offsets = [5, 0], sizes = [6, 6], strides = [1, 1]} : vector<16x6xf32> to vector<6x6xf32>
    %cst_120 = arith.constant 0.265961528 : f32
    %477 = vector.broadcast %cst_120 : f32 to vector<6x6xf32>
    %478 = arith.mulf %477, %476 : vector<6x6xf32>
    %479 = arith.addf %475, %478 : vector<6x6xf32>
    %480 = vector.extract_strided_slice %456 {offsets = [6, 0], sizes = [6, 6], strides = [1, 1]} : vector<16x6xf32> to vector<6x6xf32>
    %cst_121 = arith.constant 0.212965339 : f32
    %481 = vector.broadcast %cst_121 : f32 to vector<6x6xf32>
    %482 = arith.mulf %481, %480 : vector<6x6xf32>
    %483 = arith.addf %479, %482 : vector<6x6xf32>
    %484 = vector.extract_strided_slice %456 {offsets = [7, 0], sizes = [6, 6], strides = [1, 1]} : vector<16x6xf32> to vector<6x6xf32>
    %cst_122 = arith.constant 0.109340049 : f32
    %485 = vector.broadcast %cst_122 : f32 to vector<6x6xf32>
    %486 = arith.mulf %485, %484 : vector<6x6xf32>
    %487 = arith.addf %483, %486 : vector<6x6xf32>
    %488 = vector.extract_strided_slice %456 {offsets = [8, 0], sizes = [6, 6], strides = [1, 1]} : vector<16x6xf32> to vector<6x6xf32>
    %cst_123 = arith.constant 0.0359939784 : f32
    %489 = vector.broadcast %cst_123 : f32 to vector<6x6xf32>
    %490 = arith.mulf %489, %488 : vector<6x6xf32>
    %491 = arith.addf %487, %490 : vector<6x6xf32>
    %492 = vector.extract_strided_slice %456 {offsets = [9, 0], sizes = [6, 6], strides = [1, 1]} : vector<16x6xf32> to vector<6x6xf32>
    %cst_124 = arith.constant 0.00759732397 : f32
    %493 = vector.broadcast %cst_124 : f32 to vector<6x6xf32>
    %494 = arith.mulf %493, %492 : vector<6x6xf32>
    %495 = arith.addf %491, %494 : vector<6x6xf32>
    %496 = vector.extract_strided_slice %456 {offsets = [10, 0], sizes = [6, 6], strides = [1, 1]} : vector<16x6xf32> to vector<6x6xf32>
    %cst_125 = arith.constant 0.00102818594 : f32
    %497 = vector.broadcast %cst_125 : f32 to vector<6x6xf32>
    %498 = arith.mulf %497, %496 : vector<6x6xf32>
    %499 = arith.addf %495, %498 : vector<6x6xf32>
    %500 = arith.mulf %155, %155 : vector<6x6xf32>
    %501 = arith.subf %327, %500 : vector<6x6xf32>
    %502 = arith.mulf %241, %241 : vector<6x6xf32>
    %503 = arith.subf %413, %502 : vector<6x6xf32>
    %504 = arith.mulf %155, %241 : vector<6x6xf32>
    %505 = arith.subf %499, %504 : vector<6x6xf32>
    %cst_126 = arith.constant 2.000000e+00 : f32
    %506 = vector.broadcast %cst_126 : f32 to vector<6x6xf32>
    %507 = arith.mulf %506, %155 : vector<6x6xf32>
    %508 = arith.mulf %507, %241 : vector<6x6xf32>
    %cst_127 = arith.constant 9.801000e+01 : f32
    %509 = vector.broadcast %cst_127 : f32 to vector<6x6xf32>
    %510 = arith.addf %508, %509 : vector<6x6xf32>
    %cst_128 = arith.constant 2.000000e+00 : f32
    %511 = vector.broadcast %cst_128 : f32 to vector<6x6xf32>
    %512 = arith.mulf %511, %505 : vector<6x6xf32>
    %cst_129 = arith.constant 8.820900e+02 : f32
    %513 = vector.broadcast %cst_129 : f32 to vector<6x6xf32>
    %514 = arith.addf %512, %513 : vector<6x6xf32>
    %515 = arith.mulf %510, %514 : vector<6x6xf32>
    %516 = arith.mulf %155, %155 : vector<6x6xf32>
    %517 = arith.mulf %241, %241 : vector<6x6xf32>
    %518 = arith.addf %516, %517 : vector<6x6xf32>
    %cst_130 = arith.constant 9.801000e+01 : f32
    %519 = vector.broadcast %cst_130 : f32 to vector<6x6xf32>
    %520 = arith.addf %518, %519 : vector<6x6xf32>
    %521 = arith.addf %501, %503 : vector<6x6xf32>
    %cst_131 = arith.constant 8.820900e+02 : f32
    %522 = vector.broadcast %cst_131 : f32 to vector<6x6xf32>
    %523 = arith.addf %521, %522 : vector<6x6xf32>
    %524 = arith.mulf %520, %523 : vector<6x6xf32>
    %525 = tpu.reciprocal %524 {approx = true} : vector<6x6xf32> -> vector<6x6xf32>
    %526 = arith.mulf %524, %525 : vector<6x6xf32>
    %cst_132 = arith.constant 2.000000e+00 : f32
    %527 = vector.broadcast %cst_132 : f32 to vector<6x6xf32>
    %528 = arith.subf %527, %526 : vector<6x6xf32>
    %529 = arith.mulf %525, %528 : vector<6x6xf32>
    %530 = arith.mulf %515, %529 : vector<6x6xf32>
    %531 = vector.shape_cast %530 : vector<6x6xf32> to vector<1x6x6xf32>
    %cst_133 = arith.constant dense<0.000000e+00> : vector<1xf32>
    %532 = vector.multi_reduction <add>, %531, %cst_133 [1, 2] : vector<1x6x6xf32> to vector<1xf32>
    %533 = vector.shape_cast %532 : vector<1xf32> to vector<1x1x1xf32>
    %534 = vector.extract %533[0, 0, 0] : f32 from vector<1x1x1xf32>
    %535 = vector.broadcast %534 : f32 to vector<1x1xf32>
    %536 = arith.addf %2, %535 : vector<1x1xf32>
    %c1 = arith.constant 1 : index
    %c0_134 = arith.constant 0 : index
    %c0_135 = arith.constant 0 : index
    %c0_136 = arith.constant 0 : index
    %537 = vector.load %arg1[%c1, %c0_134, %c0_135, %c0_136] : memref<2x1x16x16xf32, #tpu.memory_space<vmem>>, vector<1x1x16x16xf32>
    %538 = vector.shape_cast %537 : vector<1x1x16x16xf32> to vector<16x16xf32>
    %c1_137 = arith.constant 1 : index
    %c0_138 = arith.constant 0 : index
    %c0_139 = arith.constant 0 : index
    %c0_140 = arith.constant 0 : index
    %539 = vector.load %arg2[%c1_137, %c0_138, %c0_139, %c0_140] : memref<2x1x16x16xf32, #tpu.memory_space<vmem>>, vector<1x1x16x16xf32>
    %540 = vector.shape_cast %539 : vector<1x1x16x16xf32> to vector<16x16xf32>
    %541 = arith.subf %538, %540 : vector<16x16xf32>
    %542 = math.absf %541 : vector<16x16xf32>
    %543 = vector.shape_cast %542 : vector<16x16xf32> to vector<1x16x16xf32>
    %cst_141 = arith.constant dense<0.000000e+00> : vector<1xf32>
    %544 = vector.multi_reduction <add>, %543, %cst_141 [1, 2] : vector<1x16x16xf32> to vector<1xf32>
    %545 = vector.shape_cast %544 : vector<1xf32> to vector<1x1x1xf32>
    %546 = vector.extract %545[0, 0, 0] : f32 from vector<1x1x1xf32>
    %547 = vector.broadcast %546 : f32 to vector<1x1xf32>
    %548 = arith.addf %14, %547 : vector<1x1xf32>
    %549 = vector.extract_strided_slice %541 {offsets = [0, 2], sizes = [16, 14], strides = [1, 1]} : vector<16x16xf32> to vector<16x14xf32>
    %550 = vector.extract_strided_slice %541 {offsets = [0, 0], sizes = [16, 14], strides = [1, 1]} : vector<16x16xf32> to vector<16x14xf32>
    %551 = arith.subf %549, %550 : vector<16x14xf32>
    %552 = math.absf %551 : vector<16x14xf32>
    %553 = vector.shape_cast %552 : vector<16x14xf32> to vector<1x16x14xf32>
    %cst_142 = arith.constant dense<0.000000e+00> : vector<1xf32>
    %554 = vector.multi_reduction <add>, %553, %cst_142 [1, 2] : vector<1x16x14xf32> to vector<1xf32>
    %555 = vector.shape_cast %554 : vector<1xf32> to vector<1x1x1xf32>
    %556 = vector.extract %555[0, 0, 0] : f32 from vector<1x1x1xf32>
    %557 = vector.broadcast %556 : f32 to vector<1x1xf32>
    %558 = vector.extract_strided_slice %541 {offsets = [2, 0], sizes = [14, 16], strides = [1, 1]} : vector<16x16xf32> to vector<14x16xf32>
    %559 = vector.extract_strided_slice %541 {offsets = [0, 0], sizes = [14, 16], strides = [1, 1]} : vector<16x16xf32> to vector<14x16xf32>
    %560 = arith.subf %558, %559 : vector<14x16xf32>
    %561 = math.absf %560 : vector<14x16xf32>
    %562 = vector.shape_cast %561 : vector<14x16xf32> to vector<1x14x16xf32>
    %cst_143 = arith.constant dense<0.000000e+00> : vector<1xf32>
    %563 = vector.multi_reduction <add>, %562, %cst_143 [1, 2] : vector<1x14x16xf32> to vector<1xf32>
    %564 = vector.shape_cast %563 : vector<1xf32> to vector<1x1x1xf32>
    %565 = vector.extract %564[0, 0, 0] : f32 from vector<1x1x1xf32>
    %566 = vector.broadcast %565 : f32 to vector<1x1xf32>
    %567 = arith.addf %557, %566 : vector<1x1xf32>
    %568 = vector.extract_strided_slice %541 {offsets = [0, 1], sizes = [16, 1], strides = [1, 1]} : vector<16x16xf32> to vector<16x1xf32>
    %569 = math.absf %568 : vector<16x1xf32>
    %570 = vector.shape_cast %569 : vector<16x1xf32> to vector<1x16x1xf32>
    %cst_144 = arith.constant dense<0.000000e+00> : vector<1xf32>
    %571 = vector.multi_reduction <add>, %570, %cst_144 [1, 2] : vector<1x16x1xf32> to vector<1xf32>
    %572 = vector.shape_cast %571 : vector<1xf32> to vector<1x1x1xf32>
    %573 = vector.extract %572[0, 0, 0] : f32 from vector<1x1x1xf32>
    %574 = vector.broadcast %573 : f32 to vector<1x1xf32>
    %575 = arith.addf %567, %574 : vector<1x1xf32>
    %576 = vector.extract_strided_slice %541 {offsets = [0, 14], sizes = [16, 1], strides = [1, 1]} : vector<16x16xf32> to vector<16x1xf32>
    %577 = math.absf %576 : vector<16x1xf32>
    %578 = vector.shape_cast %577 : vector<16x1xf32> to vector<1x16x1xf32>
    %cst_145 = arith.constant dense<0.000000e+00> : vector<1xf32>
    %579 = vector.multi_reduction <add>, %578, %cst_145 [1, 2] : vector<1x16x1xf32> to vector<1xf32>
    %580 = vector.shape_cast %579 : vector<1xf32> to vector<1x1x1xf32>
    %581 = vector.extract %580[0, 0, 0] : f32 from vector<1x1x1xf32>
    %582 = vector.broadcast %581 : f32 to vector<1x1xf32>
    %583 = arith.addf %575, %582 : vector<1x1xf32>
    %584 = vector.extract_strided_slice %541 {offsets = [1, 0], sizes = [1, 16], strides = [1, 1]} : vector<16x16xf32> to vector<1x16xf32>
    %585 = math.absf %584 : vector<1x16xf32>
    %586 = vector.shape_cast %585 : vector<1x16xf32> to vector<1x1x16xf32>
    %cst_146 = arith.constant dense<0.000000e+00> : vector<1xf32>
    %587 = vector.multi_reduction <add>, %586, %cst_146 [1, 2] : vector<1x1x16xf32> to vector<1xf32>
    %588 = vector.shape_cast %587 : vector<1xf32> to vector<1x1x1xf32>
    %589 = vector.extract %588[0, 0, 0] : f32 from vector<1x1x1xf32>
    %590 = vector.broadcast %589 : f32 to vector<1x1xf32>
    %591 = arith.addf %583, %590 : vector<1x1xf32>
    %592 = vector.extract_strided_slice %541 {offsets = [14, 0], sizes = [1, 16], strides = [1, 1]} : vector<16x16xf32> to vector<1x16xf32>
    %593 = math.absf %592 : vector<1x16xf32>
    %594 = vector.shape_cast %593 : vector<1x16xf32> to vector<1x1x16xf32>
    %cst_147 = arith.constant dense<0.000000e+00> : vector<1xf32>
    %595 = vector.multi_reduction <add>, %594, %cst_147 [1, 2] : vector<1x1x16xf32> to vector<1xf32>
    %596 = vector.shape_cast %595 : vector<1xf32> to vector<1x1x1xf32>
    %597 = vector.extract %596[0, 0, 0] : f32 from vector<1x1x1xf32>
    %598 = vector.broadcast %597 : f32 to vector<1x1xf32>
    %599 = arith.addf %591, %598 : vector<1x1xf32>
    %600 = arith.addf %66, %599 : vector<1x1xf32>
    %601 = arith.mulf %538, %538 : vector<16x16xf32>
    %602 = arith.mulf %540, %540 : vector<16x16xf32>
    %603 = arith.mulf %538, %540 : vector<16x16xf32>
    %604 = vector.extract_strided_slice %538 {offsets = [0, 0], sizes = [16, 6], strides = [1, 1]} : vector<16x16xf32> to vector<16x6xf32>
    %cst_148 = arith.constant 0.00102818594 : f32
    %605 = vector.broadcast %cst_148 : f32 to vector<16x6xf32>
    %606 = arith.mulf %605, %604 : vector<16x6xf32>
    %607 = vector.extract_strided_slice %538 {offsets = [0, 1], sizes = [16, 6], strides = [1, 1]} : vector<16x16xf32> to vector<16x6xf32>
    %cst_149 = arith.constant 0.00759732397 : f32
    %608 = vector.broadcast %cst_149 : f32 to vector<16x6xf32>
    %609 = arith.mulf %608, %607 : vector<16x6xf32>
    %610 = arith.addf %606, %609 : vector<16x6xf32>
    %611 = vector.extract_strided_slice %538 {offsets = [0, 2], sizes = [16, 6], strides = [1, 1]} : vector<16x16xf32> to vector<16x6xf32>
    %cst_150 = arith.constant 0.0359939784 : f32
    %612 = vector.broadcast %cst_150 : f32 to vector<16x6xf32>
    %613 = arith.mulf %612, %611 : vector<16x6xf32>
    %614 = arith.addf %610, %613 : vector<16x6xf32>
    %615 = vector.extract_strided_slice %538 {offsets = [0, 3], sizes = [16, 6], strides = [1, 1]} : vector<16x16xf32> to vector<16x6xf32>
    %cst_151 = arith.constant 0.109340049 : f32
    %616 = vector.broadcast %cst_151 : f32 to vector<16x6xf32>
    %617 = arith.mulf %616, %615 : vector<16x6xf32>
    %618 = arith.addf %614, %617 : vector<16x6xf32>
    %619 = vector.extract_strided_slice %538 {offsets = [0, 4], sizes = [16, 6], strides = [1, 1]} : vector<16x16xf32> to vector<16x6xf32>
    %cst_152 = arith.constant 0.212965339 : f32
    %620 = vector.broadcast %cst_152 : f32 to vector<16x6xf32>
    %621 = arith.mulf %620, %619 : vector<16x6xf32>
    %622 = arith.addf %618, %621 : vector<16x6xf32>
    %623 = vector.extract_strided_slice %538 {offsets = [0, 5], sizes = [16, 6], strides = [1, 1]} : vector<16x16xf32> to vector<16x6xf32>
    %cst_153 = arith.constant 0.265961528 : f32
    %624 = vector.broadcast %cst_153 : f32 to vector<16x6xf32>
    %625 = arith.mulf %624, %623 : vector<16x6xf32>
    %626 = arith.addf %622, %625 : vector<16x6xf32>
    %627 = vector.extract_strided_slice %538 {offsets = [0, 6], sizes = [16, 6], strides = [1, 1]} : vector<16x16xf32> to vector<16x6xf32>
    %cst_154 = arith.constant 0.212965339 : f32
    %628 = vector.broadcast %cst_154 : f32 to vector<16x6xf32>
    %629 = arith.mulf %628, %627 : vector<16x6xf32>
    %630 = arith.addf %626, %629 : vector<16x6xf32>
    %631 = vector.extract_strided_slice %538 {offsets = [0, 7], sizes = [16, 6], strides = [1, 1]} : vector<16x16xf32> to vector<16x6xf32>
    %cst_155 = arith.constant 0.109340049 : f32
    %632 = vector.broadcast %cst_155 : f32 to vector<16x6xf32>
    %633 = arith.mulf %632, %631 : vector<16x6xf32>
    %634 = arith.addf %630, %633 : vector<16x6xf32>
    %635 = vector.extract_strided_slice %538 {offsets = [0, 8], sizes = [16, 6], strides = [1, 1]} : vector<16x16xf32> to vector<16x6xf32>
    %cst_156 = arith.constant 0.0359939784 : f32
    %636 = vector.broadcast %cst_156 : f32 to vector<16x6xf32>
    %637 = arith.mulf %636, %635 : vector<16x6xf32>
    %638 = arith.addf %634, %637 : vector<16x6xf32>
    %639 = vector.extract_strided_slice %538 {offsets = [0, 9], sizes = [16, 6], strides = [1, 1]} : vector<16x16xf32> to vector<16x6xf32>
    %cst_157 = arith.constant 0.00759732397 : f32
    %640 = vector.broadcast %cst_157 : f32 to vector<16x6xf32>
    %641 = arith.mulf %640, %639 : vector<16x6xf32>
    %642 = arith.addf %638, %641 : vector<16x6xf32>
    %643 = vector.extract_strided_slice %538 {offsets = [0, 10], sizes = [16, 6], strides = [1, 1]} : vector<16x16xf32> to vector<16x6xf32>
    %cst_158 = arith.constant 0.00102818594 : f32
    %644 = vector.broadcast %cst_158 : f32 to vector<16x6xf32>
    %645 = arith.mulf %644, %643 : vector<16x6xf32>
    %646 = arith.addf %642, %645 : vector<16x6xf32>
    %647 = vector.extract_strided_slice %646 {offsets = [0, 0], sizes = [6, 6], strides = [1, 1]} : vector<16x6xf32> to vector<6x6xf32>
    %cst_159 = arith.constant 0.00102818594 : f32
    %648 = vector.broadcast %cst_159 : f32 to vector<6x6xf32>
    %649 = arith.mulf %648, %647 : vector<6x6xf32>
    %650 = vector.extract_strided_slice %646 {offsets = [1, 0], sizes = [6, 6], strides = [1, 1]} : vector<16x6xf32> to vector<6x6xf32>
    %cst_160 = arith.constant 0.00759732397 : f32
    %651 = vector.broadcast %cst_160 : f32 to vector<6x6xf32>
    %652 = arith.mulf %651, %650 : vector<6x6xf32>
    %653 = arith.addf %649, %652 : vector<6x6xf32>
    %654 = vector.extract_strided_slice %646 {offsets = [2, 0], sizes = [6, 6], strides = [1, 1]} : vector<16x6xf32> to vector<6x6xf32>
    %cst_161 = arith.constant 0.0359939784 : f32
    %655 = vector.broadcast %cst_161 : f32 to vector<6x6xf32>
    %656 = arith.mulf %655, %654 : vector<6x6xf32>
    %657 = arith.addf %653, %656 : vector<6x6xf32>
    %658 = vector.extract_strided_slice %646 {offsets = [3, 0], sizes = [6, 6], strides = [1, 1]} : vector<16x6xf32> to vector<6x6xf32>
    %cst_162 = arith.constant 0.109340049 : f32
    %659 = vector.broadcast %cst_162 : f32 to vector<6x6xf32>
    %660 = arith.mulf %659, %658 : vector<6x6xf32>
    %661 = arith.addf %657, %660 : vector<6x6xf32>
    %662 = vector.extract_strided_slice %646 {offsets = [4, 0], sizes = [6, 6], strides = [1, 1]} : vector<16x6xf32> to vector<6x6xf32>
    %cst_163 = arith.constant 0.212965339 : f32
    %663 = vector.broadcast %cst_163 : f32 to vector<6x6xf32>
    %664 = arith.mulf %663, %662 : vector<6x6xf32>
    %665 = arith.addf %661, %664 : vector<6x6xf32>
    %666 = vector.extract_strided_slice %646 {offsets = [5, 0], sizes = [6, 6], strides = [1, 1]} : vector<16x6xf32> to vector<6x6xf32>
    %cst_164 = arith.constant 0.265961528 : f32
    %667 = vector.broadcast %cst_164 : f32 to vector<6x6xf32>
    %668 = arith.mulf %667, %666 : vector<6x6xf32>
    %669 = arith.addf %665, %668 : vector<6x6xf32>
    %670 = vector.extract_strided_slice %646 {offsets = [6, 0], sizes = [6, 6], strides = [1, 1]} : vector<16x6xf32> to vector<6x6xf32>
    %cst_165 = arith.constant 0.212965339 : f32
    %671 = vector.broadcast %cst_165 : f32 to vector<6x6xf32>
    %672 = arith.mulf %671, %670 : vector<6x6xf32>
    %673 = arith.addf %669, %672 : vector<6x6xf32>
    %674 = vector.extract_strided_slice %646 {offsets = [7, 0], sizes = [6, 6], strides = [1, 1]} : vector<16x6xf32> to vector<6x6xf32>
    %cst_166 = arith.constant 0.109340049 : f32
    %675 = vector.broadcast %cst_166 : f32 to vector<6x6xf32>
    %676 = arith.mulf %675, %674 : vector<6x6xf32>
    %677 = arith.addf %673, %676 : vector<6x6xf32>
    %678 = vector.extract_strided_slice %646 {offsets = [8, 0], sizes = [6, 6], strides = [1, 1]} : vector<16x6xf32> to vector<6x6xf32>
    %cst_167 = arith.constant 0.0359939784 : f32
    %679 = vector.broadcast %cst_167 : f32 to vector<6x6xf32>
    %680 = arith.mulf %679, %678 : vector<6x6xf32>
    %681 = arith.addf %677, %680 : vector<6x6xf32>
    %682 = vector.extract_strided_slice %646 {offsets = [9, 0], sizes = [6, 6], strides = [1, 1]} : vector<16x6xf32> to vector<6x6xf32>
    %cst_168 = arith.constant 0.00759732397 : f32
    %683 = vector.broadcast %cst_168 : f32 to vector<6x6xf32>
    %684 = arith.mulf %683, %682 : vector<6x6xf32>
    %685 = arith.addf %681, %684 : vector<6x6xf32>
    %686 = vector.extract_strided_slice %646 {offsets = [10, 0], sizes = [6, 6], strides = [1, 1]} : vector<16x6xf32> to vector<6x6xf32>
    %cst_169 = arith.constant 0.00102818594 : f32
    %687 = vector.broadcast %cst_169 : f32 to vector<6x6xf32>
    %688 = arith.mulf %687, %686 : vector<6x6xf32>
    %689 = arith.addf %685, %688 : vector<6x6xf32>
    %690 = vector.extract_strided_slice %540 {offsets = [0, 0], sizes = [16, 6], strides = [1, 1]} : vector<16x16xf32> to vector<16x6xf32>
    %cst_170 = arith.constant 0.00102818594 : f32
    %691 = vector.broadcast %cst_170 : f32 to vector<16x6xf32>
    %692 = arith.mulf %691, %690 : vector<16x6xf32>
    %693 = vector.extract_strided_slice %540 {offsets = [0, 1], sizes = [16, 6], strides = [1, 1]} : vector<16x16xf32> to vector<16x6xf32>
    %cst_171 = arith.constant 0.00759732397 : f32
    %694 = vector.broadcast %cst_171 : f32 to vector<16x6xf32>
    %695 = arith.mulf %694, %693 : vector<16x6xf32>
    %696 = arith.addf %692, %695 : vector<16x6xf32>
    %697 = vector.extract_strided_slice %540 {offsets = [0, 2], sizes = [16, 6], strides = [1, 1]} : vector<16x16xf32> to vector<16x6xf32>
    %cst_172 = arith.constant 0.0359939784 : f32
    %698 = vector.broadcast %cst_172 : f32 to vector<16x6xf32>
    %699 = arith.mulf %698, %697 : vector<16x6xf32>
    %700 = arith.addf %696, %699 : vector<16x6xf32>
    %701 = vector.extract_strided_slice %540 {offsets = [0, 3], sizes = [16, 6], strides = [1, 1]} : vector<16x16xf32> to vector<16x6xf32>
    %cst_173 = arith.constant 0.109340049 : f32
    %702 = vector.broadcast %cst_173 : f32 to vector<16x6xf32>
    %703 = arith.mulf %702, %701 : vector<16x6xf32>
    %704 = arith.addf %700, %703 : vector<16x6xf32>
    %705 = vector.extract_strided_slice %540 {offsets = [0, 4], sizes = [16, 6], strides = [1, 1]} : vector<16x16xf32> to vector<16x6xf32>
    %cst_174 = arith.constant 0.212965339 : f32
    %706 = vector.broadcast %cst_174 : f32 to vector<16x6xf32>
    %707 = arith.mulf %706, %705 : vector<16x6xf32>
    %708 = arith.addf %704, %707 : vector<16x6xf32>
    %709 = vector.extract_strided_slice %540 {offsets = [0, 5], sizes = [16, 6], strides = [1, 1]} : vector<16x16xf32> to vector<16x6xf32>
    %cst_175 = arith.constant 0.265961528 : f32
    %710 = vector.broadcast %cst_175 : f32 to vector<16x6xf32>
    %711 = arith.mulf %710, %709 : vector<16x6xf32>
    %712 = arith.addf %708, %711 : vector<16x6xf32>
    %713 = vector.extract_strided_slice %540 {offsets = [0, 6], sizes = [16, 6], strides = [1, 1]} : vector<16x16xf32> to vector<16x6xf32>
    %cst_176 = arith.constant 0.212965339 : f32
    %714 = vector.broadcast %cst_176 : f32 to vector<16x6xf32>
    %715 = arith.mulf %714, %713 : vector<16x6xf32>
    %716 = arith.addf %712, %715 : vector<16x6xf32>
    %717 = vector.extract_strided_slice %540 {offsets = [0, 7], sizes = [16, 6], strides = [1, 1]} : vector<16x16xf32> to vector<16x6xf32>
    %cst_177 = arith.constant 0.109340049 : f32
    %718 = vector.broadcast %cst_177 : f32 to vector<16x6xf32>
    %719 = arith.mulf %718, %717 : vector<16x6xf32>
    %720 = arith.addf %716, %719 : vector<16x6xf32>
    %721 = vector.extract_strided_slice %540 {offsets = [0, 8], sizes = [16, 6], strides = [1, 1]} : vector<16x16xf32> to vector<16x6xf32>
    %cst_178 = arith.constant 0.0359939784 : f32
    %722 = vector.broadcast %cst_178 : f32 to vector<16x6xf32>
    %723 = arith.mulf %722, %721 : vector<16x6xf32>
    %724 = arith.addf %720, %723 : vector<16x6xf32>
    %725 = vector.extract_strided_slice %540 {offsets = [0, 9], sizes = [16, 6], strides = [1, 1]} : vector<16x16xf32> to vector<16x6xf32>
    %cst_179 = arith.constant 0.00759732397 : f32
    %726 = vector.broadcast %cst_179 : f32 to vector<16x6xf32>
    %727 = arith.mulf %726, %725 : vector<16x6xf32>
    %728 = arith.addf %724, %727 : vector<16x6xf32>
    %729 = vector.extract_strided_slice %540 {offsets = [0, 10], sizes = [16, 6], strides = [1, 1]} : vector<16x16xf32> to vector<16x6xf32>
    %cst_180 = arith.constant 0.00102818594 : f32
    %730 = vector.broadcast %cst_180 : f32 to vector<16x6xf32>
    %731 = arith.mulf %730, %729 : vector<16x6xf32>
    %732 = arith.addf %728, %731 : vector<16x6xf32>
    %733 = vector.extract_strided_slice %732 {offsets = [0, 0], sizes = [6, 6], strides = [1, 1]} : vector<16x6xf32> to vector<6x6xf32>
    %cst_181 = arith.constant 0.00102818594 : f32
    %734 = vector.broadcast %cst_181 : f32 to vector<6x6xf32>
    %735 = arith.mulf %734, %733 : vector<6x6xf32>
    %736 = vector.extract_strided_slice %732 {offsets = [1, 0], sizes = [6, 6], strides = [1, 1]} : vector<16x6xf32> to vector<6x6xf32>
    %cst_182 = arith.constant 0.00759732397 : f32
    %737 = vector.broadcast %cst_182 : f32 to vector<6x6xf32>
    %738 = arith.mulf %737, %736 : vector<6x6xf32>
    %739 = arith.addf %735, %738 : vector<6x6xf32>
    %740 = vector.extract_strided_slice %732 {offsets = [2, 0], sizes = [6, 6], strides = [1, 1]} : vector<16x6xf32> to vector<6x6xf32>
    %cst_183 = arith.constant 0.0359939784 : f32
    %741 = vector.broadcast %cst_183 : f32 to vector<6x6xf32>
    %742 = arith.mulf %741, %740 : vector<6x6xf32>
    %743 = arith.addf %739, %742 : vector<6x6xf32>
    %744 = vector.extract_strided_slice %732 {offsets = [3, 0], sizes = [6, 6], strides = [1, 1]} : vector<16x6xf32> to vector<6x6xf32>
    %cst_184 = arith.constant 0.109340049 : f32
    %745 = vector.broadcast %cst_184 : f32 to vector<6x6xf32>
    %746 = arith.mulf %745, %744 : vector<6x6xf32>
    %747 = arith.addf %743, %746 : vector<6x6xf32>
    %748 = vector.extract_strided_slice %732 {offsets = [4, 0], sizes = [6, 6], strides = [1, 1]} : vector<16x6xf32> to vector<6x6xf32>
    %cst_185 = arith.constant 0.212965339 : f32
    %749 = vector.broadcast %cst_185 : f32 to vector<6x6xf32>
    %750 = arith.mulf %749, %748 : vector<6x6xf32>
    %751 = arith.addf %747, %750 : vector<6x6xf32>
    %752 = vector.extract_strided_slice %732 {offsets = [5, 0], sizes = [6, 6], strides = [1, 1]} : vector<16x6xf32> to vector<6x6xf32>
    %cst_186 = arith.constant 0.265961528 : f32
    %753 = vector.broadcast %cst_186 : f32 to vector<6x6xf32>
    %754 = arith.mulf %753, %752 : vector<6x6xf32>
    %755 = arith.addf %751, %754 : vector<6x6xf32>
    %756 = vector.extract_strided_slice %732 {offsets = [6, 0], sizes = [6, 6], strides = [1, 1]} : vector<16x6xf32> to vector<6x6xf32>
    %cst_187 = arith.constant 0.212965339 : f32
    %757 = vector.broadcast %cst_187 : f32 to vector<6x6xf32>
    %758 = arith.mulf %757, %756 : vector<6x6xf32>
    %759 = arith.addf %755, %758 : vector<6x6xf32>
    %760 = vector.extract_strided_slice %732 {offsets = [7, 0], sizes = [6, 6], strides = [1, 1]} : vector<16x6xf32> to vector<6x6xf32>
    %cst_188 = arith.constant 0.109340049 : f32
    %761 = vector.broadcast %cst_188 : f32 to vector<6x6xf32>
    %762 = arith.mulf %761, %760 : vector<6x6xf32>
    %763 = arith.addf %759, %762 : vector<6x6xf32>
    %764 = vector.extract_strided_slice %732 {offsets = [8, 0], sizes = [6, 6], strides = [1, 1]} : vector<16x6xf32> to vector<6x6xf32>
    %cst_189 = arith.constant 0.0359939784 : f32
    %765 = vector.broadcast %cst_189 : f32 to vector<6x6xf32>
    %766 = arith.mulf %765, %764 : vector<6x6xf32>
    %767 = arith.addf %763, %766 : vector<6x6xf32>
    %768 = vector.extract_strided_slice %732 {offsets = [9, 0], sizes = [6, 6], strides = [1, 1]} : vector<16x6xf32> to vector<6x6xf32>
    %cst_190 = arith.constant 0.00759732397 : f32
    %769 = vector.broadcast %cst_190 : f32 to vector<6x6xf32>
    %770 = arith.mulf %769, %768 : vector<6x6xf32>
    %771 = arith.addf %767, %770 : vector<6x6xf32>
    %772 = vector.extract_strided_slice %732 {offsets = [10, 0], sizes = [6, 6], strides = [1, 1]} : vector<16x6xf32> to vector<6x6xf32>
    %cst_191 = arith.constant 0.00102818594 : f32
    %773 = vector.broadcast %cst_191 : f32 to vector<6x6xf32>
    %774 = arith.mulf %773, %772 : vector<6x6xf32>
    %775 = arith.addf %771, %774 : vector<6x6xf32>
    %776 = vector.extract_strided_slice %601 {offsets = [0, 0], sizes = [16, 6], strides = [1, 1]} : vector<16x16xf32> to vector<16x6xf32>
    %cst_192 = arith.constant 0.00102818594 : f32
    %777 = vector.broadcast %cst_192 : f32 to vector<16x6xf32>
    %778 = arith.mulf %777, %776 : vector<16x6xf32>
    %779 = vector.extract_strided_slice %601 {offsets = [0, 1], sizes = [16, 6], strides = [1, 1]} : vector<16x16xf32> to vector<16x6xf32>
    %cst_193 = arith.constant 0.00759732397 : f32
    %780 = vector.broadcast %cst_193 : f32 to vector<16x6xf32>
    %781 = arith.mulf %780, %779 : vector<16x6xf32>
    %782 = arith.addf %778, %781 : vector<16x6xf32>
    %783 = vector.extract_strided_slice %601 {offsets = [0, 2], sizes = [16, 6], strides = [1, 1]} : vector<16x16xf32> to vector<16x6xf32>
    %cst_194 = arith.constant 0.0359939784 : f32
    %784 = vector.broadcast %cst_194 : f32 to vector<16x6xf32>
    %785 = arith.mulf %784, %783 : vector<16x6xf32>
    %786 = arith.addf %782, %785 : vector<16x6xf32>
    %787 = vector.extract_strided_slice %601 {offsets = [0, 3], sizes = [16, 6], strides = [1, 1]} : vector<16x16xf32> to vector<16x6xf32>
    %cst_195 = arith.constant 0.109340049 : f32
    %788 = vector.broadcast %cst_195 : f32 to vector<16x6xf32>
    %789 = arith.mulf %788, %787 : vector<16x6xf32>
    %790 = arith.addf %786, %789 : vector<16x6xf32>
    %791 = vector.extract_strided_slice %601 {offsets = [0, 4], sizes = [16, 6], strides = [1, 1]} : vector<16x16xf32> to vector<16x6xf32>
    %cst_196 = arith.constant 0.212965339 : f32
    %792 = vector.broadcast %cst_196 : f32 to vector<16x6xf32>
    %793 = arith.mulf %792, %791 : vector<16x6xf32>
    %794 = arith.addf %790, %793 : vector<16x6xf32>
    %795 = vector.extract_strided_slice %601 {offsets = [0, 5], sizes = [16, 6], strides = [1, 1]} : vector<16x16xf32> to vector<16x6xf32>
    %cst_197 = arith.constant 0.265961528 : f32
    %796 = vector.broadcast %cst_197 : f32 to vector<16x6xf32>
    %797 = arith.mulf %796, %795 : vector<16x6xf32>
    %798 = arith.addf %794, %797 : vector<16x6xf32>
    %799 = vector.extract_strided_slice %601 {offsets = [0, 6], sizes = [16, 6], strides = [1, 1]} : vector<16x16xf32> to vector<16x6xf32>
    %cst_198 = arith.constant 0.212965339 : f32
    %800 = vector.broadcast %cst_198 : f32 to vector<16x6xf32>
    %801 = arith.mulf %800, %799 : vector<16x6xf32>
    %802 = arith.addf %798, %801 : vector<16x6xf32>
    %803 = vector.extract_strided_slice %601 {offsets = [0, 7], sizes = [16, 6], strides = [1, 1]} : vector<16x16xf32> to vector<16x6xf32>
    %cst_199 = arith.constant 0.109340049 : f32
    %804 = vector.broadcast %cst_199 : f32 to vector<16x6xf32>
    %805 = arith.mulf %804, %803 : vector<16x6xf32>
    %806 = arith.addf %802, %805 : vector<16x6xf32>
    %807 = vector.extract_strided_slice %601 {offsets = [0, 8], sizes = [16, 6], strides = [1, 1]} : vector<16x16xf32> to vector<16x6xf32>
    %cst_200 = arith.constant 0.0359939784 : f32
    %808 = vector.broadcast %cst_200 : f32 to vector<16x6xf32>
    %809 = arith.mulf %808, %807 : vector<16x6xf32>
    %810 = arith.addf %806, %809 : vector<16x6xf32>
    %811 = vector.extract_strided_slice %601 {offsets = [0, 9], sizes = [16, 6], strides = [1, 1]} : vector<16x16xf32> to vector<16x6xf32>
    %cst_201 = arith.constant 0.00759732397 : f32
    %812 = vector.broadcast %cst_201 : f32 to vector<16x6xf32>
    %813 = arith.mulf %812, %811 : vector<16x6xf32>
    %814 = arith.addf %810, %813 : vector<16x6xf32>
    %815 = vector.extract_strided_slice %601 {offsets = [0, 10], sizes = [16, 6], strides = [1, 1]} : vector<16x16xf32> to vector<16x6xf32>
    %cst_202 = arith.constant 0.00102818594 : f32
    %816 = vector.broadcast %cst_202 : f32 to vector<16x6xf32>
    %817 = arith.mulf %816, %815 : vector<16x6xf32>
    %818 = arith.addf %814, %817 : vector<16x6xf32>
    %819 = vector.extract_strided_slice %818 {offsets = [0, 0], sizes = [6, 6], strides = [1, 1]} : vector<16x6xf32> to vector<6x6xf32>
    %cst_203 = arith.constant 0.00102818594 : f32
    %820 = vector.broadcast %cst_203 : f32 to vector<6x6xf32>
    %821 = arith.mulf %820, %819 : vector<6x6xf32>
    %822 = vector.extract_strided_slice %818 {offsets = [1, 0], sizes = [6, 6], strides = [1, 1]} : vector<16x6xf32> to vector<6x6xf32>
    %cst_204 = arith.constant 0.00759732397 : f32
    %823 = vector.broadcast %cst_204 : f32 to vector<6x6xf32>
    %824 = arith.mulf %823, %822 : vector<6x6xf32>
    %825 = arith.addf %821, %824 : vector<6x6xf32>
    %826 = vector.extract_strided_slice %818 {offsets = [2, 0], sizes = [6, 6], strides = [1, 1]} : vector<16x6xf32> to vector<6x6xf32>
    %cst_205 = arith.constant 0.0359939784 : f32
    %827 = vector.broadcast %cst_205 : f32 to vector<6x6xf32>
    %828 = arith.mulf %827, %826 : vector<6x6xf32>
    %829 = arith.addf %825, %828 : vector<6x6xf32>
    %830 = vector.extract_strided_slice %818 {offsets = [3, 0], sizes = [6, 6], strides = [1, 1]} : vector<16x6xf32> to vector<6x6xf32>
    %cst_206 = arith.constant 0.109340049 : f32
    %831 = vector.broadcast %cst_206 : f32 to vector<6x6xf32>
    %832 = arith.mulf %831, %830 : vector<6x6xf32>
    %833 = arith.addf %829, %832 : vector<6x6xf32>
    %834 = vector.extract_strided_slice %818 {offsets = [4, 0], sizes = [6, 6], strides = [1, 1]} : vector<16x6xf32> to vector<6x6xf32>
    %cst_207 = arith.constant 0.212965339 : f32
    %835 = vector.broadcast %cst_207 : f32 to vector<6x6xf32>
    %836 = arith.mulf %835, %834 : vector<6x6xf32>
    %837 = arith.addf %833, %836 : vector<6x6xf32>
    %838 = vector.extract_strided_slice %818 {offsets = [5, 0], sizes = [6, 6], strides = [1, 1]} : vector<16x6xf32> to vector<6x6xf32>
    %cst_208 = arith.constant 0.265961528 : f32
    %839 = vector.broadcast %cst_208 : f32 to vector<6x6xf32>
    %840 = arith.mulf %839, %838 : vector<6x6xf32>
    %841 = arith.addf %837, %840 : vector<6x6xf32>
    %842 = vector.extract_strided_slice %818 {offsets = [6, 0], sizes = [6, 6], strides = [1, 1]} : vector<16x6xf32> to vector<6x6xf32>
    %cst_209 = arith.constant 0.212965339 : f32
    %843 = vector.broadcast %cst_209 : f32 to vector<6x6xf32>
    %844 = arith.mulf %843, %842 : vector<6x6xf32>
    %845 = arith.addf %841, %844 : vector<6x6xf32>
    %846 = vector.extract_strided_slice %818 {offsets = [7, 0], sizes = [6, 6], strides = [1, 1]} : vector<16x6xf32> to vector<6x6xf32>
    %cst_210 = arith.constant 0.109340049 : f32
    %847 = vector.broadcast %cst_210 : f32 to vector<6x6xf32>
    %848 = arith.mulf %847, %846 : vector<6x6xf32>
    %849 = arith.addf %845, %848 : vector<6x6xf32>
    %850 = vector.extract_strided_slice %818 {offsets = [8, 0], sizes = [6, 6], strides = [1, 1]} : vector<16x6xf32> to vector<6x6xf32>
    %cst_211 = arith.constant 0.0359939784 : f32
    %851 = vector.broadcast %cst_211 : f32 to vector<6x6xf32>
    %852 = arith.mulf %851, %850 : vector<6x6xf32>
    %853 = arith.addf %849, %852 : vector<6x6xf32>
    %854 = vector.extract_strided_slice %818 {offsets = [9, 0], sizes = [6, 6], strides = [1, 1]} : vector<16x6xf32> to vector<6x6xf32>
    %cst_212 = arith.constant 0.00759732397 : f32
    %855 = vector.broadcast %cst_212 : f32 to vector<6x6xf32>
    %856 = arith.mulf %855, %854 : vector<6x6xf32>
    %857 = arith.addf %853, %856 : vector<6x6xf32>
    %858 = vector.extract_strided_slice %818 {offsets = [10, 0], sizes = [6, 6], strides = [1, 1]} : vector<16x6xf32> to vector<6x6xf32>
    %cst_213 = arith.constant 0.00102818594 : f32
    %859 = vector.broadcast %cst_213 : f32 to vector<6x6xf32>
    %860 = arith.mulf %859, %858 : vector<6x6xf32>
    %861 = arith.addf %857, %860 : vector<6x6xf32>
    %862 = vector.extract_strided_slice %602 {offsets = [0, 0], sizes = [16, 6], strides = [1, 1]} : vector<16x16xf32> to vector<16x6xf32>
    %cst_214 = arith.constant 0.00102818594 : f32
    %863 = vector.broadcast %cst_214 : f32 to vector<16x6xf32>
    %864 = arith.mulf %863, %862 : vector<16x6xf32>
    %865 = vector.extract_strided_slice %602 {offsets = [0, 1], sizes = [16, 6], strides = [1, 1]} : vector<16x16xf32> to vector<16x6xf32>
    %cst_215 = arith.constant 0.00759732397 : f32
    %866 = vector.broadcast %cst_215 : f32 to vector<16x6xf32>
    %867 = arith.mulf %866, %865 : vector<16x6xf32>
    %868 = arith.addf %864, %867 : vector<16x6xf32>
    %869 = vector.extract_strided_slice %602 {offsets = [0, 2], sizes = [16, 6], strides = [1, 1]} : vector<16x16xf32> to vector<16x6xf32>
    %cst_216 = arith.constant 0.0359939784 : f32
    %870 = vector.broadcast %cst_216 : f32 to vector<16x6xf32>
    %871 = arith.mulf %870, %869 : vector<16x6xf32>
    %872 = arith.addf %868, %871 : vector<16x6xf32>
    %873 = vector.extract_strided_slice %602 {offsets = [0, 3], sizes = [16, 6], strides = [1, 1]} : vector<16x16xf32> to vector<16x6xf32>
    %cst_217 = arith.constant 0.109340049 : f32
    %874 = vector.broadcast %cst_217 : f32 to vector<16x6xf32>
    %875 = arith.mulf %874, %873 : vector<16x6xf32>
    %876 = arith.addf %872, %875 : vector<16x6xf32>
    %877 = vector.extract_strided_slice %602 {offsets = [0, 4], sizes = [16, 6], strides = [1, 1]} : vector<16x16xf32> to vector<16x6xf32>
    %cst_218 = arith.constant 0.212965339 : f32
    %878 = vector.broadcast %cst_218 : f32 to vector<16x6xf32>
    %879 = arith.mulf %878, %877 : vector<16x6xf32>
    %880 = arith.addf %876, %879 : vector<16x6xf32>
    %881 = vector.extract_strided_slice %602 {offsets = [0, 5], sizes = [16, 6], strides = [1, 1]} : vector<16x16xf32> to vector<16x6xf32>
    %cst_219 = arith.constant 0.265961528 : f32
    %882 = vector.broadcast %cst_219 : f32 to vector<16x6xf32>
    %883 = arith.mulf %882, %881 : vector<16x6xf32>
    %884 = arith.addf %880, %883 : vector<16x6xf32>
    %885 = vector.extract_strided_slice %602 {offsets = [0, 6], sizes = [16, 6], strides = [1, 1]} : vector<16x16xf32> to vector<16x6xf32>
    %cst_220 = arith.constant 0.212965339 : f32
    %886 = vector.broadcast %cst_220 : f32 to vector<16x6xf32>
    %887 = arith.mulf %886, %885 : vector<16x6xf32>
    %888 = arith.addf %884, %887 : vector<16x6xf32>
    %889 = vector.extract_strided_slice %602 {offsets = [0, 7], sizes = [16, 6], strides = [1, 1]} : vector<16x16xf32> to vector<16x6xf32>
    %cst_221 = arith.constant 0.109340049 : f32
    %890 = vector.broadcast %cst_221 : f32 to vector<16x6xf32>
    %891 = arith.mulf %890, %889 : vector<16x6xf32>
    %892 = arith.addf %888, %891 : vector<16x6xf32>
    %893 = vector.extract_strided_slice %602 {offsets = [0, 8], sizes = [16, 6], strides = [1, 1]} : vector<16x16xf32> to vector<16x6xf32>
    %cst_222 = arith.constant 0.0359939784 : f32
    %894 = vector.broadcast %cst_222 : f32 to vector<16x6xf32>
    %895 = arith.mulf %894, %893 : vector<16x6xf32>
    %896 = arith.addf %892, %895 : vector<16x6xf32>
    %897 = vector.extract_strided_slice %602 {offsets = [0, 9], sizes = [16, 6], strides = [1, 1]} : vector<16x16xf32> to vector<16x6xf32>
    %cst_223 = arith.constant 0.00759732397 : f32
    %898 = vector.broadcast %cst_223 : f32 to vector<16x6xf32>
    %899 = arith.mulf %898, %897 : vector<16x6xf32>
    %900 = arith.addf %896, %899 : vector<16x6xf32>
    %901 = vector.extract_strided_slice %602 {offsets = [0, 10], sizes = [16, 6], strides = [1, 1]} : vector<16x16xf32> to vector<16x6xf32>
    %cst_224 = arith.constant 0.00102818594 : f32
    %902 = vector.broadcast %cst_224 : f32 to vector<16x6xf32>
    %903 = arith.mulf %902, %901 : vector<16x6xf32>
    %904 = arith.addf %900, %903 : vector<16x6xf32>
    %905 = vector.extract_strided_slice %904 {offsets = [0, 0], sizes = [6, 6], strides = [1, 1]} : vector<16x6xf32> to vector<6x6xf32>
    %cst_225 = arith.constant 0.00102818594 : f32
    %906 = vector.broadcast %cst_225 : f32 to vector<6x6xf32>
    %907 = arith.mulf %906, %905 : vector<6x6xf32>
    %908 = vector.extract_strided_slice %904 {offsets = [1, 0], sizes = [6, 6], strides = [1, 1]} : vector<16x6xf32> to vector<6x6xf32>
    %cst_226 = arith.constant 0.00759732397 : f32
    %909 = vector.broadcast %cst_226 : f32 to vector<6x6xf32>
    %910 = arith.mulf %909, %908 : vector<6x6xf32>
    %911 = arith.addf %907, %910 : vector<6x6xf32>
    %912 = vector.extract_strided_slice %904 {offsets = [2, 0], sizes = [6, 6], strides = [1, 1]} : vector<16x6xf32> to vector<6x6xf32>
    %cst_227 = arith.constant 0.0359939784 : f32
    %913 = vector.broadcast %cst_227 : f32 to vector<6x6xf32>
    %914 = arith.mulf %913, %912 : vector<6x6xf32>
    %915 = arith.addf %911, %914 : vector<6x6xf32>
    %916 = vector.extract_strided_slice %904 {offsets = [3, 0], sizes = [6, 6], strides = [1, 1]} : vector<16x6xf32> to vector<6x6xf32>
    %cst_228 = arith.constant 0.109340049 : f32
    %917 = vector.broadcast %cst_228 : f32 to vector<6x6xf32>
    %918 = arith.mulf %917, %916 : vector<6x6xf32>
    %919 = arith.addf %915, %918 : vector<6x6xf32>
    %920 = vector.extract_strided_slice %904 {offsets = [4, 0], sizes = [6, 6], strides = [1, 1]} : vector<16x6xf32> to vector<6x6xf32>
    %cst_229 = arith.constant 0.212965339 : f32
    %921 = vector.broadcast %cst_229 : f32 to vector<6x6xf32>
    %922 = arith.mulf %921, %920 : vector<6x6xf32>
    %923 = arith.addf %919, %922 : vector<6x6xf32>
    %924 = vector.extract_strided_slice %904 {offsets = [5, 0], sizes = [6, 6], strides = [1, 1]} : vector<16x6xf32> to vector<6x6xf32>
    %cst_230 = arith.constant 0.265961528 : f32
    %925 = vector.broadcast %cst_230 : f32 to vector<6x6xf32>
    %926 = arith.mulf %925, %924 : vector<6x6xf32>
    %927 = arith.addf %923, %926 : vector<6x6xf32>
    %928 = vector.extract_strided_slice %904 {offsets = [6, 0], sizes = [6, 6], strides = [1, 1]} : vector<16x6xf32> to vector<6x6xf32>
    %cst_231 = arith.constant 0.212965339 : f32
    %929 = vector.broadcast %cst_231 : f32 to vector<6x6xf32>
    %930 = arith.mulf %929, %928 : vector<6x6xf32>
    %931 = arith.addf %927, %930 : vector<6x6xf32>
    %932 = vector.extract_strided_slice %904 {offsets = [7, 0], sizes = [6, 6], strides = [1, 1]} : vector<16x6xf32> to vector<6x6xf32>
    %cst_232 = arith.constant 0.109340049 : f32
    %933 = vector.broadcast %cst_232 : f32 to vector<6x6xf32>
    %934 = arith.mulf %933, %932 : vector<6x6xf32>
    %935 = arith.addf %931, %934 : vector<6x6xf32>
    %936 = vector.extract_strided_slice %904 {offsets = [8, 0], sizes = [6, 6], strides = [1, 1]} : vector<16x6xf32> to vector<6x6xf32>
    %cst_233 = arith.constant 0.0359939784 : f32
    %937 = vector.broadcast %cst_233 : f32 to vector<6x6xf32>
    %938 = arith.mulf %937, %936 : vector<6x6xf32>
    %939 = arith.addf %935, %938 : vector<6x6xf32>
    %940 = vector.extract_strided_slice %904 {offsets = [9, 0], sizes = [6, 6], strides = [1, 1]} : vector<16x6xf32> to vector<6x6xf32>
    %cst_234 = arith.constant 0.00759732397 : f32
    %941 = vector.broadcast %cst_234 : f32 to vector<6x6xf32>
    %942 = arith.mulf %941, %940 : vector<6x6xf32>
    %943 = arith.addf %939, %942 : vector<6x6xf32>
    %944 = vector.extract_strided_slice %904 {offsets = [10, 0], sizes = [6, 6], strides = [1, 1]} : vector<16x6xf32> to vector<6x6xf32>
    %cst_235 = arith.constant 0.00102818594 : f32
    %945 = vector.broadcast %cst_235 : f32 to vector<6x6xf32>
    %946 = arith.mulf %945, %944 : vector<6x6xf32>
    %947 = arith.addf %943, %946 : vector<6x6xf32>
    %948 = vector.extract_strided_slice %603 {offsets = [0, 0], sizes = [16, 6], strides = [1, 1]} : vector<16x16xf32> to vector<16x6xf32>
    %cst_236 = arith.constant 0.00102818594 : f32
    %949 = vector.broadcast %cst_236 : f32 to vector<16x6xf32>
    %950 = arith.mulf %949, %948 : vector<16x6xf32>
    %951 = vector.extract_strided_slice %603 {offsets = [0, 1], sizes = [16, 6], strides = [1, 1]} : vector<16x16xf32> to vector<16x6xf32>
    %cst_237 = arith.constant 0.00759732397 : f32
    %952 = vector.broadcast %cst_237 : f32 to vector<16x6xf32>
    %953 = arith.mulf %952, %951 : vector<16x6xf32>
    %954 = arith.addf %950, %953 : vector<16x6xf32>
    %955 = vector.extract_strided_slice %603 {offsets = [0, 2], sizes = [16, 6], strides = [1, 1]} : vector<16x16xf32> to vector<16x6xf32>
    %cst_238 = arith.constant 0.0359939784 : f32
    %956 = vector.broadcast %cst_238 : f32 to vector<16x6xf32>
    %957 = arith.mulf %956, %955 : vector<16x6xf32>
    %958 = arith.addf %954, %957 : vector<16x6xf32>
    %959 = vector.extract_strided_slice %603 {offsets = [0, 3], sizes = [16, 6], strides = [1, 1]} : vector<16x16xf32> to vector<16x6xf32>
    %cst_239 = arith.constant 0.109340049 : f32
    %960 = vector.broadcast %cst_239 : f32 to vector<16x6xf32>
    %961 = arith.mulf %960, %959 : vector<16x6xf32>
    %962 = arith.addf %958, %961 : vector<16x6xf32>
    %963 = vector.extract_strided_slice %603 {offsets = [0, 4], sizes = [16, 6], strides = [1, 1]} : vector<16x16xf32> to vector<16x6xf32>
    %cst_240 = arith.constant 0.212965339 : f32
    %964 = vector.broadcast %cst_240 : f32 to vector<16x6xf32>
    %965 = arith.mulf %964, %963 : vector<16x6xf32>
    %966 = arith.addf %962, %965 : vector<16x6xf32>
    %967 = vector.extract_strided_slice %603 {offsets = [0, 5], sizes = [16, 6], strides = [1, 1]} : vector<16x16xf32> to vector<16x6xf32>
    %cst_241 = arith.constant 0.265961528 : f32
    %968 = vector.broadcast %cst_241 : f32 to vector<16x6xf32>
    %969 = arith.mulf %968, %967 : vector<16x6xf32>
    %970 = arith.addf %966, %969 : vector<16x6xf32>
    %971 = vector.extract_strided_slice %603 {offsets = [0, 6], sizes = [16, 6], strides = [1, 1]} : vector<16x16xf32> to vector<16x6xf32>
    %cst_242 = arith.constant 0.212965339 : f32
    %972 = vector.broadcast %cst_242 : f32 to vector<16x6xf32>
    %973 = arith.mulf %972, %971 : vector<16x6xf32>
    %974 = arith.addf %970, %973 : vector<16x6xf32>
    %975 = vector.extract_strided_slice %603 {offsets = [0, 7], sizes = [16, 6], strides = [1, 1]} : vector<16x16xf32> to vector<16x6xf32>
    %cst_243 = arith.constant 0.109340049 : f32
    %976 = vector.broadcast %cst_243 : f32 to vector<16x6xf32>
    %977 = arith.mulf %976, %975 : vector<16x6xf32>
    %978 = arith.addf %974, %977 : vector<16x6xf32>
    %979 = vector.extract_strided_slice %603 {offsets = [0, 8], sizes = [16, 6], strides = [1, 1]} : vector<16x16xf32> to vector<16x6xf32>
    %cst_244 = arith.constant 0.0359939784 : f32
    %980 = vector.broadcast %cst_244 : f32 to vector<16x6xf32>
    %981 = arith.mulf %980, %979 : vector<16x6xf32>
    %982 = arith.addf %978, %981 : vector<16x6xf32>
    %983 = vector.extract_strided_slice %603 {offsets = [0, 9], sizes = [16, 6], strides = [1, 1]} : vector<16x16xf32> to vector<16x6xf32>
    %cst_245 = arith.constant 0.00759732397 : f32
    %984 = vector.broadcast %cst_245 : f32 to vector<16x6xf32>
    %985 = arith.mulf %984, %983 : vector<16x6xf32>
    %986 = arith.addf %982, %985 : vector<16x6xf32>
    %987 = vector.extract_strided_slice %603 {offsets = [0, 10], sizes = [16, 6], strides = [1, 1]} : vector<16x16xf32> to vector<16x6xf32>
    %cst_246 = arith.constant 0.00102818594 : f32
    %988 = vector.broadcast %cst_246 : f32 to vector<16x6xf32>
    %989 = arith.mulf %988, %987 : vector<16x6xf32>
    %990 = arith.addf %986, %989 : vector<16x6xf32>
    %991 = vector.extract_strided_slice %990 {offsets = [0, 0], sizes = [6, 6], strides = [1, 1]} : vector<16x6xf32> to vector<6x6xf32>
    %cst_247 = arith.constant 0.00102818594 : f32
    %992 = vector.broadcast %cst_247 : f32 to vector<6x6xf32>
    %993 = arith.mulf %992, %991 : vector<6x6xf32>
    %994 = vector.extract_strided_slice %990 {offsets = [1, 0], sizes = [6, 6], strides = [1, 1]} : vector<16x6xf32> to vector<6x6xf32>
    %cst_248 = arith.constant 0.00759732397 : f32
    %995 = vector.broadcast %cst_248 : f32 to vector<6x6xf32>
    %996 = arith.mulf %995, %994 : vector<6x6xf32>
    %997 = arith.addf %993, %996 : vector<6x6xf32>
    %998 = vector.extract_strided_slice %990 {offsets = [2, 0], sizes = [6, 6], strides = [1, 1]} : vector<16x6xf32> to vector<6x6xf32>
    %cst_249 = arith.constant 0.0359939784 : f32
    %999 = vector.broadcast %cst_249 : f32 to vector<6x6xf32>
    %1000 = arith.mulf %999, %998 : vector<6x6xf32>
    %1001 = arith.addf %997, %1000 : vector<6x6xf32>
    %1002 = vector.extract_strided_slice %990 {offsets = [3, 0], sizes = [6, 6], strides = [1, 1]} : vector<16x6xf32> to vector<6x6xf32>
    %cst_250 = arith.constant 0.109340049 : f32
    %1003 = vector.broadcast %cst_250 : f32 to vector<6x6xf32>
    %1004 = arith.mulf %1003, %1002 : vector<6x6xf32>
    %1005 = arith.addf %1001, %1004 : vector<6x6xf32>
    %1006 = vector.extract_strided_slice %990 {offsets = [4, 0], sizes = [6, 6], strides = [1, 1]} : vector<16x6xf32> to vector<6x6xf32>
    %cst_251 = arith.constant 0.212965339 : f32
    %1007 = vector.broadcast %cst_251 : f32 to vector<6x6xf32>
    %1008 = arith.mulf %1007, %1006 : vector<6x6xf32>
    %1009 = arith.addf %1005, %1008 : vector<6x6xf32>
    %1010 = vector.extract_strided_slice %990 {offsets = [5, 0], sizes = [6, 6], strides = [1, 1]} : vector<16x6xf32> to vector<6x6xf32>
    %cst_252 = arith.constant 0.265961528 : f32
    %1011 = vector.broadcast %cst_252 : f32 to vector<6x6xf32>
    %1012 = arith.mulf %1011, %1010 : vector<6x6xf32>
    %1013 = arith.addf %1009, %1012 : vector<6x6xf32>
    %1014 = vector.extract_strided_slice %990 {offsets = [6, 0], sizes = [6, 6], strides = [1, 1]} : vector<16x6xf32> to vector<6x6xf32>
    %cst_253 = arith.constant 0.212965339 : f32
    %1015 = vector.broadcast %cst_253 : f32 to vector<6x6xf32>
    %1016 = arith.mulf %1015, %1014 : vector<6x6xf32>
    %1017 = arith.addf %1013, %1016 : vector<6x6xf32>
    %1018 = vector.extract_strided_slice %990 {offsets = [7, 0], sizes = [6, 6], strides = [1, 1]} : vector<16x6xf32> to vector<6x6xf32>
    %cst_254 = arith.constant 0.109340049 : f32
    %1019 = vector.broadcast %cst_254 : f32 to vector<6x6xf32>
    %1020 = arith.mulf %1019, %1018 : vector<6x6xf32>
    %1021 = arith.addf %1017, %1020 : vector<6x6xf32>
    %1022 = vector.extract_strided_slice %990 {offsets = [8, 0], sizes = [6, 6], strides = [1, 1]} : vector<16x6xf32> to vector<6x6xf32>
    %cst_255 = arith.constant 0.0359939784 : f32
    %1023 = vector.broadcast %cst_255 : f32 to vector<6x6xf32>
    %1024 = arith.mulf %1023, %1022 : vector<6x6xf32>
    %1025 = arith.addf %1021, %1024 : vector<6x6xf32>
    %1026 = vector.extract_strided_slice %990 {offsets = [9, 0], sizes = [6, 6], strides = [1, 1]} : vector<16x6xf32> to vector<6x6xf32>
    %cst_256 = arith.constant 0.00759732397 : f32
    %1027 = vector.broadcast %cst_256 : f32 to vector<6x6xf32>
    %1028 = arith.mulf %1027, %1026 : vector<6x6xf32>
    %1029 = arith.addf %1025, %1028 : vector<6x6xf32>
    %1030 = vector.extract_strided_slice %990 {offsets = [10, 0], sizes = [6, 6], strides = [1, 1]} : vector<16x6xf32> to vector<6x6xf32>
    %cst_257 = arith.constant 0.00102818594 : f32
    %1031 = vector.broadcast %cst_257 : f32 to vector<6x6xf32>
    %1032 = arith.mulf %1031, %1030 : vector<6x6xf32>
    %1033 = arith.addf %1029, %1032 : vector<6x6xf32>
    %1034 = arith.mulf %689, %689 : vector<6x6xf32>
    %1035 = arith.subf %861, %1034 : vector<6x6xf32>
    %1036 = arith.mulf %775, %775 : vector<6x6xf32>
    %1037 = arith.subf %947, %1036 : vector<6x6xf32>
    %1038 = arith.mulf %689, %775 : vector<6x6xf32>
    %1039 = arith.subf %1033, %1038 : vector<6x6xf32>
    %cst_258 = arith.constant 2.000000e+00 : f32
    %1040 = vector.broadcast %cst_258 : f32 to vector<6x6xf32>
    %1041 = arith.mulf %1040, %689 : vector<6x6xf32>
    %1042 = arith.mulf %1041, %775 : vector<6x6xf32>
    %cst_259 = arith.constant 9.801000e+01 : f32
    %1043 = vector.broadcast %cst_259 : f32 to vector<6x6xf32>
    %1044 = arith.addf %1042, %1043 : vector<6x6xf32>
    %cst_260 = arith.constant 2.000000e+00 : f32
    %1045 = vector.broadcast %cst_260 : f32 to vector<6x6xf32>
    %1046 = arith.mulf %1045, %1039 : vector<6x6xf32>
    %cst_261 = arith.constant 8.820900e+02 : f32
    %1047 = vector.broadcast %cst_261 : f32 to vector<6x6xf32>
    %1048 = arith.addf %1046, %1047 : vector<6x6xf32>
    %1049 = arith.mulf %1044, %1048 : vector<6x6xf32>
    %1050 = arith.mulf %689, %689 : vector<6x6xf32>
    %1051 = arith.mulf %775, %775 : vector<6x6xf32>
    %1052 = arith.addf %1050, %1051 : vector<6x6xf32>
    %cst_262 = arith.constant 9.801000e+01 : f32
    %1053 = vector.broadcast %cst_262 : f32 to vector<6x6xf32>
    %1054 = arith.addf %1052, %1053 : vector<6x6xf32>
    %1055 = arith.addf %1035, %1037 : vector<6x6xf32>
    %cst_263 = arith.constant 8.820900e+02 : f32
    %1056 = vector.broadcast %cst_263 : f32 to vector<6x6xf32>
    %1057 = arith.addf %1055, %1056 : vector<6x6xf32>
    %1058 = arith.mulf %1054, %1057 : vector<6x6xf32>
    %1059 = tpu.reciprocal %1058 {approx = true} : vector<6x6xf32> -> vector<6x6xf32>
    %1060 = arith.mulf %1058, %1059 : vector<6x6xf32>
    %cst_264 = arith.constant 2.000000e+00 : f32
    %1061 = vector.broadcast %cst_264 : f32 to vector<6x6xf32>
    %1062 = arith.subf %1061, %1060 : vector<6x6xf32>
    %1063 = arith.mulf %1059, %1062 : vector<6x6xf32>
    %1064 = arith.mulf %1049, %1063 : vector<6x6xf32>
    %1065 = vector.shape_cast %1064 : vector<6x6xf32> to vector<1x6x6xf32>
    %cst_265 = arith.constant dense<0.000000e+00> : vector<1xf32>
    %1066 = vector.multi_reduction <add>, %1065, %cst_265 [1, 2] : vector<1x6x6xf32> to vector<1xf32>
    %1067 = vector.shape_cast %1066 : vector<1xf32> to vector<1x1x1xf32>
    %1068 = vector.extract %1067[0, 0, 0] : f32 from vector<1x1x1xf32>
    %1069 = vector.broadcast %1068 : f32 to vector<1x1xf32>
    %1070 = arith.addf %536, %1069 : vector<1x1xf32>
    %1071 = tpu.iota {dimensions = array<i32: 1>} : vector<1x128xi32>
    %c0_i32 = arith.constant 0 : i32
    %1072 = vector.broadcast %c0_i32 : i32 to vector<1x128xi32>
    %1073 = arith.cmpi eq, %1071, %1072 : vector<1x128xi32>
    %cst_266 = arith.constant 0.000000e+00 : f32
    %1074 = vector.shape_cast %548 : vector<1x1xf32> to vector<1x1xf32>
    %1075 = vector.broadcast %1074 : vector<1x1xf32> to vector<1x128xf32>
    %1076 = vector.broadcast %cst_266 : f32 to vector<1x128xf32>
    %1077 = arith.select %1073, %1075, %1076 : vector<1x128xi1>, vector<1x128xf32>
    %c1_i32 = arith.constant 1 : i32
    %1078 = vector.broadcast %c1_i32 : i32 to vector<1x128xi32>
    %1079 = arith.cmpi eq, %1071, %1078 : vector<1x128xi32>
    %cst_267 = arith.constant 0.000000e+00 : f32
    %1080 = vector.shape_cast %600 : vector<1x1xf32> to vector<1x1xf32>
    %1081 = vector.broadcast %1080 : vector<1x1xf32> to vector<1x128xf32>
    %1082 = vector.broadcast %cst_267 : f32 to vector<1x128xf32>
    %1083 = arith.select %1079, %1081, %1082 : vector<1x128xi1>, vector<1x128xf32>
    %1084 = arith.addf %1077, %1083 : vector<1x128xf32>
    %c2_i32 = arith.constant 2 : i32
    %1085 = vector.broadcast %c2_i32 : i32 to vector<1x128xi32>
    %1086 = arith.cmpi eq, %1071, %1085 : vector<1x128xi32>
    %cst_268 = arith.constant 0.000000e+00 : f32
    %1087 = vector.shape_cast %1070 : vector<1x1xf32> to vector<1x1xf32>
    %1088 = vector.broadcast %1087 : vector<1x1xf32> to vector<1x128xf32>
    %1089 = vector.broadcast %cst_268 : f32 to vector<1x128xf32>
    %1090 = arith.select %1086, %1088, %1089 : vector<1x128xi1>, vector<1x128xf32>
    %1091 = arith.addf %1084, %1090 : vector<1x128xf32>
    %c0_269 = arith.constant 0 : index
    %c0_270 = arith.constant 0 : index
    %c0_271 = arith.constant 0 : index
    %1092 = vector.load %arg3[%c0_269, %c0_270, %c0_271] : memref<1x1x128xf32, #tpu.memory_space<vmem>>, vector<1x1x128xf32>
    %1093 = vector.shape_cast %1092 : vector<1x1x128xf32> to vector<1x128xf32>
    %1094 = vector.shape_cast %1091 : vector<1x128xf32> to vector<1x1x128xf32>
    tpu.vector_store %arg3[%c0_269, %c0_270, %c0_271], %1094 {strides = array<i32>} : memref<1x1x128xf32, #tpu.memory_space<vmem>>, vector<1x1x128xf32>,
    return
  }
  func.func @transform_0(%arg0: i32) -> (i32, i32, i32, i32) {
    %c0_i32 = arith.constant 0 : i32
    %c0_i32_0 = arith.constant 0 : i32
    %c0_i32_1 = arith.constant 0 : i32
    %c0_i32_2 = arith.constant 0 : i32
    return %arg0, %c0_i32, %c0_i32_0, %c0_i32_1 : i32, i32, i32, i32
  }
  func.func @transform_1(%arg0: i32) -> (i32, i32, i32, i32) {
    %c0_i32 = arith.constant 0 : i32
    %c0_i32_0 = arith.constant 0 : i32
    %c0_i32_1 = arith.constant 0 : i32
    %c0_i32_2 = arith.constant 0 : i32
    return %arg0, %c0_i32, %c0_i32_0, %c0_i32_1 : i32, i32, i32, i32
  }
  func.func @transform_2(%arg0: i32) -> (i32, i32, i32) {
    %c0_i32 = arith.constant 0 : i32
    %c0_i32_0 = arith.constant 0 : i32
    %c0_i32_1 = arith.constant 0 : i32
    return %arg0, %c0_i32, %c0_i32_0 : i32, i32, i32
  }
}

</mosaic_0001>

<llo_original>
// kernel: tpu_custom_call.1
$region0: #{tpu_custom_call.1}
  #allocation0 [shape = 'u32[]', space=smem, size = 0x4, offset = 0x4, fixed_abs, tag = 'smem constant byte address 0x4 - core index']
  #allocation1 [shape = 'u32[144,128]{1,0:T(1,128)}', space=vmem, size = 0x12000, scoped, tag = 'internal scratch']
  %s0 = inlined_call_operand.hbm [shape: f32[2,1,16,16], index: 0, kind: input, shape index: {}]
  %s1 = inlined_call_operand.hbm [shape: f32[2,1,16,16], index: 1, kind: input, shape index: {}]
  %s2 = inlined_call_operand.hbm [shape: f32[1,1,128], index: 2, kind: output, shape index: {}]
  %s3 = sld [smem:[#allocation0]]
  $region26: #{tpu_custom_call.1} parent=0
    _
  %s5 = ssub.s32 1, %s3
  %s6 = scalar_select 0, %s5, %s3
  $region1: #{tpu_custom_call.1} parent=0
    #allocation2 [shape = 'u8[16384]{0}', space=vmem, size = 0x4000, scoped, tag = 'input window, operand 0, single buffered']
    #allocation3 [shape = 's32[1]{0}', space=sflag, size = 0x4, scoped, tag = 'scoped memory for tpu_custom_call.1']
    #allocation4 [shape = 's32[1]{0}', space=sflag, size = 0x4, scoped, tag = 'scoped memory for tpu_custom_call.1']
    #allocation5 [shape = 'u8[16384]{0}', space=vmem, size = 0x4000, scoped, tag = 'input window, operand 1, single buffered']
    #allocation6 [shape = 's32[1]{0}', space=sflag, size = 0x4, scoped, tag = 'scoped memory for tpu_custom_call.1']
    #allocation7 [shape = 'u8[512]{0}', space=vmem, size = 0x400, scoped, tag = 'output window, operand 0, single buffered']
    %7 = vsyncpa [#allocation3], 0
    %8 = vsyncpa [#allocation6], 0
    %9 = vsyncpa [#allocation4], 0
    // Predicated region
    $region2: #{tpu_custom_call.1} parent=1 // pred_check
      _
    $region3: #{tpu_custom_call.1} parent=1 // pred_check_branch
      %11 = sbr.rel (0) target = $region5
    $region4: #{tpu_custom_call.1} parent=1 // pred_region
      %s13 = ssub.s32 512, 512
      %14 = vsyncadd [#allocation3], %s13
      %s15 = sshll.u32 [#allocation2], 4
      %s16 = int_to_ptr.vmem [resolvable:$true] %s15
      %21 = dma.hbm_to_vmem [thread:$0]  %s0, 512, %s16, [#allocation3], 128, 128, 8
    $region5: #{tpu_custom_call.1} parent=1 // pred_fallthru
      _
    // Predicated region
    $region6: #{tpu_custom_call.1} parent=1 // pred_check
      _
    $region7: #{tpu_custom_call.1} parent=1 // pred_check_branch
      %23 = sbr.rel (0) target = $region9
    $region8: #{tpu_custom_call.1} parent=1 // pred_region
      %s25 = ssub.s32 512, 512
      %26 = vsyncadd [#allocation6], %s25
      %s27 = sshll.u32 [#allocation5], 4
      %s28 = int_to_ptr.vmem [resolvable:$true] %s27
      %33 = dma.hbm_to_vmem [thread:$0]  %s1, 512, %s28, [#allocation6], 128, 128, 8
    $region9: #{tpu_custom_call.1} parent=1 // pred_fallthru
      _
    // Predicated region
    $region10: #{tpu_custom_call.1} parent=1 // pred_check
      _
    $region11: #{tpu_custom_call.1} parent=1 // pred_check_branch
      %35 = sbr.rel (0) target = $region13
    $region12: #{tpu_custom_call.1} parent=1 // pred_region
      %36 = dma.done [#allocation3], 512
    $region13: #{tpu_custom_call.1} parent=1 // pred_fallthru
      _
    // Predicated region
    $region14: #{tpu_custom_call.1} parent=1 // pred_check
      _
    $region15: #{tpu_custom_call.1} parent=1 // pred_check_branch
      %38 = sbr.rel (0) target = $region17
    $region16: #{tpu_custom_call.1} parent=1 // pred_region
      %39 = dma.done [#allocation6], 512
    $region17: #{tpu_custom_call.1} parent=1 // pred_fallthru
      _
    %v40 = vld [vmem:[#allocation2] sm:$0xff]
    %v41 = vld [vmem:[#allocation2 + $0x8] sm:$0xff]
    %v42 = vld [vmem:[#allocation5] sm:$0xff]
    %v43 = vld [vmem:[#allocation5 + $0x8] sm:$0xff]
    %v44 = vsub.f32 %v40, %v42
    %v45 = vsub.f32 %v41, %v43
    %v46 = vand.u32 2147483647, %v44
    %v47 = vand.u32 2147483647, %v45
    %vm48 = vcmask 130048
    %v49 = vsel %vm48, %v46, 0.0
    %v50 = vsel %vm48, %v47, 0.0
    %v51 = vadd.f32 %v49, %v50
    %52 = vadd.xlane.f32.xlu0 %v51
    %v53 = vpop.xlane.xlu0 %52
    %v54 = vrot.slane %v53, 4
    %v55 = vadd.f32 %v53, %v54
    %v56 = vrot.slane %v55, 2
    %v57 = vadd.f32 %v55, %v56
    %v58 = vrot.slane %v57, 1
    %v59 = vadd.f32 %v57, %v58
    %s60 = vtos %v59
    %v61 = vstv %s60
    %v62 = vadd.f32 %v61, 0.0
    %65 = vrot.lane.b32.xlu0 %v44, 2
    %v66 = vpop.permute.xlu0 %65
    %67 = vrot.lane.b32.xlu0 %v45, 2
    %v68 = vpop.permute.xlu0 %67
    %v71 = vsub.f32 %v44, %v66
    %v72 = vsub.f32 %v45, %v68
    %v73 = vand.u32 2147483647, %v71
    %v74 = vand.u32 2147483647, %v72
    %77 = vrot.lane.b32.xlu0 %v73, 126
    %v78 = vpop.permute.xlu0 %77
    %79 = vrot.lane.b32.xlu0 %v74, 126
    %v80 = vpop.permute.xlu0 %79
    %vm83 = vcmask 113664
    %v84 = vsel %vm83, %v78, 0.0
    %v85 = vsel %vm83, %v80, 0.0
    %v86 = vadd.f32 %v84, %v85
    %87 = vadd.xlane.f32.xlu0 %v86
    %v88 = vpop.xlane.xlu0 %87
    %v89 = vrot.slane %v88, 4
    %v90 = vadd.f32 %v88, %v89
    %v91 = vrot.slane %v90, 2
    %v92 = vadd.f32 %v90, %v91
    %v93 = vrot.slane %v92, 1
    %v94 = vadd.f32 %v92, %v93
    %s95 = vtos %v94
    %v96 = vstv %s95
    %vm97 = vcmask 1041408
    %v98 = vrot.slane %v44, 6
    %v99 = vrot.slane %v45, 6
    %v100 = vsel %vm97, %v98, %v99
    %v103 = vsub.f32 %v44, %v98
    %v104 = vsub.f32 %v45, %v100
    %v105 = vand.u32 2147483647, %v103
    %v106 = vand.u32 2147483647, %v104
    %vm109 = vcmask 1045504
    %v110 = vrot.slane %v105, 2
    %v111 = vrot.slane %v106, 2
    %v112 = vsel %vm109, %v110, %v111
    %v115 = vsel %vm48, %v112, 0.0
    %vm116 = vcmask 128000
    %v117 = vsel %vm116, %v111, 0.0
    %v118 = vadd.f32 %v115, %v117
    %119 = vadd.xlane.f32.xlu0 %v118
    %v120 = vpop.xlane.xlu0 %119
    %v121 = vrot.slane %v120, 4
    %v122 = vadd.f32 %v120, %v121
    %v123 = vrot.slane %v122, 2
    %v124 = vadd.f32 %v122, %v123
    %v125 = vrot.slane %v124, 1
    %v126 = vadd.f32 %v124, %v125
    %s127 = vtos %v126
    %v128 = vstv %s127
    %v129 = vadd.f32 %v96, %v128
    %132 = vrot.lane.b32.xlu0 %v46, 127
    %v133 = vpop.permute.xlu0 %132
    %134 = vrot.lane.b32.xlu0 %v47, 127
    %v135 = vpop.permute.xlu0 %134
    %vm138 = vcmask 7168
    %v139 = vsel %vm138, %v133, 0.0
    %v140 = vsel %vm138, %v135, 0.0
    %v141 = vadd.f32 %v139, %v140
    %142 = vadd.xlane.f32.xlu0 %v141
    %v143 = vpop.xlane.xlu0 %142
    %v144 = vrot.slane %v143, 4
    %v145 = vadd.f32 %v143, %v144
    %v146 = vrot.slane %v145, 2
    %v147 = vadd.f32 %v145, %v146
    %v148 = vrot.slane %v147, 1
    %v149 = vadd.f32 %v147, %v148
    %s150 = vtos %v149
    %v151 = vstv %s150
    %v152 = vadd.f32 %v129, %v151
    %153 = vrot.lane.b32.xlu0 %v46, 114
    %v154 = vpop.permute.xlu0 %153
    %155 = vrot.lane.b32.xlu0 %v47, 114
    %v156 = vpop.permute.xlu0 %155
    %v159 = vsel %vm138, %v154, 0.0
    %v160 = vsel %vm138, %v156, 0.0
    %v161 = vadd.f32 %v159, %v160
    %162 = vadd.xlane.f32.xlu0 %v161
    %v163 = vpop.xlane.xlu0 %162
    %v164 = vrot.slane %v163, 4
    %v165 = vadd.f32 %v163, %v164
    %v166 = vrot.slane %v165, 2
    %v167 = vadd.f32 %v165, %v166
    %v168 = vrot.slane %v167, 1
    %v169 = vadd.f32 %v167, %v168
    %s170 = vtos %v169
    %v171 = vstv %s170
    %v172 = vadd.f32 %v152, %v171
    %v173 = vrot.slane %v46, 1
    %vm175 = vcmask 122880
    %v176 = vsel %vm175, %v173, 0.0
    %177 = vadd.xlane.f32.xlu0 %v176
    %v178 = vpop.xlane.xlu0 %177
    %v179 = vrot.slane %v178, 4
    %v180 = vadd.f32 %v178, %v179
    %v181 = vrot.slane %v180, 2
    %v182 = vadd.f32 %v180, %v181
    %v183 = vrot.slane %v182, 1
    %v184 = vadd.f32 %v182, %v183
    %s185 = vtos %v184
    %v186 = vstv %s185
    %v187 = vadd.f32 %v172, %v186
    %v188 = vrot.slane %v47, 6
    %v190 = vsel %vm175, %v188, 0.0
    %191 = vadd.xlane.f32.xlu0 %v190
    %v192 = vpop.xlane.xlu0 %191
    %v193 = vrot.slane %v192, 4
    %v194 = vadd.f32 %v192, %v193
    %v195 = vrot.slane %v194, 2
    %v196 = vadd.f32 %v194, %v195
    %v197 = vrot.slane %v196, 1
    %v198 = vadd.f32 %v196, %v197
    %s199 = vtos %v198
    %v200 = vstv %s199
    %v201 = vadd.f32 %v187, %v200
    %v202 = vadd.f32 %v201, 0.0
    %v203 = vmul.f32 %v40, %v40
    %v204 = vmul.f32 %v41, %v41
    %v205 = vmul.f32 %v42, %v42
    %v206 = vmul.f32 %v43, %v43
    %v207 = vmul.f32 %v40, %v42
    %v208 = vmul.f32 %v41, %v43
    %v209 = vmul.f32 %v40, 0.001028186
    %v210 = vmul.f32 %v41, 0.001028186
    %v211 = vmul.f32 %v40, 0.007597324
    %v212 = vmul.f32 %v41, 0.007597324
    %215 = vrot.lane.b32.xlu0 %v211, 127
    %v216 = vpop.permute.xlu0 %215
    %217 = vrot.lane.b32.xlu0 %v212, 127
    %v218 = vpop.permute.xlu0 %217
    %v221 = vadd.f32 %v209, %v216
    %v222 = vadd.f32 %v210, %v218
    %v223 = vmul.f32 %v40, 0.03599398
    %v224 = vmul.f32 %v41, 0.03599398
    %227 = vrot.lane.b32.xlu0 %v223, 126
    %v228 = vpop.permute.xlu0 %227
    %229 = vrot.lane.b32.xlu0 %v224, 126
    %v230 = vpop.permute.xlu0 %229
    %v233 = vadd.f32 %v221, %v228
    %v234 = vadd.f32 %v222, %v230
    %v235 = vmul.f32 %v40, 0.10934005
    %v236 = vmul.f32 %v41, 0.10934005
    %239 = vrot.lane.b32.xlu0 %v235, 125
    %v240 = vpop.permute.xlu0 %239
    %241 = vrot.lane.b32.xlu0 %v236, 125
    %v242 = vpop.permute.xlu0 %241
    %v245 = vadd.f32 %v233, %v240
    %v246 = vadd.f32 %v234, %v242
    %v247 = vmul.f32 %v40, 0.21296534
    %v248 = vmul.f32 %v41, 0.21296534
    %251 = vrot.lane.b32.xlu0 %v247, 124
    %v252 = vpop.permute.xlu0 %251
    %253 = vrot.lane.b32.xlu0 %v248, 124
    %v254 = vpop.permute.xlu0 %253
    %v257 = vadd.f32 %v245, %v252
    %v258 = vadd.f32 %v246, %v254
    %v259 = vmul.f32 %v40, 0.26596153
    %v260 = vmul.f32 %v41, 0.26596153
    %263 = vrot.lane.b32.xlu0 %v259, 123
    %v264 = vpop.permute.xlu0 %263
    %265 = vrot.lane.b32.xlu0 %v260, 123
    %v266 = vpop.permute.xlu0 %265
    %v269 = vadd.f32 %v257, %v264
    %v270 = vadd.f32 %v258, %v266
    %271 = vrot.lane.b32.xlu0 %v247, 122
    %v272 = vpop.permute.xlu0 %271
    %273 = vrot.lane.b32.xlu0 %v248, 122
    %v274 = vpop.permute.xlu0 %273
    %v277 = vadd.f32 %v269, %v272
    %v278 = vadd.f32 %v270, %v274
    %279 = vrot.lane.b32.xlu0 %v235, 121
    %v280 = vpop.permute.xlu0 %279
    %281 = vrot.lane.b32.xlu0 %v236, 121
    %v282 = vpop.permute.xlu0 %281
    %v285 = vadd.f32 %v277, %v280
    %v286 = vadd.f32 %v278, %v282
    %287 = vrot.lane.b32.xlu0 %v223, 120
    %v288 = vpop.permute.xlu0 %287
    %289 = vrot.lane.b32.xlu0 %v224, 120
    %v290 = vpop.permute.xlu0 %289
    %v293 = vadd.f32 %v285, %v288
    %v294 = vadd.f32 %v286, %v290
    %295 = vrot.lane.b32.xlu0 %v211, 119
    %v296 = vpop.permute.xlu0 %295
    %297 = vrot.lane.b32.xlu0 %v212, 119
    %v298 = vpop.permute.xlu0 %297
    %v301 = vadd.f32 %v293, %v296
    %v302 = vadd.f32 %v294, %v298
    %305 = vrot.lane.b32.xlu0 %v209, 118
    %v306 = vpop.permute.xlu0 %305
    %307 = vrot.lane.b32.xlu0 %v210, 118
    %v308 = vpop.permute.xlu0 %307
    %v311 = vadd.f32 %v301, %v306
    %v312 = vadd.f32 %v302, %v308
    %v313 = vmul.f32 %v311, 0.001028186
    %v314 = vmul.f32 %v311, 0.007597324
    %v316 = vrot.slane %v314, 1
    %v318 = vadd.f32 %v313, %v316
    %v319 = vmul.f32 %v311, 0.03599398
    %v321 = vrot.slane %v319, 2
    %v323 = vadd.f32 %v318, %v321
    %v324 = vmul.f32 %v311, 0.10934005
    %v325 = vmul.f32 %v312, 0.10934005
    %vm328 = vcmask 1044480
    %v329 = vrot.slane %v324, 3
    %v330 = vrot.slane %v325, 3
    %v331 = vsel %vm328, %v329, %v330
    %v333 = vadd.f32 %v323, %v331
    %v334 = vmul.f32 %v311, 0.21296534
    %v335 = vmul.f32 %v312, 0.21296534
    %vm338 = vcmask 1043456
    %v339 = vrot.slane %v334, 4
    %v340 = vrot.slane %v335, 4
    %v341 = vsel %vm338, %v339, %v340
    %v343 = vadd.f32 %v333, %v341
    %v344 = vmul.f32 %v311, 0.26596153
    %v345 = vmul.f32 %v312, 0.26596153
    %vm348 = vcmask 1042432
    %v349 = vrot.slane %v344, 5
    %v350 = vrot.slane %v345, 5
    %v351 = vsel %vm348, %v349, %v350
    %v353 = vadd.f32 %v343, %v351
    %v354 = vrot.slane %v334, 6
    %v355 = vrot.slane %v335, 6
    %v356 = vsel %vm97, %v354, %v355
    %v358 = vadd.f32 %v353, %v356
    %vm359 = vcmask 1040384
    %v360 = vrot.slane %v324, 7
    %v361 = vrot.slane %v325, 7
    %v362 = vsel %vm359, %v360, %v361
    %v364 = vadd.f32 %v358, %v362
    %v365 = vmul.f32 %v312, 0.03599398
    %v366 = vadd.f32 %v364, %v365
    %v367 = vmul.f32 %v312, 0.007597324
    %v369 = vrot.slane %v367, 1
    %v371 = vadd.f32 %v366, %v369
    %v372 = vmul.f32 %v312, 0.001028186
    %v374 = vrot.slane %v372, 2
    %v376 = vadd.f32 %v371, %v374
    %v377 = vmul.f32 %v42, 0.001028186
    %v378 = vmul.f32 %v43, 0.001028186
    %v379 = vmul.f32 %v42, 0.007597324
    %v380 = vmul.f32 %v43, 0.007597324
    %383 = vrot.lane.b32.xlu0 %v379, 127
    %v384 = vpop.permute.xlu0 %383
    %385 = vrot.lane.b32.xlu0 %v380, 127
    %v386 = vpop.permute.xlu0 %385
    %v389 = vadd.f32 %v377, %v384
    %v390 = vadd.f32 %v378, %v386
    %v391 = vmul.f32 %v42, 0.03599398
    %v392 = vmul.f32 %v43, 0.03599398
    %395 = vrot.lane.b32.xlu0 %v391, 126
    %v396 = vpop.permute.xlu0 %395
    %397 = vrot.lane.b32.xlu0 %v392, 126
    %v398 = vpop.permute.xlu0 %397
    %v401 = vadd.f32 %v389, %v396
    %v402 = vadd.f32 %v390, %v398
    %v403 = vmul.f32 %v42, 0.10934005
    %v404 = vmul.f32 %v43, 0.10934005
    %407 = vrot.lane.b32.xlu0 %v403, 125
    %v408 = vpop.permute.xlu0 %407
    %409 = vrot.lane.b32.xlu0 %v404, 125
    %v410 = vpop.permute.xlu0 %409
    %v413 = vadd.f32 %v401, %v408
    %v414 = vadd.f32 %v402, %v410
    %v415 = vmul.f32 %v42, 0.21296534
    %v416 = vmul.f32 %v43, 0.21296534
    %419 = vrot.lane.b32.xlu0 %v415, 124
    %v420 = vpop.permute.xlu0 %419
    %421 = vrot.lane.b32.xlu0 %v416, 124
    %v422 = vpop.permute.xlu0 %421
    %v425 = vadd.f32 %v413, %v420
    %v426 = vadd.f32 %v414, %v422
    %v427 = vmul.f32 %v42, 0.26596153
    %v428 = vmul.f32 %v43, 0.26596153
    %431 = vrot.lane.b32.xlu0 %v427, 123
    %v432 = vpop.permute.xlu0 %431
    %433 = vrot.lane.b32.xlu0 %v428, 123
    %v434 = vpop.permute.xlu0 %433
    %v437 = vadd.f32 %v425, %v432
    %v438 = vadd.f32 %v426, %v434
    %439 = vrot.lane.b32.xlu0 %v415, 122
    %v440 = vpop.permute.xlu0 %439
    %441 = vrot.lane.b32.xlu0 %v416, 122
    %v442 = vpop.permute.xlu0 %441
    %v445 = vadd.f32 %v437, %v440
    %v446 = vadd.f32 %v438, %v442
    %447 = vrot.lane.b32.xlu0 %v403, 121
    %v448 = vpop.permute.xlu0 %447
    %449 = vrot.lane.b32.xlu0 %v404, 121
    %v450 = vpop.permute.xlu0 %449
    %v453 = vadd.f32 %v445, %v448
    %v454 = vadd.f32 %v446, %v450
    %455 = vrot.lane.b32.xlu0 %v391, 120
    %v456 = vpop.permute.xlu0 %455
    %457 = vrot.lane.b32.xlu0 %v392, 120
    %v458 = vpop.permute.xlu0 %457
    %v461 = vadd.f32 %v453, %v456
    %v462 = vadd.f32 %v454, %v458
    %463 = vrot.lane.b32.xlu0 %v379, 119
    %v464 = vpop.permute.xlu0 %463
    %465 = vrot.lane.b32.xlu0 %v380, 119
    %v466 = vpop.permute.xlu0 %465
    %v469 = vadd.f32 %v461, %v464
    %v470 = vadd.f32 %v462, %v466
    %473 = vrot.lane.b32.xlu0 %v377, 118
    %v474 = vpop.permute.xlu0 %473
    %475 = vrot.lane.b32.xlu0 %v378, 118
    %v476 = vpop.permute.xlu0 %475
    %v479 = vadd.f32 %v469, %v474
    %v480 = vadd.f32 %v470, %v476
    %v481 = vmul.f32 %v479, 0.001028186
    %v482 = vmul.f32 %v479, 0.007597324
    %v484 = vrot.slane %v482, 1
    %v486 = vadd.f32 %v481, %v484
    %v487 = vmul.f32 %v479, 0.03599398
    %v489 = vrot.slane %v487, 2
    %v491 = vadd.f32 %v486, %v489
    %v492 = vmul.f32 %v479, 0.10934005
    %v493 = vmul.f32 %v480, 0.10934005
    %v496 = vrot.slane %v492, 3
    %v497 = vrot.slane %v493, 3
    %v498 = vsel %vm328, %v496, %v497
    %v500 = vadd.f32 %v491, %v498
    %v501 = vmul.f32 %v479, 0.21296534
    %v502 = vmul.f32 %v480, 0.21296534
    %v505 = vrot.slane %v501, 4
    %v506 = vrot.slane %v502, 4
    %v507 = vsel %vm338, %v505, %v506
    %v509 = vadd.f32 %v500, %v507
    %v510 = vmul.f32 %v479, 0.26596153
    %v511 = vmul.f32 %v480, 0.26596153
    %v514 = vrot.slane %v510, 5
    %v515 = vrot.slane %v511, 5
    %v516 = vsel %vm348, %v514, %v515
    %v518 = vadd.f32 %v509, %v516
    %v519 = vrot.slane %v501, 6
    %v520 = vrot.slane %v502, 6
    %v521 = vsel %vm97, %v519, %v520
    %v523 = vadd.f32 %v518, %v521
    %v524 = vrot.slane %v492, 7
    %v525 = vrot.slane %v493, 7
    %v526 = vsel %vm359, %v524, %v525
    %v528 = vadd.f32 %v523, %v526
    %v529 = vmul.f32 %v480, 0.03599398
    %v530 = vadd.f32 %v528, %v529
    %v531 = vmul.f32 %v480, 0.007597324
    %v533 = vrot.slane %v531, 1
    %v535 = vadd.f32 %v530, %v533
    %v536 = vmul.f32 %v480, 0.001028186
    %v538 = vrot.slane %v536, 2
    %v540 = vadd.f32 %v535, %v538
    %v541 = vmul.f32 %v203, 0.001028186
    %v542 = vmul.f32 %v204, 0.001028186
    %v543 = vmul.f32 %v203, 0.007597324
    %v544 = vmul.f32 %v204, 0.007597324
    %547 = vrot.lane.b32.xlu0 %v543, 127
    %v548 = vpop.permute.xlu0 %547
    %549 = vrot.lane.b32.xlu0 %v544, 127
    %v550 = vpop.permute.xlu0 %549
    %v553 = vadd.f32 %v541, %v548
    %v554 = vadd.f32 %v542, %v550
    %v555 = vmul.f32 %v203, 0.03599398
    %v556 = vmul.f32 %v204, 0.03599398
    %559 = vrot.lane.b32.xlu0 %v555, 126
    %v560 = vpop.permute.xlu0 %559
    %561 = vrot.lane.b32.xlu0 %v556, 126
    %v562 = vpop.permute.xlu0 %561
    %v565 = vadd.f32 %v553, %v560
    %v566 = vadd.f32 %v554, %v562
    %v567 = vmul.f32 %v203, 0.10934005
    %v568 = vmul.f32 %v204, 0.10934005
    %571 = vrot.lane.b32.xlu0 %v567, 125
    %v572 = vpop.permute.xlu0 %571
    %573 = vrot.lane.b32.xlu0 %v568, 125
    %v574 = vpop.permute.xlu0 %573
    %v577 = vadd.f32 %v565, %v572
    %v578 = vadd.f32 %v566, %v574
    %v579 = vmul.f32 %v203, 0.21296534
    %v580 = vmul.f32 %v204, 0.21296534
    %583 = vrot.lane.b32.xlu0 %v579, 124
    %v584 = vpop.permute.xlu0 %583
    %585 = vrot.lane.b32.xlu0 %v580, 124
    %v586 = vpop.permute.xlu0 %585
    %v589 = vadd.f32 %v577, %v584
    %v590 = vadd.f32 %v578, %v586
    %v591 = vmul.f32 %v203, 0.26596153
    %v592 = vmul.f32 %v204, 0.26596153
    %595 = vrot.lane.b32.xlu0 %v591, 123
    %v596 = vpop.permute.xlu0 %595
    %597 = vrot.lane.b32.xlu0 %v592, 123
    %v598 = vpop.permute.xlu0 %597
    %v601 = vadd.f32 %v589, %v596
    %v602 = vadd.f32 %v590, %v598
    %603 = vrot.lane.b32.xlu0 %v579, 122
    %v604 = vpop.permute.xlu0 %603
    %605 = vrot.lane.b32.xlu0 %v580, 122
    %v606 = vpop.permute.xlu0 %605
    %v609 = vadd.f32 %v601, %v604
    %v610 = vadd.f32 %v602, %v606
    %611 = vrot.lane.b32.xlu0 %v567, 121
    %v612 = vpop.permute.xlu0 %611
    %613 = vrot.lane.b32.xlu0 %v568, 121
    %v614 = vpop.permute.xlu0 %613
    %v617 = vadd.f32 %v609, %v612
    %v618 = vadd.f32 %v610, %v614
    %619 = vrot.lane.b32.xlu0 %v555, 120
    %v620 = vpop.permute.xlu0 %619
    %621 = vrot.lane.b32.xlu0 %v556, 120
    %v622 = vpop.permute.xlu0 %621
    %v625 = vadd.f32 %v617, %v620
    %v626 = vadd.f32 %v618, %v622
    %627 = vrot.lane.b32.xlu0 %v543, 119
    %v628 = vpop.permute.xlu0 %627
    %629 = vrot.lane.b32.xlu0 %v544, 119
    %v630 = vpop.permute.xlu0 %629
    %v633 = vadd.f32 %v625, %v628
    %v634 = vadd.f32 %v626, %v630
    %637 = vrot.lane.b32.xlu0 %v541, 118
    %v638 = vpop.permute.xlu0 %637
    %639 = vrot.lane.b32.xlu0 %v542, 118
    %v640 = vpop.permute.xlu0 %639
    %v643 = vadd.f32 %v633, %v638
    %v644 = vadd.f32 %v634, %v640
    %v645 = vmul.f32 %v643, 0.001028186
    %v646 = vmul.f32 %v643, 0.007597324
    %v648 = vrot.slane %v646, 1
    %v650 = vadd.f32 %v645, %v648
    %v651 = vmul.f32 %v643, 0.03599398
    %v653 = vrot.slane %v651, 2
    %v655 = vadd.f32 %v650, %v653
    %v656 = vmul.f32 %v643, 0.10934005
    %v657 = vmul.f32 %v644, 0.10934005
    %v660 = vrot.slane %v656, 3
    %v661 = vrot.slane %v657, 3
    %v662 = vsel %vm328, %v660, %v661
    %v664 = vadd.f32 %v655, %v662
    %v665 = vmul.f32 %v643, 0.21296534
    %v666 = vmul.f32 %v644, 0.21296534
    %v669 = vrot.slane %v665, 4
    %v670 = vrot.slane %v666, 4
    %v671 = vsel %vm338, %v669, %v670
    %v673 = vadd.f32 %v664, %v671
    %v674 = vmul.f32 %v643, 0.26596153
    %v675 = vmul.f32 %v644, 0.26596153
    %v678 = vrot.slane %v674, 5
    %v679 = vrot.slane %v675, 5
    %v680 = vsel %vm348, %v678, %v679
    %v682 = vadd.f32 %v673, %v680
    %v683 = vrot.slane %v665, 6
    %v684 = vrot.slane %v666, 6
    %v685 = vsel %vm97, %v683, %v684
    %v687 = vadd.f32 %v682, %v685
    %v688 = vrot.slane %v656, 7
    %v689 = vrot.slane %v657, 7
    %v690 = vsel %vm359, %v688, %v689
    %v692 = vadd.f32 %v687, %v690
    %v693 = vmul.f32 %v644, 0.03599398
    %v694 = vadd.f32 %v692, %v693
    %v695 = vmul.f32 %v644, 0.007597324
    %v697 = vrot.slane %v695, 1
    %v699 = vadd.f32 %v694, %v697
    %v700 = vmul.f32 %v644, 0.001028186
    %v702 = vrot.slane %v700, 2
    %v704 = vadd.f32 %v699, %v702
    %v705 = vmul.f32 %v205, 0.001028186
    %v706 = vmul.f32 %v206, 0.001028186
    %v707 = vmul.f32 %v205, 0.007597324
    %v708 = vmul.f32 %v206, 0.007597324
    %711 = vrot.lane.b32.xlu0 %v707, 127
    %v712 = vpop.permute.xlu0 %711
    %713 = vrot.lane.b32.xlu0 %v708, 127
    %v714 = vpop.permute.xlu0 %713
    %v717 = vadd.f32 %v705, %v712
    %v718 = vadd.f32 %v706, %v714
    %v719 = vmul.f32 %v205, 0.03599398
    %v720 = vmul.f32 %v206, 0.03599398
    %723 = vrot.lane.b32.xlu0 %v719, 126
    %v724 = vpop.permute.xlu0 %723
    %725 = vrot.lane.b32.xlu0 %v720, 126
    %v726 = vpop.permute.xlu0 %725
    %v729 = vadd.f32 %v717, %v724
    %v730 = vadd.f32 %v718, %v726
    %v731 = vmul.f32 %v205, 0.10934005
    %v732 = vmul.f32 %v206, 0.10934005
    %735 = vrot.lane.b32.xlu0 %v731, 125
    %v736 = vpop.permute.xlu0 %735
    %737 = vrot.lane.b32.xlu0 %v732, 125
    %v738 = vpop.permute.xlu0 %737
    %v741 = vadd.f32 %v729, %v736
    %v742 = vadd.f32 %v730, %v738
    %v743 = vmul.f32 %v205, 0.21296534
    %v744 = vmul.f32 %v206, 0.21296534
    %747 = vrot.lane.b32.xlu0 %v743, 124
    %v748 = vpop.permute.xlu0 %747
    %749 = vrot.lane.b32.xlu0 %v744, 124
    %v750 = vpop.permute.xlu0 %749
    %v753 = vadd.f32 %v741, %v748
    %v754 = vadd.f32 %v742, %v750
    %v755 = vmul.f32 %v205, 0.26596153
    %v756 = vmul.f32 %v206, 0.26596153
    %759 = vrot.lane.b32.xlu0 %v755, 123
    %v760 = vpop.permute.xlu0 %759
    %761 = vrot.lane.b32.xlu0 %v756, 123
    %v762 = vpop.permute.xlu0 %761
    %v765 = vadd.f32 %v753, %v760
    %v766 = vadd.f32 %v754, %v762
    %767 = vrot.lane.b32.xlu0 %v743, 122
    %v768 = vpop.permute.xlu0 %767
    %769 = vrot.lane.b32.xlu0 %v744, 122
    %v770 = vpop.permute.xlu0 %769
    %v773 = vadd.f32 %v765, %v768
    %v774 = vadd.f32 %v766, %v770
    %775 = vrot.lane.b32.xlu0 %v731, 121
    %v776 = vpop.permute.xlu0 %775
    %777 = vrot.lane.b32.xlu0 %v732, 121
    %v778 = vpop.permute.xlu0 %777
    %v781 = vadd.f32 %v773, %v776
    %v782 = vadd.f32 %v774, %v778
    %783 = vrot.lane.b32.xlu0 %v719, 120
    %v784 = vpop.permute.xlu0 %783
    %785 = vrot.lane.b32.xlu0 %v720, 120
    %v786 = vpop.permute.xlu0 %785
    %v789 = vadd.f32 %v781, %v784
    %v790 = vadd.f32 %v782, %v786
    %791 = vrot.lane.b32.xlu0 %v707, 119
    %v792 = vpop.permute.xlu0 %791
    %793 = vrot.lane.b32.xlu0 %v708, 119
    %v794 = vpop.permute.xlu0 %793
    %v797 = vadd.f32 %v789, %v792
    %v798 = vadd.f32 %v790, %v794
    %801 = vrot.lane.b32.xlu0 %v705, 118
    %v802 = vpop.permute.xlu0 %801
    %803 = vrot.lane.b32.xlu0 %v706, 118
    %v804 = vpop.permute.xlu0 %803
    %v807 = vadd.f32 %v797, %v802
    %v808 = vadd.f32 %v798, %v804
    %v809 = vmul.f32 %v807, 0.001028186
    %v810 = vmul.f32 %v807, 0.007597324
    %v812 = vrot.slane %v810, 1
    %v814 = vadd.f32 %v809, %v812
    %v815 = vmul.f32 %v807, 0.03599398
    %v817 = vrot.slane %v815, 2
    %v819 = vadd.f32 %v814, %v817
    %v820 = vmul.f32 %v807, 0.10934005
    %v821 = vmul.f32 %v808, 0.10934005
    %v824 = vrot.slane %v820, 3
    %v825 = vrot.slane %v821, 3
    %v826 = vsel %vm328, %v824, %v825
    %v828 = vadd.f32 %v819, %v826
    %v829 = vmul.f32 %v807, 0.21296534
    %v830 = vmul.f32 %v808, 0.21296534
    %v833 = vrot.slane %v829, 4
    %v834 = vrot.slane %v830, 4
    %v835 = vsel %vm338, %v833, %v834
    %v837 = vadd.f32 %v828, %v835
    %v838 = vmul.f32 %v807, 0.26596153
    %v839 = vmul.f32 %v808, 0.26596153
    %v842 = vrot.slane %v838, 5
    %v843 = vrot.slane %v839, 5
    %v844 = vsel %vm348, %v842, %v843
    %v846 = vadd.f32 %v837, %v844
    %v847 = vrot.slane %v829, 6
    %v848 = vrot.slane %v830, 6
    %v849 = vsel %vm97, %v847, %v848
    %v851 = vadd.f32 %v846, %v849
    %v852 = vrot.slane %v820, 7
    %v853 = vrot.slane %v821, 7
    %v854 = vsel %vm359, %v852, %v853
    %v856 = vadd.f32 %v851, %v854
    %v857 = vmul.f32 %v808, 0.03599398
    %v858 = vadd.f32 %v856, %v857
    %v859 = vmul.f32 %v808, 0.007597324
    %v861 = vrot.slane %v859, 1
    %v863 = vadd.f32 %v858, %v861
    %v864 = vmul.f32 %v808, 0.001028186
    %v866 = vrot.slane %v864, 2
    %v868 = vadd.f32 %v863, %v866
    %v869 = vmul.f32 %v207, 0.001028186
    %v870 = vmul.f32 %v208, 0.001028186
    %v871 = vmul.f32 %v207, 0.007597324
    %v872 = vmul.f32 %v208, 0.007597324
    %875 = vrot.lane.b32.xlu0 %v871, 127
    %v876 = vpop.permute.xlu0 %875
    %877 = vrot.lane.b32.xlu0 %v872, 127
    %v878 = vpop.permute.xlu0 %877
    %v881 = vadd.f32 %v869, %v876
    %v882 = vadd.f32 %v870, %v878
    %v883 = vmul.f32 %v207, 0.03599398
    %v884 = vmul.f32 %v208, 0.03599398
    %887 = vrot.lane.b32.xlu0 %v883, 126
    %v888 = vpop.permute.xlu0 %887
    %889 = vrot.lane.b32.xlu0 %v884, 126
    %v890 = vpop.permute.xlu0 %889
    %v893 = vadd.f32 %v881, %v888
    %v894 = vadd.f32 %v882, %v890
    %v895 = vmul.f32 %v207, 0.10934005
    %v896 = vmul.f32 %v208, 0.10934005
    %899 = vrot.lane.b32.xlu0 %v895, 125
    %v900 = vpop.permute.xlu0 %899
    %901 = vrot.lane.b32.xlu0 %v896, 125
    %v902 = vpop.permute.xlu0 %901
    %v905 = vadd.f32 %v893, %v900
    %v906 = vadd.f32 %v894, %v902
    %v907 = vmul.f32 %v207, 0.21296534
    %v908 = vmul.f32 %v208, 0.21296534
    %911 = vrot.lane.b32.xlu0 %v907, 124
    %v912 = vpop.permute.xlu0 %911
    %913 = vrot.lane.b32.xlu0 %v908, 124
    %v914 = vpop.permute.xlu0 %913
    %v917 = vadd.f32 %v905, %v912
    %v918 = vadd.f32 %v906, %v914
    %v919 = vmul.f32 %v207, 0.26596153
    %v920 = vmul.f32 %v208, 0.26596153
    %923 = vrot.lane.b32.xlu0 %v919, 123
    %v924 = vpop.permute.xlu0 %923
    %925 = vrot.lane.b32.xlu0 %v920, 123
    %v926 = vpop.permute.xlu0 %925
    %v929 = vadd.f32 %v917, %v924
    %v930 = vadd.f32 %v918, %v926
    %931 = vrot.lane.b32.xlu0 %v907, 122
    %v932 = vpop.permute.xlu0 %931
    %933 = vrot.lane.b32.xlu0 %v908, 122
    %v934 = vpop.permute.xlu0 %933
    %v937 = vadd.f32 %v929, %v932
    %v938 = vadd.f32 %v930, %v934
    %939 = vrot.lane.b32.xlu0 %v895, 121
    %v940 = vpop.permute.xlu0 %939
    %941 = vrot.lane.b32.xlu0 %v896, 121
    %v942 = vpop.permute.xlu0 %941
    %v945 = vadd.f32 %v937, %v940
    %v946 = vadd.f32 %v938, %v942
    %947 = vrot.lane.b32.xlu0 %v883, 120
    %v948 = vpop.permute.xlu0 %947
    %949 = vrot.lane.b32.xlu0 %v884, 120
    %v950 = vpop.permute.xlu0 %949
    %v953 = vadd.f32 %v945, %v948
    %v954 = vadd.f32 %v946, %v950
    %955 = vrot.lane.b32.xlu0 %v871, 119
    %v956 = vpop.permute.xlu0 %955
    %957 = vrot.lane.b32.xlu0 %v872, 119
    %v958 = vpop.permute.xlu0 %957
    %v961 = vadd.f32 %v953, %v956
    %v962 = vadd.f32 %v954, %v958
    %965 = vrot.lane.b32.xlu0 %v869, 118
    %v966 = vpop.permute.xlu0 %965
    %967 = vrot.lane.b32.xlu0 %v870, 118
    %v968 = vpop.permute.xlu0 %967
    %v971 = vadd.f32 %v961, %v966
    %v972 = vadd.f32 %v962, %v968
    %v973 = vmul.f32 %v971, 0.001028186
    %v974 = vmul.f32 %v971, 0.007597324
    %v976 = vrot.slane %v974, 1
    %v978 = vadd.f32 %v973, %v976
    %v979 = vmul.f32 %v971, 0.03599398
    %v981 = vrot.slane %v979, 2
    %v983 = vadd.f32 %v978, %v981
    %v984 = vmul.f32 %v971, 0.10934005
    %v985 = vmul.f32 %v972, 0.10934005
    %v988 = vrot.slane %v984, 3
    %v989 = vrot.slane %v985, 3
    %v990 = vsel %vm328, %v988, %v989
    %v992 = vadd.f32 %v983, %v990
    %v993 = vmul.f32 %v971, 0.21296534
    %v994 = vmul.f32 %v972, 0.21296534
    %v997 = vrot.slane %v993, 4
    %v998 = vrot.slane %v994, 4
    %v999 = vsel %vm338, %v997, %v998
    %v1001 = vadd.f32 %v992, %v999
    %v1002 = vmul.f32 %v971, 0.26596153
    %v1003 = vmul.f32 %v972, 0.26596153
    %v1006 = vrot.slane %v1002, 5
    %v1007 = vrot.slane %v1003, 5
    %v1008 = vsel %vm348, %v1006, %v1007
    %v1010 = vadd.f32 %v1001, %v1008
    %v1011 = vrot.slane %v993, 6
    %v1012 = vrot.slane %v994, 6
    %v1013 = vsel %vm97, %v1011, %v1012
    %v1015 = vadd.f32 %v1010, %v1013
    %v1016 = vrot.slane %v984, 7
    %v1017 = vrot.slane %v985, 7
    %v1018 = vsel %vm359, %v1016, %v1017
    %v1020 = vadd.f32 %v1015, %v1018
    %v1021 = vmul.f32 %v972, 0.03599398
    %v1022 = vadd.f32 %v1020, %v1021
    %v1023 = vmul.f32 %v972, 0.007597324
    %v1025 = vrot.slane %v1023, 1
    %v1027 = vadd.f32 %v1022, %v1025
    %v1028 = vmul.f32 %v972, 0.001028186
    %v1030 = vrot.slane %v1028, 2
    %v1032 = vadd.f32 %v1027, %v1030
    %v1033 = vmul.f32 %v376, %v376
    %v1034 = vsub.f32 %v704, %v1033
    %v1035 = vmul.f32 %v540, %v540
    %v1036 = vsub.f32 %v868, %v1035
    %v1037 = vmul.f32 %v376, %v540
    %v1038 = vsub.f32 %v1032, %v1037
    %v1039 = vmul.f32 %v376, 2.0
    %v1040 = vmul.f32 %v1039, %v540
    %v1041 = vadd.f32 %v1040, 98.01
    %v1042 = vmul.f32 %v1038, 2.0
    %v1043 = vadd.f32 %v1042, 882.09
    %v1044 = vmul.f32 %v1041, %v1043
    %v1045 = vadd.f32 %v1033, %v1035
    %v1046 = vadd.f32 %v1045, 98.01
    %v1047 = vadd.f32 %v1034, %v1036
    %v1048 = vadd.f32 %v1047, 882.09
    %v1049 = vmul.f32 %v1046, %v1048
    %v1050 = vrcp.pop %v1049
    %v1051 = vmul.f32 %v1049, %v1050
    %v1052 = vsub.f32 2.0, %v1051
    %v1053 = vmul.f32 %v1050, %v1052
    %v1054 = vmul.f32 %v1044, %v1053
    %vm1055 = vcmask 46080
    %v1056 = vsel %vm1055, %v1054, 0.0
    %1057 = vadd.xlane.f32.xlu0 %v1056
    %v1058 = vpop.xlane.xlu0 %1057
    %v1059 = vrot.slane %v1058, 4
    %v1060 = vadd.f32 %v1058, %v1059
    %v1061 = vrot.slane %v1060, 2
    %v1062 = vadd.f32 %v1060, %v1061
    %v1063 = vrot.slane %v1062, 1
    %v1064 = vadd.f32 %v1062, %v1063
    %s1065 = vtos %v1064
    %v1066 = vstv %s1065
    %v1067 = vadd.f32 %v1066, 0.0
    %s1068 = scalar_lea.vmem [#allocation2], 16
    %v1069 = vld [vmem:[%s1068] sm:$0xff]
    %v1070 = vld [vmem:[%s1068 + $0x8] sm:$0xff]
    %s1071 = scalar_lea.vmem [#allocation5], 16
    %v1072 = vld [vmem:[%s1071] sm:$0xff]
    %v1073 = vld [vmem:[%s1071 + $0x8] sm:$0xff]
    %v1074 = vsub.f32 %v1069, %v1072
    %v1075 = vsub.f32 %v1070, %v1073
    %v1076 = vand.u32 2147483647, %v1074
    %v1077 = vand.u32 2147483647, %v1075
    %v1078 = vsel %vm48, %v1076, 0.0
    %v1079 = vsel %vm48, %v1077, 0.0
    %v1080 = vadd.f32 %v1078, %v1079
    %1081 = vadd.xlane.f32.xlu0 %v1080
    %v1082 = vpop.xlane.xlu0 %1081
    %v1083 = vrot.slane %v1082, 4
    %v1084 = vadd.f32 %v1082, %v1083
    %v1085 = vrot.slane %v1084, 2
    %v1086 = vadd.f32 %v1084, %v1085
    %v1087 = vrot.slane %v1086, 1
    %v1088 = vadd.f32 %v1086, %v1087
    %s1089 = vtos %v1088
    %v1090 = vstv %s1089
    %v1091 = vadd.f32 %v62, %v1090
    %1094 = vrot.lane.b32.xlu0 %v1074, 2
    %v1095 = vpop.permute.xlu0 %1094
    %1096 = vrot.lane.b32.xlu0 %v1075, 2
    %v1097 = vpop.permute.xlu0 %1096
    %v1100 = vsub.f32 %v1074, %v1095
    %v1101 = vsub.f32 %v1075, %v1097
    %v1102 = vand.u32 2147483647, %v1100
    %v1103 = vand.u32 2147483647, %v1101
    %1106 = vrot.lane.b32.xlu0 %v1102, 126
    %v1107 = vpop.permute.xlu0 %1106
    %1108 = vrot.lane.b32.xlu0 %v1103, 126
    %v1109 = vpop.permute.xlu0 %1108
    %v1112 = vsel %vm83, %v1107, 0.0
    %v1113 = vsel %vm83, %v1109, 0.0
    %v1114 = vadd.f32 %v1112, %v1113
    %1115 = vadd.xlane.f32.xlu0 %v1114
    %v1116 = vpop.xlane.xlu0 %1115
    %v1117 = vrot.slane %v1116, 4
    %v1118 = vadd.f32 %v1116, %v1117
    %v1119 = vrot.slane %v1118, 2
    %v1120 = vadd.f32 %v1118, %v1119
    %v1121 = vrot.slane %v1120, 1
    %v1122 = vadd.f32 %v1120, %v1121
    %s1123 = vtos %v1122
    %v1124 = vstv %s1123
    %v1125 = vrot.slane %v1074, 6
    %v1126 = vrot.slane %v1075, 6
    %v1127 = vsel %vm97, %v1125, %v1126
    %v1130 = vsub.f32 %v1074, %v1125
    %v1131 = vsub.f32 %v1075, %v1127
    %v1132 = vand.u32 2147483647, %v1130
    %v1133 = vand.u32 2147483647, %v1131
    %v1136 = vrot.slane %v1132, 2
    %v1137 = vrot.slane %v1133, 2
    %v1138 = vsel %vm109, %v1136, %v1137
    %v1141 = vsel %vm48, %v1138, 0.0
    %v1142 = vsel %vm116, %v1137, 0.0
    %v1143 = vadd.f32 %v1141, %v1142
    %1144 = vadd.xlane.f32.xlu0 %v1143
    %v1145 = vpop.xlane.xlu0 %1144
    %v1146 = vrot.slane %v1145, 4
    %v1147 = vadd.f32 %v1145, %v1146
    %v1148 = vrot.slane %v1147, 2
    %v1149 = vadd.f32 %v1147, %v1148
    %v1150 = vrot.slane %v1149, 1
    %v1151 = vadd.f32 %v1149, %v1150
    %s1152 = vtos %v1151
    %v1153 = vstv %s1152
    %v1154 = vadd.f32 %v1124, %v1153
    %1157 = vrot.lane.b32.xlu0 %v1076, 127
    %v1158 = vpop.permute.xlu0 %1157
    %1159 = vrot.lane.b32.xlu0 %v1077, 127
    %v1160 = vpop.permute.xlu0 %1159
    %v1163 = vsel %vm138, %v1158, 0.0
    %v1164 = vsel %vm138, %v1160, 0.0
    %v1165 = vadd.f32 %v1163, %v1164
    %1166 = vadd.xlane.f32.xlu0 %v1165
    %v1167 = vpop.xlane.xlu0 %1166
    %v1168 = vrot.slane %v1167, 4
    %v1169 = vadd.f32 %v1167, %v1168
    %v1170 = vrot.slane %v1169, 2
    %v1171 = vadd.f32 %v1169, %v1170
    %v1172 = vrot.slane %v1171, 1
    %v1173 = vadd.f32 %v1171, %v1172
    %s1174 = vtos %v1173
    %v1175 = vstv %s1174
    %v1176 = vadd.f32 %v1154, %v1175
    %1177 = vrot.lane.b32.xlu0 %v1076, 114
    %v1178 = vpop.permute.xlu0 %1177
    %1179 = vrot.lane.b32.xlu0 %v1077, 114
    %v1180 = vpop.permute.xlu0 %1179
    %v1183 = vsel %vm138, %v1178, 0.0
    %v1184 = vsel %vm138, %v1180, 0.0
    %v1185 = vadd.f32 %v1183, %v1184
    %1186 = vadd.xlane.f32.xlu0 %v1185
    %v1187 = vpop.xlane.xlu0 %1186
    %v1188 = vrot.slane %v1187, 4
    %v1189 = vadd.f32 %v1187, %v1188
    %v1190 = vrot.slane %v1189, 2
    %v1191 = vadd.f32 %v1189, %v1190
    %v1192 = vrot.slane %v1191, 1
    %v1193 = vadd.f32 %v1191, %v1192
    %s1194 = vtos %v1193
    %v1195 = vstv %s1194
    %v1196 = vadd.f32 %v1176, %v1195
    %v1197 = vrot.slane %v1076, 1
    %v1199 = vsel %vm175, %v1197, 0.0
    %1200 = vadd.xlane.f32.xlu0 %v1199
    %v1201 = vpop.xlane.xlu0 %1200
    %v1202 = vrot.slane %v1201, 4
    %v1203 = vadd.f32 %v1201, %v1202
    %v1204 = vrot.slane %v1203, 2
    %v1205 = vadd.f32 %v1203, %v1204
    %v1206 = vrot.slane %v1205, 1
    %v1207 = vadd.f32 %v1205, %v1206
    %s1208 = vtos %v1207
    %v1209 = vstv %s1208
    %v1210 = vadd.f32 %v1196, %v1209
    %v1211 = vrot.slane %v1077, 6
    %v1213 = vsel %vm175, %v1211, 0.0
    %1214 = vadd.xlane.f32.xlu0 %v1213
    %v1215 = vpop.xlane.xlu0 %1214
    %v1216 = vrot.slane %v1215, 4
    %v1217 = vadd.f32 %v1215, %v1216
    %v1218 = vrot.slane %v1217, 2
    %v1219 = vadd.f32 %v1217, %v1218
    %v1220 = vrot.slane %v1219, 1
    %v1221 = vadd.f32 %v1219, %v1220
    %s1222 = vtos %v1221
    %v1223 = vstv %s1222
    %v1224 = vadd.f32 %v1210, %v1223
    %v1225 = vadd.f32 %v202, %v1224
    %v1226 = vmul.f32 %v1069, %v1069
    %v1227 = vmul.f32 %v1070, %v1070
    %v1228 = vmul.f32 %v1072, %v1072
    %v1229 = vmul.f32 %v1073, %v1073
    %v1230 = vmul.f32 %v1069, %v1072
    %v1231 = vmul.f32 %v1070, %v1073
    %v1232 = vmul.f32 %v1069, 0.001028186
    %v1233 = vmul.f32 %v1070, 0.001028186
    %v1234 = vmul.f32 %v1069, 0.007597324
    %v1235 = vmul.f32 %v1070, 0.007597324
    %1238 = vrot.lane.b32.xlu0 %v1234, 127
    %v1239 = vpop.permute.xlu0 %1238
    %1240 = vrot.lane.b32.xlu0 %v1235, 127
    %v1241 = vpop.permute.xlu0 %1240
    %v1244 = vadd.f32 %v1232, %v1239
    %v1245 = vadd.f32 %v1233, %v1241
    %v1246 = vmul.f32 %v1069, 0.03599398
    %v1247 = vmul.f32 %v1070, 0.03599398
    %1250 = vrot.lane.b32.xlu0 %v1246, 126
    %v1251 = vpop.permute.xlu0 %1250
    %1252 = vrot.lane.b32.xlu0 %v1247, 126
    %v1253 = vpop.permute.xlu0 %1252
    %v1256 = vadd.f32 %v1244, %v1251
    %v1257 = vadd.f32 %v1245, %v1253
    %v1258 = vmul.f32 %v1069, 0.10934005
    %v1259 = vmul.f32 %v1070, 0.10934005
    %1262 = vrot.lane.b32.xlu0 %v1258, 125
    %v1263 = vpop.permute.xlu0 %1262
    %1264 = vrot.lane.b32.xlu0 %v1259, 125
    %v1265 = vpop.permute.xlu0 %1264
    %v1268 = vadd.f32 %v1256, %v1263
    %v1269 = vadd.f32 %v1257, %v1265
    %v1270 = vmul.f32 %v1069, 0.21296534
    %v1271 = vmul.f32 %v1070, 0.21296534
    %1274 = vrot.lane.b32.xlu0 %v1270, 124
    %v1275 = vpop.permute.xlu0 %1274
    %1276 = vrot.lane.b32.xlu0 %v1271, 124
    %v1277 = vpop.permute.xlu0 %1276
    %v1280 = vadd.f32 %v1268, %v1275
    %v1281 = vadd.f32 %v1269, %v1277
    %v1282 = vmul.f32 %v1069, 0.26596153
    %v1283 = vmul.f32 %v1070, 0.26596153
    %1286 = vrot.lane.b32.xlu0 %v1282, 123
    %v1287 = vpop.permute.xlu0 %1286
    %1288 = vrot.lane.b32.xlu0 %v1283, 123
    %v1289 = vpop.permute.xlu0 %1288
    %v1292 = vadd.f32 %v1280, %v1287
    %v1293 = vadd.f32 %v1281, %v1289
    %1294 = vrot.lane.b32.xlu0 %v1270, 122
    %v1295 = vpop.permute.xlu0 %1294
    %1296 = vrot.lane.b32.xlu0 %v1271, 122
    %v1297 = vpop.permute.xlu0 %1296
    %v1300 = vadd.f32 %v1292, %v1295
    %v1301 = vadd.f32 %v1293, %v1297
    %1302 = vrot.lane.b32.xlu0 %v1258, 121
    %v1303 = vpop.permute.xlu0 %1302
    %1304 = vrot.lane.b32.xlu0 %v1259, 121
    %v1305 = vpop.permute.xlu0 %1304
    %v1308 = vadd.f32 %v1300, %v1303
    %v1309 = vadd.f32 %v1301, %v1305
    %1310 = vrot.lane.b32.xlu0 %v1246, 120
    %v1311 = vpop.permute.xlu0 %1310
    %1312 = vrot.lane.b32.xlu0 %v1247, 120
    %v1313 = vpop.permute.xlu0 %1312
    %v1316 = vadd.f32 %v1308, %v1311
    %v1317 = vadd.f32 %v1309, %v1313
    %1318 = vrot.lane.b32.xlu0 %v1234, 119
    %v1319 = vpop.permute.xlu0 %1318
    %1320 = vrot.lane.b32.xlu0 %v1235, 119
    %v1321 = vpop.permute.xlu0 %1320
    %v1324 = vadd.f32 %v1316, %v1319
    %v1325 = vadd.f32 %v1317, %v1321
    %1328 = vrot.lane.b32.xlu0 %v1232, 118
    %v1329 = vpop.permute.xlu0 %1328
    %1330 = vrot.lane.b32.xlu0 %v1233, 118
    %v1331 = vpop.permute.xlu0 %1330
    %v1334 = vadd.f32 %v1324, %v1329
    %v1335 = vadd.f32 %v1325, %v1331
    %v1336 = vmul.f32 %v1334, 0.001028186
    %v1337 = vmul.f32 %v1334, 0.007597324
    %v1339 = vrot.slane %v1337, 1
    %v1341 = vadd.f32 %v1336, %v1339
    %v1342 = vmul.f32 %v1334, 0.03599398
    %v1344 = vrot.slane %v1342, 2
    %v1346 = vadd.f32 %v1341, %v1344
    %v1347 = vmul.f32 %v1334, 0.10934005
    %v1348 = vmul.f32 %v1335, 0.10934005
    %v1351 = vrot.slane %v1347, 3
    %v1352 = vrot.slane %v1348, 3
    %v1353 = vsel %vm328, %v1351, %v1352
    %v1355 = vadd.f32 %v1346, %v1353
    %v1356 = vmul.f32 %v1334, 0.21296534
    %v1357 = vmul.f32 %v1335, 0.21296534
    %v1360 = vrot.slane %v1356, 4
    %v1361 = vrot.slane %v1357, 4
    %v1362 = vsel %vm338, %v1360, %v1361
    %v1364 = vadd.f32 %v1355, %v1362
    %v1365 = vmul.f32 %v1334, 0.26596153
    %v1366 = vmul.f32 %v1335, 0.26596153
    %v1369 = vrot.slane %v1365, 5
    %v1370 = vrot.slane %v1366, 5
    %v1371 = vsel %vm348, %v1369, %v1370
    %v1373 = vadd.f32 %v1364, %v1371
    %v1374 = vrot.slane %v1356, 6
    %v1375 = vrot.slane %v1357, 6
    %v1376 = vsel %vm97, %v1374, %v1375
    %v1378 = vadd.f32 %v1373, %v1376
    %v1379 = vrot.slane %v1347, 7
    %v1380 = vrot.slane %v1348, 7
    %v1381 = vsel %vm359, %v1379, %v1380
    %v1383 = vadd.f32 %v1378, %v1381
    %v1384 = vmul.f32 %v1335, 0.03599398
    %v1385 = vadd.f32 %v1383, %v1384
    %v1386 = vmul.f32 %v1335, 0.007597324
    %v1388 = vrot.slane %v1386, 1
    %v1390 = vadd.f32 %v1385, %v1388
    %v1391 = vmul.f32 %v1335, 0.001028186
    %v1393 = vrot.slane %v1391, 2
    %v1395 = vadd.f32 %v1390, %v1393
    %v1396 = vmul.f32 %v1072, 0.001028186
    %v1397 = vmul.f32 %v1073, 0.001028186
    %v1398 = vmul.f32 %v1072, 0.007597324
    %v1399 = vmul.f32 %v1073, 0.007597324
    %1402 = vrot.lane.b32.xlu0 %v1398, 127
    %v1403 = vpop.permute.xlu0 %1402
    %1404 = vrot.lane.b32.xlu0 %v1399, 127
    %v1405 = vpop.permute.xlu0 %1404
    %v1408 = vadd.f32 %v1396, %v1403
    %v1409 = vadd.f32 %v1397, %v1405
    %v1410 = vmul.f32 %v1072, 0.03599398
    %v1411 = vmul.f32 %v1073, 0.03599398
    %1414 = vrot.lane.b32.xlu0 %v1410, 126
    %v1415 = vpop.permute.xlu0 %1414
    %1416 = vrot.lane.b32.xlu0 %v1411, 126
    %v1417 = vpop.permute.xlu0 %1416
    %v1420 = vadd.f32 %v1408, %v1415
    %v1421 = vadd.f32 %v1409, %v1417
    %v1422 = vmul.f32 %v1072, 0.10934005
    %v1423 = vmul.f32 %v1073, 0.10934005
    %1426 = vrot.lane.b32.xlu0 %v1422, 125
    %v1427 = vpop.permute.xlu0 %1426
    %1428 = vrot.lane.b32.xlu0 %v1423, 125
    %v1429 = vpop.permute.xlu0 %1428
    %v1432 = vadd.f32 %v1420, %v1427
    %v1433 = vadd.f32 %v1421, %v1429
    %v1434 = vmul.f32 %v1072, 0.21296534
    %v1435 = vmul.f32 %v1073, 0.21296534
    %1438 = vrot.lane.b32.xlu0 %v1434, 124
    %v1439 = vpop.permute.xlu0 %1438
    %1440 = vrot.lane.b32.xlu0 %v1435, 124
    %v1441 = vpop.permute.xlu0 %1440
    %v1444 = vadd.f32 %v1432, %v1439
    %v1445 = vadd.f32 %v1433, %v1441
    %v1446 = vmul.f32 %v1072, 0.26596153
    %v1447 = vmul.f32 %v1073, 0.26596153
    %1450 = vrot.lane.b32.xlu0 %v1446, 123
    %v1451 = vpop.permute.xlu0 %1450
    %1452 = vrot.lane.b32.xlu0 %v1447, 123
    %v1453 = vpop.permute.xlu0 %1452
    %v1456 = vadd.f32 %v1444, %v1451
    %v1457 = vadd.f32 %v1445, %v1453
    %1458 = vrot.lane.b32.xlu0 %v1434, 122
    %v1459 = vpop.permute.xlu0 %1458
    %1460 = vrot.lane.b32.xlu0 %v1435, 122
    %v1461 = vpop.permute.xlu0 %1460
    %v1464 = vadd.f32 %v1456, %v1459
    %v1465 = vadd.f32 %v1457, %v1461
    %1466 = vrot.lane.b32.xlu0 %v1422, 121
    %v1467 = vpop.permute.xlu0 %1466
    %1468 = vrot.lane.b32.xlu0 %v1423, 121
    %v1469 = vpop.permute.xlu0 %1468
    %v1472 = vadd.f32 %v1464, %v1467
    %v1473 = vadd.f32 %v1465, %v1469
    %1474 = vrot.lane.b32.xlu0 %v1410, 120
    %v1475 = vpop.permute.xlu0 %1474
    %1476 = vrot.lane.b32.xlu0 %v1411, 120
    %v1477 = vpop.permute.xlu0 %1476
    %v1480 = vadd.f32 %v1472, %v1475
    %v1481 = vadd.f32 %v1473, %v1477
    %1482 = vrot.lane.b32.xlu0 %v1398, 119
    %v1483 = vpop.permute.xlu0 %1482
    %1484 = vrot.lane.b32.xlu0 %v1399, 119
    %v1485 = vpop.permute.xlu0 %1484
    %v1488 = vadd.f32 %v1480, %v1483
    %v1489 = vadd.f32 %v1481, %v1485
    %1492 = vrot.lane.b32.xlu0 %v1396, 118
    %v1493 = vpop.permute.xlu0 %1492
    %1494 = vrot.lane.b32.xlu0 %v1397, 118
    %v1495 = vpop.permute.xlu0 %1494
    %v1498 = vadd.f32 %v1488, %v1493
    %v1499 = vadd.f32 %v1489, %v1495
    %v1500 = vmul.f32 %v1498, 0.001028186
    %v1501 = vmul.f32 %v1498, 0.007597324
    %v1503 = vrot.slane %v1501, 1
    %v1505 = vadd.f32 %v1500, %v1503
    %v1506 = vmul.f32 %v1498, 0.03599398
    %v1508 = vrot.slane %v1506, 2
    %v1510 = vadd.f32 %v1505, %v1508
    %v1511 = vmul.f32 %v1498, 0.10934005
    %v1512 = vmul.f32 %v1499, 0.10934005
    %v1515 = vrot.slane %v1511, 3
    %v1516 = vrot.slane %v1512, 3
    %v1517 = vsel %vm328, %v1515, %v1516
    %v1519 = vadd.f32 %v1510, %v1517
    %v1520 = vmul.f32 %v1498, 0.21296534
    %v1521 = vmul.f32 %v1499, 0.21296534
    %v1524 = vrot.slane %v1520, 4
    %v1525 = vrot.slane %v1521, 4
    %v1526 = vsel %vm338, %v1524, %v1525
    %v1528 = vadd.f32 %v1519, %v1526
    %v1529 = vmul.f32 %v1498, 0.26596153
    %v1530 = vmul.f32 %v1499, 0.26596153
    %v1533 = vrot.slane %v1529, 5
    %v1534 = vrot.slane %v1530, 5
    %v1535 = vsel %vm348, %v1533, %v1534
    %v1537 = vadd.f32 %v1528, %v1535
    %v1538 = vrot.slane %v1520, 6
    %v1539 = vrot.slane %v1521, 6
    %v1540 = vsel %vm97, %v1538, %v1539
    %v1542 = vadd.f32 %v1537, %v1540
    %v1543 = vrot.slane %v1511, 7
    %v1544 = vrot.slane %v1512, 7
    %v1545 = vsel %vm359, %v1543, %v1544
    %v1547 = vadd.f32 %v1542, %v1545
    %v1548 = vmul.f32 %v1499, 0.03599398
    %v1549 = vadd.f32 %v1547, %v1548
    %v1550 = vmul.f32 %v1499, 0.007597324
    %v1552 = vrot.slane %v1550, 1
    %v1554 = vadd.f32 %v1549, %v1552
    %v1555 = vmul.f32 %v1499, 0.001028186
    %v1557 = vrot.slane %v1555, 2
    %v1559 = vadd.f32 %v1554, %v1557
    %v1560 = vmul.f32 %v1226, 0.001028186
    %v1561 = vmul.f32 %v1227, 0.001028186
    %v1562 = vmul.f32 %v1226, 0.007597324
    %v1563 = vmul.f32 %v1227, 0.007597324
    %1566 = vrot.lane.b32.xlu0 %v1562, 127
    %v1567 = vpop.permute.xlu0 %1566
    %1568 = vrot.lane.b32.xlu0 %v1563, 127
    %v1569 = vpop.permute.xlu0 %1568
    %v1572 = vadd.f32 %v1560, %v1567
    %v1573 = vadd.f32 %v1561, %v1569
    %v1574 = vmul.f32 %v1226, 0.03599398
    %v1575 = vmul.f32 %v1227, 0.03599398
    %1578 = vrot.lane.b32.xlu0 %v1574, 126
    %v1579 = vpop.permute.xlu0 %1578
    %1580 = vrot.lane.b32.xlu0 %v1575, 126
    %v1581 = vpop.permute.xlu0 %1580
    %v1584 = vadd.f32 %v1572, %v1579
    %v1585 = vadd.f32 %v1573, %v1581
    %v1586 = vmul.f32 %v1226, 0.10934005
    %v1587 = vmul.f32 %v1227, 0.10934005
    %1590 = vrot.lane.b32.xlu0 %v1586, 125
    %v1591 = vpop.permute.xlu0 %1590
    %1592 = vrot.lane.b32.xlu0 %v1587, 125
    %v1593 = vpop.permute.xlu0 %1592
    %v1596 = vadd.f32 %v1584, %v1591
    %v1597 = vadd.f32 %v1585, %v1593
    %v1598 = vmul.f32 %v1226, 0.21296534
    %v1599 = vmul.f32 %v1227, 0.21296534
    %1602 = vrot.lane.b32.xlu0 %v1598, 124
    %v1603 = vpop.permute.xlu0 %1602
    %1604 = vrot.lane.b32.xlu0 %v1599, 124
    %v1605 = vpop.permute.xlu0 %1604
    %v1608 = vadd.f32 %v1596, %v1603
    %v1609 = vadd.f32 %v1597, %v1605
    %v1610 = vmul.f32 %v1226, 0.26596153
    %v1611 = vmul.f32 %v1227, 0.26596153
    %1614 = vrot.lane.b32.xlu0 %v1610, 123
    %v1615 = vpop.permute.xlu0 %1614
    %1616 = vrot.lane.b32.xlu0 %v1611, 123
    %v1617 = vpop.permute.xlu0 %1616
    %v1620 = vadd.f32 %v1608, %v1615
    %v1621 = vadd.f32 %v1609, %v1617
    %1622 = vrot.lane.b32.xlu0 %v1598, 122
    %v1623 = vpop.permute.xlu0 %1622
    %1624 = vrot.lane.b32.xlu0 %v1599, 122
    %v1625 = vpop.permute.xlu0 %1624
    %v1628 = vadd.f32 %v1620, %v1623
    %v1629 = vadd.f32 %v1621, %v1625
    %1630 = vrot.lane.b32.xlu0 %v1586, 121
    %v1631 = vpop.permute.xlu0 %1630
    %1632 = vrot.lane.b32.xlu0 %v1587, 121
    %v1633 = vpop.permute.xlu0 %1632
    %v1636 = vadd.f32 %v1628, %v1631
    %v1637 = vadd.f32 %v1629, %v1633
    %1638 = vrot.lane.b32.xlu0 %v1574, 120
    %v1639 = vpop.permute.xlu0 %1638
    %1640 = vrot.lane.b32.xlu0 %v1575, 120
    %v1641 = vpop.permute.xlu0 %1640
    %v1644 = vadd.f32 %v1636, %v1639
    %v1645 = vadd.f32 %v1637, %v1641
    %1646 = vrot.lane.b32.xlu0 %v1562, 119
    %v1647 = vpop.permute.xlu0 %1646
    %1648 = vrot.lane.b32.xlu0 %v1563, 119
    %v1649 = vpop.permute.xlu0 %1648
    %v1652 = vadd.f32 %v1644, %v1647
    %v1653 = vadd.f32 %v1645, %v1649
    %1656 = vrot.lane.b32.xlu0 %v1560, 118
    %v1657 = vpop.permute.xlu0 %1656
    %1658 = vrot.lane.b32.xlu0 %v1561, 118
    %v1659 = vpop.permute.xlu0 %1658
    %v1662 = vadd.f32 %v1652, %v1657
    %v1663 = vadd.f32 %v1653, %v1659
    %v1664 = vmul.f32 %v1662, 0.001028186
    %v1665 = vmul.f32 %v1662, 0.007597324
    %v1667 = vrot.slane %v1665, 1
    %v1669 = vadd.f32 %v1664, %v1667
    %v1670 = vmul.f32 %v1662, 0.03599398
    %v1672 = vrot.slane %v1670, 2
    %v1674 = vadd.f32 %v1669, %v1672
    %v1675 = vmul.f32 %v1662, 0.10934005
    %v1676 = vmul.f32 %v1663, 0.10934005
    %v1679 = vrot.slane %v1675, 3
    %v1680 = vrot.slane %v1676, 3
    %v1681 = vsel %vm328, %v1679, %v1680
    %v1683 = vadd.f32 %v1674, %v1681
    %v1684 = vmul.f32 %v1662, 0.21296534
    %v1685 = vmul.f32 %v1663, 0.21296534
    %v1688 = vrot.slane %v1684, 4
    %v1689 = vrot.slane %v1685, 4
    %v1690 = vsel %vm338, %v1688, %v1689
    %v1692 = vadd.f32 %v1683, %v1690
    %v1693 = vmul.f32 %v1662, 0.26596153
    %v1694 = vmul.f32 %v1663, 0.26596153
    %v1697 = vrot.slane %v1693, 5
    %v1698 = vrot.slane %v1694, 5
    %v1699 = vsel %vm348, %v1697, %v1698
    %v1701 = vadd.f32 %v1692, %v1699
    %v1702 = vrot.slane %v1684, 6
    %v1703 = vrot.slane %v1685, 6
    %v1704 = vsel %vm97, %v1702, %v1703
    %v1706 = vadd.f32 %v1701, %v1704
    %v1707 = vrot.slane %v1675, 7
    %v1708 = vrot.slane %v1676, 7
    %v1709 = vsel %vm359, %v1707, %v1708
    %v1711 = vadd.f32 %v1706, %v1709
    %v1712 = vmul.f32 %v1663, 0.03599398
    %v1713 = vadd.f32 %v1711, %v1712
    %v1714 = vmul.f32 %v1663, 0.007597324
    %v1716 = vrot.slane %v1714, 1
    %v1718 = vadd.f32 %v1713, %v1716
    %v1719 = vmul.f32 %v1663, 0.001028186
    %v1721 = vrot.slane %v1719, 2
    %v1723 = vadd.f32 %v1718, %v1721
    %v1724 = vmul.f32 %v1228, 0.001028186
    %v1725 = vmul.f32 %v1229, 0.001028186
    %v1726 = vmul.f32 %v1228, 0.007597324
    %v1727 = vmul.f32 %v1229, 0.007597324
    %1730 = vrot.lane.b32.xlu0 %v1726, 127
    %v1731 = vpop.permute.xlu0 %1730
    %1732 = vrot.lane.b32.xlu0 %v1727, 127
    %v1733 = vpop.permute.xlu0 %1732
    %v1736 = vadd.f32 %v1724, %v1731
    %v1737 = vadd.f32 %v1725, %v1733
    %v1738 = vmul.f32 %v1228, 0.03599398
    %v1739 = vmul.f32 %v1229, 0.03599398
    %1742 = vrot.lane.b32.xlu0 %v1738, 126
    %v1743 = vpop.permute.xlu0 %1742
    %1744 = vrot.lane.b32.xlu0 %v1739, 126
    %v1745 = vpop.permute.xlu0 %1744
    %v1748 = vadd.f32 %v1736, %v1743
    %v1749 = vadd.f32 %v1737, %v1745
    %v1750 = vmul.f32 %v1228, 0.10934005
    %v1751 = vmul.f32 %v1229, 0.10934005
    %1754 = vrot.lane.b32.xlu0 %v1750, 125
    %v1755 = vpop.permute.xlu0 %1754
    %1756 = vrot.lane.b32.xlu0 %v1751, 125
    %v1757 = vpop.permute.xlu0 %1756
    %v1760 = vadd.f32 %v1748, %v1755
    %v1761 = vadd.f32 %v1749, %v1757
    %v1762 = vmul.f32 %v1228, 0.21296534
    %v1763 = vmul.f32 %v1229, 0.21296534
    %1766 = vrot.lane.b32.xlu0 %v1762, 124
    %v1767 = vpop.permute.xlu0 %1766
    %1768 = vrot.lane.b32.xlu0 %v1763, 124
    %v1769 = vpop.permute.xlu0 %1768
    %v1772 = vadd.f32 %v1760, %v1767
    %v1773 = vadd.f32 %v1761, %v1769
    %v1774 = vmul.f32 %v1228, 0.26596153
    %v1775 = vmul.f32 %v1229, 0.26596153
    %1778 = vrot.lane.b32.xlu0 %v1774, 123
    %v1779 = vpop.permute.xlu0 %1778
    %1780 = vrot.lane.b32.xlu0 %v1775, 123
    %v1781 = vpop.permute.xlu0 %1780
    %v1784 = vadd.f32 %v1772, %v1779
    %v1785 = vadd.f32 %v1773, %v1781
    %1786 = vrot.lane.b32.xlu0 %v1762, 122
    %v1787 = vpop.permute.xlu0 %1786
    %1788 = vrot.lane.b32.xlu0 %v1763, 122
    %v1789 = vpop.permute.xlu0 %1788
    %v1792 = vadd.f32 %v1784, %v1787
    %v1793 = vadd.f32 %v1785, %v1789
    %1794 = vrot.lane.b32.xlu0 %v1750, 121
    %v1795 = vpop.permute.xlu0 %1794
    %1796 = vrot.lane.b32.xlu0 %v1751, 121
    %v1797 = vpop.permute.xlu0 %1796
    %v1800 = vadd.f32 %v1792, %v1795
    %v1801 = vadd.f32 %v1793, %v1797
    %1802 = vrot.lane.b32.xlu0 %v1738, 120
    %v1803 = vpop.permute.xlu0 %1802
    %1804 = vrot.lane.b32.xlu0 %v1739, 120
    %v1805 = vpop.permute.xlu0 %1804
    %v1808 = vadd.f32 %v1800, %v1803
    %v1809 = vadd.f32 %v1801, %v1805
    %1810 = vrot.lane.b32.xlu0 %v1726, 119
    %v1811 = vpop.permute.xlu0 %1810
    %1812 = vrot.lane.b32.xlu0 %v1727, 119
    %v1813 = vpop.permute.xlu0 %1812
    %v1816 = vadd.f32 %v1808, %v1811
    %v1817 = vadd.f32 %v1809, %v1813
    %1820 = vrot.lane.b32.xlu0 %v1724, 118
    %v1821 = vpop.permute.xlu0 %1820
    %1822 = vrot.lane.b32.xlu0 %v1725, 118
    %v1823 = vpop.permute.xlu0 %1822
    %v1826 = vadd.f32 %v1816, %v1821
    %v1827 = vadd.f32 %v1817, %v1823
    %v1828 = vmul.f32 %v1826, 0.001028186
    %v1829 = vmul.f32 %v1826, 0.007597324
    %v1831 = vrot.slane %v1829, 1
    %v1833 = vadd.f32 %v1828, %v1831
    %v1834 = vmul.f32 %v1826, 0.03599398
    %v1836 = vrot.slane %v1834, 2
    %v1838 = vadd.f32 %v1833, %v1836
    %v1839 = vmul.f32 %v1826, 0.10934005
    %v1840 = vmul.f32 %v1827, 0.10934005
    %v1843 = vrot.slane %v1839, 3
    %v1844 = vrot.slane %v1840, 3
    %v1845 = vsel %vm328, %v1843, %v1844
    %v1847 = vadd.f32 %v1838, %v1845
    %v1848 = vmul.f32 %v1826, 0.21296534
    %v1849 = vmul.f32 %v1827, 0.21296534
    %v1852 = vrot.slane %v1848, 4
    %v1853 = vrot.slane %v1849, 4
    %v1854 = vsel %vm338, %v1852, %v1853
    %v1856 = vadd.f32 %v1847, %v1854
    %v1857 = vmul.f32 %v1826, 0.26596153
    %v1858 = vmul.f32 %v1827, 0.26596153
    %v1861 = vrot.slane %v1857, 5
    %v1862 = vrot.slane %v1858, 5
    %v1863 = vsel %vm348, %v1861, %v1862
    %v1865 = vadd.f32 %v1856, %v1863
    %v1866 = vrot.slane %v1848, 6
    %v1867 = vrot.slane %v1849, 6
    %v1868 = vsel %vm97, %v1866, %v1867
    %v1870 = vadd.f32 %v1865, %v1868
    %v1871 = vrot.slane %v1839, 7
    %v1872 = vrot.slane %v1840, 7
    %v1873 = vsel %vm359, %v1871, %v1872
    %v1875 = vadd.f32 %v1870, %v1873
    %v1876 = vmul.f32 %v1827, 0.03599398
    %v1877 = vadd.f32 %v1875, %v1876
    %v1878 = vmul.f32 %v1827, 0.007597324
    %v1880 = vrot.slane %v1878, 1
    %v1882 = vadd.f32 %v1877, %v1880
    %v1883 = vmul.f32 %v1827, 0.001028186
    %v1885 = vrot.slane %v1883, 2
    %v1887 = vadd.f32 %v1882, %v1885
    %v1888 = vmul.f32 %v1230, 0.001028186
    %v1889 = vmul.f32 %v1231, 0.001028186
    %v1890 = vmul.f32 %v1230, 0.007597324
    %v1891 = vmul.f32 %v1231, 0.007597324
    %1894 = vrot.lane.b32.xlu0 %v1890, 127
    %v1895 = vpop.permute.xlu0 %1894
    %1896 = vrot.lane.b32.xlu0 %v1891, 127
    %v1897 = vpop.permute.xlu0 %1896
    %v1900 = vadd.f32 %v1888, %v1895
    %v1901 = vadd.f32 %v1889, %v1897
    %v1902 = vmul.f32 %v1230, 0.03599398
    %v1903 = vmul.f32 %v1231, 0.03599398
    %1906 = vrot.lane.b32.xlu0 %v1902, 126
    %v1907 = vpop.permute.xlu0 %1906
    %1908 = vrot.lane.b32.xlu0 %v1903, 126
    %v1909 = vpop.permute.xlu0 %1908
    %v1912 = vadd.f32 %v1900, %v1907
    %v1913 = vadd.f32 %v1901, %v1909
    %v1914 = vmul.f32 %v1230, 0.10934005
    %v1915 = vmul.f32 %v1231, 0.10934005
    %1918 = vrot.lane.b32.xlu0 %v1914, 125
    %v1919 = vpop.permute.xlu0 %1918
    %1920 = vrot.lane.b32.xlu0 %v1915, 125
    %v1921 = vpop.permute.xlu0 %1920
    %v1924 = vadd.f32 %v1912, %v1919
    %v1925 = vadd.f32 %v1913, %v1921
    %v1926 = vmul.f32 %v1230, 0.21296534
    %v1927 = vmul.f32 %v1231, 0.21296534
    %1930 = vrot.lane.b32.xlu0 %v1926, 124
    %v1931 = vpop.permute.xlu0 %1930
    %1932 = vrot.lane.b32.xlu0 %v1927, 124
    %v1933 = vpop.permute.xlu0 %1932
    %v1936 = vadd.f32 %v1924, %v1931
    %v1937 = vadd.f32 %v1925, %v1933
    %v1938 = vmul.f32 %v1230, 0.26596153
    %v1939 = vmul.f32 %v1231, 0.26596153
    %1942 = vrot.lane.b32.xlu0 %v1938, 123
    %v1943 = vpop.permute.xlu0 %1942
    %1944 = vrot.lane.b32.xlu0 %v1939, 123
    %v1945 = vpop.permute.xlu0 %1944
    %v1948 = vadd.f32 %v1936, %v1943
    %v1949 = vadd.f32 %v1937, %v1945
    %1950 = vrot.lane.b32.xlu0 %v1926, 122
    %v1951 = vpop.permute.xlu0 %1950
    %1952 = vrot.lane.b32.xlu0 %v1927, 122
    %v1953 = vpop.permute.xlu0 %1952
    %v1956 = vadd.f32 %v1948, %v1951
    %v1957 = vadd.f32 %v1949, %v1953
    %1958 = vrot.lane.b32.xlu0 %v1914, 121
    %v1959 = vpop.permute.xlu0 %1958
    %1960 = vrot.lane.b32.xlu0 %v1915, 121
    %v1961 = vpop.permute.xlu0 %1960
    %v1964 = vadd.f32 %v1956, %v1959
    %v1965 = vadd.f32 %v1957, %v1961
    %1966 = vrot.lane.b32.xlu0 %v1902, 120
    %v1967 = vpop.permute.xlu0 %1966
    %1968 = vrot.lane.b32.xlu0 %v1903, 120
    %v1969 = vpop.permute.xlu0 %1968
    %v1972 = vadd.f32 %v1964, %v1967
    %v1973 = vadd.f32 %v1965, %v1969
    %1974 = vrot.lane.b32.xlu0 %v1890, 119
    %v1975 = vpop.permute.xlu0 %1974
    %1976 = vrot.lane.b32.xlu0 %v1891, 119
    %v1977 = vpop.permute.xlu0 %1976
    %v1980 = vadd.f32 %v1972, %v1975
    %v1981 = vadd.f32 %v1973, %v1977
    %1984 = vrot.lane.b32.xlu0 %v1888, 118
    %v1985 = vpop.permute.xlu0 %1984
    %1986 = vrot.lane.b32.xlu0 %v1889, 118
    %v1987 = vpop.permute.xlu0 %1986
    %v1990 = vadd.f32 %v1980, %v1985
    %v1991 = vadd.f32 %v1981, %v1987
    %v1992 = vmul.f32 %v1990, 0.001028186
    %v1993 = vmul.f32 %v1990, 0.007597324
    %v1995 = vrot.slane %v1993, 1
    %v1997 = vadd.f32 %v1992, %v1995
    %v1998 = vmul.f32 %v1990, 0.03599398
    %v2000 = vrot.slane %v1998, 2
    %v2002 = vadd.f32 %v1997, %v2000
    %v2003 = vmul.f32 %v1990, 0.10934005
    %v2004 = vmul.f32 %v1991, 0.10934005
    %v2007 = vrot.slane %v2003, 3
    %v2008 = vrot.slane %v2004, 3
    %v2009 = vsel %vm328, %v2007, %v2008
    %v2011 = vadd.f32 %v2002, %v2009
    %v2012 = vmul.f32 %v1990, 0.21296534
    %v2013 = vmul.f32 %v1991, 0.21296534
    %v2016 = vrot.slane %v2012, 4
    %v2017 = vrot.slane %v2013, 4
    %v2018 = vsel %vm338, %v2016, %v2017
    %v2020 = vadd.f32 %v2011, %v2018
    %v2021 = vmul.f32 %v1990, 0.26596153
    %v2022 = vmul.f32 %v1991, 0.26596153
    %v2025 = vrot.slane %v2021, 5
    %v2026 = vrot.slane %v2022, 5
    %v2027 = vsel %vm348, %v2025, %v2026
    %v2029 = vadd.f32 %v2020, %v2027
    %v2030 = vrot.slane %v2012, 6
    %v2031 = vrot.slane %v2013, 6
    %v2032 = vsel %vm97, %v2030, %v2031
    %v2034 = vadd.f32 %v2029, %v2032
    %v2035 = vrot.slane %v2003, 7
    %v2036 = vrot.slane %v2004, 7
    %v2037 = vsel %vm359, %v2035, %v2036
    %v2039 = vadd.f32 %v2034, %v2037
    %v2040 = vmul.f32 %v1991, 0.03599398
    %v2041 = vadd.f32 %v2039, %v2040
    %v2042 = vmul.f32 %v1991, 0.007597324
    %v2044 = vrot.slane %v2042, 1
    %v2046 = vadd.f32 %v2041, %v2044
    %v2047 = vmul.f32 %v1991, 0.001028186
    %v2049 = vrot.slane %v2047, 2
    %v2051 = vadd.f32 %v2046, %v2049
    %v2052 = vmul.f32 %v1395, %v1395
    %v2053 = vsub.f32 %v1723, %v2052
    %v2054 = vmul.f32 %v1559, %v1559
    %v2055 = vsub.f32 %v1887, %v2054
    %v2056 = vmul.f32 %v1395, %v1559
    %v2057 = vsub.f32 %v2051, %v2056
    %v2058 = vmul.f32 %v1395, 2.0
    %v2059 = vmul.f32 %v2058, %v1559
    %v2060 = vadd.f32 %v2059, 98.01
    %v2061 = vmul.f32 %v2057, 2.0
    %v2062 = vadd.f32 %v2061, 882.09
    %v2063 = vmul.f32 %v2060, %v2062
    %v2064 = vadd.f32 %v2052, %v2054
    %v2065 = vadd.f32 %v2064, 98.01
    %v2066 = vadd.f32 %v2053, %v2055
    %v2067 = vadd.f32 %v2066, 882.09
    %v2068 = vmul.f32 %v2065, %v2067
    %v2069 = vrcp.pop %v2068
    %v2070 = vmul.f32 %v2068, %v2069
    %v2071 = vsub.f32 2.0, %v2070
    %v2072 = vmul.f32 %v2069, %v2071
    %v2073 = vmul.f32 %v2063, %v2072
    %v2074 = vsel %vm1055, %v2073, 0.0
    %2075 = vadd.xlane.f32.xlu0 %v2074
    %v2076 = vpop.xlane.xlu0 %2075
    %v2077 = vrot.slane %v2076, 4
    %v2078 = vadd.f32 %v2076, %v2077
    %v2079 = vrot.slane %v2078, 2
    %v2080 = vadd.f32 %v2078, %v2079
    %v2081 = vrot.slane %v2080, 1
    %v2082 = vadd.f32 %v2080, %v2081
    %s2083 = vtos %v2082
    %v2084 = vstv %s2083
    %v2085 = vadd.f32 %v1067, %v2084
    %v2086 = vlaneseq
    %v2087 = vand.u32 %v2086, 127
    %vm2088 = vcmp.eq.s32.totalorder %v2087, 0
    %v2089 = vsel %vm2088, %v1091, 0.0
    %vm2090 = vcmp.eq.s32.totalorder %v2087, 1
    %v2091 = vsel %vm2090, %v1225, 0.0
    %v2092 = vadd.f32 %v2089, %v2091
    %vm2093 = vcmp.eq.s32.totalorder %v2087, 2
    %v2094 = vsel %vm2093, %v2085, 0.0
    %v2095 = vadd.f32 %v2092, %v2094
    %2096 = vst [vmem:[#allocation7] sm:$0x1] %v2095
    // Predicated region
    $region18: #{tpu_custom_call.1} parent=1 // pred_check
      _
    $region19: #{tpu_custom_call.1} parent=1 // pred_check_branch
      %2098 = sbr.rel (0) target = $region21
    $region20: #{tpu_custom_call.1} parent=1 // pred_region
      %s2100 = ssub.s32 16, 16
      %2101 = vsyncadd [#allocation4], %s2100
      %s2103 = sshll.u32 [#allocation7], 4
      %s2104 = int_to_ptr.vmem [resolvable:$true] %s2103
      %2106 = dma.vmem_to_hbm [thread:$0]  %s2104, 16, %s2, [#allocation4]
    $region21: #{tpu_custom_call.1} parent=1 // pred_fallthru
      _
    // Predicated region
    $region22: #{tpu_custom_call.1} parent=1 // pred_check
      _
    $region23: #{tpu_custom_call.1} parent=1 // pred_check_branch
      %2108 = sbr.rel (0) target = $region25
    $region24: #{tpu_custom_call.1} parent=1 // pred_region
      %2109 = dma.done [#allocation4], 16
    $region25: #{tpu_custom_call.1} parent=1 // pred_fallthru
      _
    %2110 = vsyncpa [#allocation3], 1
    %2111 = vsyncpa [#allocation6], 1
    %2112 = vsyncpa [#allocation4], 1

</llo_original>
